<compile_context>
chip_gen: v6e
topology: v6e:2x2x1
jax: 0.10.0
libtpu: 0.0.40
codegen_flags: <defaults>
</compile_context>

<pallas_src>
import functools

import jax
import jax.numpy as jnp
from jax.experimental import pallas as pl
from jax.experimental.pallas import tpu as pltpu

LANE = 128                       # lane-dense output channel padding
TM_MAX = 1024                    # max rows per matmul tile
TR_MAX = 512                     # max rows per pool tile
VMEM_LIMIT = 32 * 1024 * 1024    # explicit scoped-VMEM limit (fits every gen)


def _round_up(x, m):
    return ((x + m - 1) // m) * m


# ---------------------------------------------------------------------------
# Pallas kernels
# ---------------------------------------------------------------------------
def _matmul_bias_relu_kernel(x_ref, w_ref, b_ref, o_ref):
    # x: (tm, K), w: (K, 128p), b: (1, 128p) -> o: (tm, 128p), lane-dense stores
    acc = jnp.dot(x_ref[...], w_ref[...], preferred_element_type=jnp.float32)
    o_ref[...] = jnp.maximum(acc + b_ref[...], 0.0)


def matmul_bias_relu(x, w, b):
    """relu(x @ w + b). x:(M,K) w:(K,N) b:(N,). N padded to 128 lanes internally."""
    M, K = x.shape
    N = w.shape[1]
    Np = _round_up(N, LANE)
    w_p = jnp.pad(w, ((0, 0), (0, Np - N)))            # tiny; makes stores lane-dense
    b_p = jnp.pad(b, (0, Np - N)).reshape(1, Np)

    # Big tiles, but keep >=2 blocks when possible so both v7x TCs are used.
    tm = min(TM_MAX, max(8, _round_up(pl.cdiv(M, 2), 8)))
    grid = (pl.cdiv(M, tm),)                           # ragged tail handled by Pallas

    out = pl.pallas_call(
        _matmul_bias_relu_kernel,
        out_shape=jax.ShapeDtypeStruct((M, Np), jnp.float32),
        grid=grid,
        in_specs=[
            pl.BlockSpec((tm, K), lambda i: (i, 0)),
            pl.BlockSpec((K, Np), lambda i: (0, 0)),
            pl.BlockSpec((1, Np), lambda i: (0, 0)),
        ],
        out_specs=pl.BlockSpec((tm, Np), lambda i: (i, 0)),
        compiler_params=pltpu.CompilerParams(
            dimension_semantics=("parallel",),
            vmem_limit_bytes=VMEM_LIMIT),
    )(x, w_p, b_p)
    return out[:, :N]                                  # drop lane padding


def _max_taps_kernel(*refs):
    # refs = (tap_0, ..., tap_{KK-1}, out); pairwise max, no stacked (KK,M,C) array
    o_ref = refs[-1]
    taps = refs[:-1]
    m = taps[0][...]
    for t in taps[1:]:
        m = jnp.maximum(m, t[...])
    o_ref[...] = m


def max_over_taps(taps_2d):
    """Elementwise max over a list of identically shaped (R, L) f32 arrays."""
    R, L = taps_2d[0].shape
    tr = R if R <= TR_MAX else TR_MAX                  # full-dim or 8-aligned tile
    grid = (pl.cdiv(R, tr),)
    spec = pl.BlockSpec((tr, L), lambda i: (i, 0))
    return pl.pallas_call(
        _max_taps_kernel,
        out_shape=jax.ShapeDtypeStruct((R, L), taps_2d[0].dtype),
        grid=grid,
        in_specs=[spec] * len(taps_2d),
        out_specs=spec,
        compiler_params=pltpu.CompilerParams(
            dimension_semantics=("parallel",),
            vmem_limit_bytes=VMEM_LIMIT),
    )(*taps_2d)


# ---------------------------------------------------------------------------
# Plain-JAX glue (window-tap extraction / reshapes only)
# ---------------------------------------------------------------------------
def _extract_taps(x, k, stride):
    """x: (N,H,W,C) NHWC -> list of k*k strided taps, each (N,Ho,Wo,C)."""
    N, H, W, C = x.shape
    Ho = (H - k) // stride + 1
    Wo = (W - k) // stride + 1
    taps = []
    for di in range(k):
        for dj in range(k):
            taps.append(
                x[:, di:di + stride * Ho:stride, dj:dj + stride * Wo:stride, :]
            )
    return taps, Ho, Wo


def conv2d_relu(x, w, b, stride):
    """x: (N,H,W,Cin) NHWC; w: (Cout,Cin,kH,kW) torch layout; b: (Cout,)."""
    Cout, Cin, k, _ = w.shape
    taps, Ho, Wo = _extract_taps(x, k, stride)
    # patch feature ordering (di, dj, cin) matches the (2,3,1,0) weight transpose
    patches = jnp.concatenate(taps, axis=-1)                 # (N,Ho,Wo,k*k*Cin)
    Nb = x.shape[0]
    xm = patches.reshape(Nb * Ho * Wo, k * k * Cin)
    wm = jnp.transpose(w, (2, 3, 1, 0)).reshape(k * k * Cin, Cout)
    ym = matmul_bias_relu(xm, wm, b)                         # fused +bias, ReLU
    return ym.reshape(Nb, Ho, Wo, Cout)


def maxpool2d(x, k, stride):
    """x: (N,H,W,C) NHWC; torch MaxPool2d(k, stride) semantics (no padding)."""
    N, H, W, C = x.shape
    taps, Ho, Wo = _extract_taps(x, k, stride)
    # lane-dense 2D layout: rows = N*Ho, lanes = Wo*C (elementwise max is
    # layout-agnostic, so any consistent reshape is valid)
    taps_2d = [t.reshape(N * Ho, Wo * C) for t in taps]
    y = max_over_taps(taps_2d)
    return y.reshape(N, Ho, Wo, C)


# ---------------------------------------------------------------------------
# CNN forward + deterministic parameter init
# ---------------------------------------------------------------------------
def cnn_forward(x_nchw, params, dim_out):
    x = jnp.transpose(x_nchw, (0, 2, 3, 1))                  # NCHW -> NHWC
    x = conv2d_relu(x, params["w1"], params["b1"], stride=2)  # Conv2d(1,8,3,2)+ReLU
    x = maxpool2d(x, 3, 2)                                    # MaxPool2d(3,2)
    x = conv2d_relu(x, params["w2"], params["b2"], stride=2)  # Conv2d(8,dim_out,3,2)+ReLU
    x = maxpool2d(x, 3, 2)                                    # MaxPool2d(3,2)
    x = maxpool2d(x, 5, 5)                                    # self.maxpool = MaxPool2d(5,5)
    x = jnp.transpose(x, (0, 3, 1, 2))                        # back to NCHW for .view()
    return x.reshape(-1, dim_out)


def init_params(key, dim_out):
    """Deterministic init mimicking torch Conv2d default (uniform +/- 1/sqrt(fan_in))."""
    k1, k2, k3, k4 = jax.random.split(key, 4)
    fan1 = 1 * 3 * 3
    b1_bound = 1.0 / (fan1 ** 0.5)
    fan2 = 8 * 3 * 3
    b2_bound = 1.0 / (fan2 ** 0.5)
    return {
        "w1": jax.random.uniform(k1, (8, 1, 3, 3), jnp.float32, -b1_bound, b1_bound),
        "b1": jax.random.uniform(k2, (8,), jnp.float32, -b1_bound, b1_bound),
        "w2": jax.random.uniform(k3, (dim_out, 8, 3, 3), jnp.float32, -b2_bound, b2_bound),
        "b2": jax.random.uniform(k4, (dim_out,), jnp.float32, -b2_bound, b2_bound),
    }


if __name__ == "__main__":
    dim_out = 16
    # 95x95 is the smallest square input for which every stage of the torch
    # module produces a non-empty output (final feature map is 1x1 -> (N, dim_out)).
    key = jax.random.PRNGKey(0)
    kx, kp = jax.random.split(key)
    x = jax.random.normal(kx, (2, 1, 95, 95), dtype=jnp.float32)
    params = init_params(kp, dim_out)

    fwd = jax.jit(functools.partial(cnn_forward, dim_out=dim_out))
    out = jax.block_until_ready(fwd(x, params))
    assert out.shape == (2, dim_out), out.shape
    assert jnp.all(jnp.isfinite(out))
    print("KERNEL_OK")
</pallas_src>

<mosaic_0001>
module attributes {stable_mosaic.version = 11 : i64} {
  func.func @_matmul_bias_relu_kernel(%arg0: i32, %arg1: memref<1024x9xf32, #tpu.memory_space<vmem>>, %arg2: memref<9x128xf32, #tpu.memory_space<vmem>>, %arg3: memref<1x128xf32, #tpu.memory_space<vmem>>, %arg4: memref<1024x128xf32, #tpu.memory_space<vmem>>) attributes {dimension_semantics = [#tpu.dimension_semantics<parallel>], iteration_bounds = array<i64: 5>, scalar_prefetch = 0 : i64, scratch_operands = 0 : i64, tpu.core_type = #tpu.core_type<tc>, window_params = [{transform_indices = @transform_0, window_bounds = array<i64: 1024, 9>}, {pipeline_mode = #tpu.pipeline_mode<synchronous>, transform_indices = @transform_1, window_bounds = array<i64: 9, 128>}, {pipeline_mode = #tpu.pipeline_mode<synchronous>, transform_indices = @transform_2, window_bounds = array<i64: 1, 128>}, {transform_indices = @transform_3, window_bounds = array<i64: 1024, 128>}]} {
    %c0 = arith.constant 0 : index
    %c0_0 = arith.constant 0 : index
    %0 = vector.load %arg1[%c0, %c0_0] : memref<1024x9xf32, #tpu.memory_space<vmem>>, vector<1024x9xf32>
    %c0_1 = arith.constant 0 : index
    %c0_2 = arith.constant 0 : index
    %1 = vector.load %arg2[%c0_1, %c0_2] : memref<9x128xf32, #tpu.memory_space<vmem>>, vector<9x128xf32>
    %cst = arith.constant dense<0.000000e+00> : vector<1024x128xf32>
    %2 = tpu.matmul %0, %1, %cst {dimension_numbers = #tpu.dot_dimension_numbers<[1], [0], [0], [1], [0, 0, 1, 1], [], []>} : vector<1024x9xf32>, vector<9x128xf32>, vector<1024x128xf32> -> vector<1024x128xf32>
    %c0_3 = arith.constant 0 : index
    %c0_4 = arith.constant 0 : index
    %3 = vector.load %arg3[%c0_3, %c0_4] : memref<1x128xf32, #tpu.memory_space<vmem>>, vector<1x128xf32>
    %4 = vector.broadcast %3 : vector<1x128xf32> to vector<1024x128xf32>
    %5 = arith.addf %2, %4 : vector<1024x128xf32>
    %cst_5 = arith.constant 0.000000e+00 : f32
    %6 = vector.broadcast %cst_5 : f32 to vector<1024x128xf32>
    %7 = arith.maximumf %5, %6 : vector<1024x128xf32>
    %c0_6 = arith.constant 0 : index
    %c0_7 = arith.constant 0 : index
    %8 = vector.load %arg4[%c0_6, %c0_7] : memref<1024x128xf32, #tpu.memory_space<vmem>>, vector<1024x128xf32>
    tpu.vector_store %arg4[%c0_6, %c0_7], %7 {strides = array<i32>} : memref<1024x128xf32, #tpu.memory_space<vmem>>, vector<1024x128xf32>,
    return
  }
  func.func @transform_0(%arg0: i32) -> (i32, i32) {
    %c0_i32 = arith.constant 0 : i32
    %c0_i32_0 = arith.constant 0 : i32
    return %arg0, %c0_i32 : i32, i32
  }
  func.func @transform_1(%arg0: i32) -> (i32, i32) {
    %c0_i32 = arith.constant 0 : i32
    %c0_i32_0 = arith.constant 0 : i32
    %c0_i32_1 = arith.constant 0 : i32
    return %c0_i32, %c0_i32_0 : i32, i32
  }
  func.func @transform_2(%arg0: i32) -> (i32, i32) {
    %c0_i32 = arith.constant 0 : i32
    %c0_i32_0 = arith.constant 0 : i32
    %c0_i32_1 = arith.constant 0 : i32
    return %c0_i32, %c0_i32_0 : i32, i32
  }
  func.func @transform_3(%arg0: i32) -> (i32, i32) {
    %c0_i32 = arith.constant 0 : i32
    %c0_i32_0 = arith.constant 0 : i32
    return %arg0, %c0_i32 : i32, i32
  }
}

module attributes {stable_mosaic.version = 11 : i64} {
  func.func @_max_taps_kernel(%arg0: i32, %arg1: memref<46x184xf32, #tpu.memory_space<vmem>>, %arg2: memref<46x184xf32, #tpu.memory_space<vmem>>, %arg3: memref<46x184xf32, #tpu.memory_space<vmem>>, %arg4: memref<46x184xf32, #tpu.memory_space<vmem>>, %arg5: memref<46x184xf32, #tpu.memory_space<vmem>>, %arg6: memref<46x184xf32, #tpu.memory_space<vmem>>, %arg7: memref<46x184xf32, #tpu.memory_space<vmem>>, %arg8: memref<46x184xf32, #tpu.memory_space<vmem>>, %arg9: memref<46x184xf32, #tpu.memory_space<vmem>>, %arg10: memref<46x184xf32, #tpu.memory_space<vmem>>) attributes {dimension_semantics = [#tpu.dimension_semantics<parallel>], iteration_bounds = array<i64: 1>, scalar_prefetch = 0 : i64, scratch_operands = 0 : i64, tpu.core_type = #tpu.core_type<tc>, window_params = [{transform_indices = @transform_0, window_bounds = array<i64: 46, 184>}, {transform_indices = @transform_1, window_bounds = array<i64: 46, 184>}, {transform_indices = @transform_2, window_bounds = array<i64: 46, 184>}, {transform_indices = @transform_3, window_bounds = array<i64: 46, 184>}, {transform_indices = @transform_4, window_bounds = array<i64: 46, 184>}, {transform_indices = @transform_5, window_bounds = array<i64: 46, 184>}, {transform_indices = @transform_6, window_bounds = array<i64: 46, 184>}, {transform_indices = @transform_7, window_bounds = array<i64: 46, 184>}, {transform_indices = @transform_8, window_bounds = array<i64: 46, 184>}, {transform_indices = @transform_9, window_bounds = array<i64: 46, 184>}]} {
    %c0 = arith.constant 0 : index
    %c0_0 = arith.constant 0 : index
    %0 = vector.load %arg1[%c0, %c0_0] : memref<46x184xf32, #tpu.memory_space<vmem>>, vector<46x184xf32>
    %c0_1 = arith.constant 0 : index
    %c0_2 = arith.constant 0 : index
    %1 = vector.load %arg2[%c0_1, %c0_2] : memref<46x184xf32, #tpu.memory_space<vmem>>, vector<46x184xf32>
    %2 = arith.maximumf %0, %1 : vector<46x184xf32>
    %c0_3 = arith.constant 0 : index
    %c0_4 = arith.constant 0 : index
    %3 = vector.load %arg3[%c0_3, %c0_4] : memref<46x184xf32, #tpu.memory_space<vmem>>, vector<46x184xf32>
    %4 = arith.maximumf %2, %3 : vector<46x184xf32>
    %c0_5 = arith.constant 0 : index
    %c0_6 = arith.constant 0 : index
    %5 = vector.load %arg4[%c0_5, %c0_6] : memref<46x184xf32, #tpu.memory_space<vmem>>, vector<46x184xf32>
    %6 = arith.maximumf %4, %5 : vector<46x184xf32>
    %c0_7 = arith.constant 0 : index
    %c0_8 = arith.constant 0 : index
    %7 = vector.load %arg5[%c0_7, %c0_8] : memref<46x184xf32, #tpu.memory_space<vmem>>, vector<46x184xf32>
    %8 = arith.maximumf %6, %7 : vector<46x184xf32>
    %c0_9 = arith.constant 0 : index
    %c0_10 = arith.constant 0 : index
    %9 = vector.load %arg6[%c0_9, %c0_10] : memref<46x184xf32, #tpu.memory_space<vmem>>, vector<46x184xf32>
    %10 = arith.maximumf %8, %9 : vector<46x184xf32>
    %c0_11 = arith.constant 0 : index
    %c0_12 = arith.constant 0 : index
    %11 = vector.load %arg7[%c0_11, %c0_12] : memref<46x184xf32, #tpu.memory_space<vmem>>, vector<46x184xf32>
    %12 = arith.maximumf %10, %11 : vector<46x184xf32>
    %c0_13 = arith.constant 0 : index
    %c0_14 = arith.constant 0 : index
    %13 = vector.load %arg8[%c0_13, %c0_14] : memref<46x184xf32, #tpu.memory_space<vmem>>, vector<46x184xf32>
    %14 = arith.maximumf %12, %13 : vector<46x184xf32>
    %c0_15 = arith.constant 0 : index
    %c0_16 = arith.constant 0 : index
    %15 = vector.load %arg9[%c0_15, %c0_16] : memref<46x184xf32, #tpu.memory_space<vmem>>, vector<46x184xf32>
    %16 = arith.maximumf %14, %15 : vector<46x184xf32>
    %c0_17 = arith.constant 0 : index
    %c0_18 = arith.constant 0 : index
    %17 = vector.load %arg10[%c0_17, %c0_18] : memref<46x184xf32, #tpu.memory_space<vmem>>, vector<46x184xf32>
    tpu.vector_store %arg10[%c0_17, %c0_18], %16 {strides = array<i32>} : memref<46x184xf32, #tpu.memory_space<vmem>>, vector<46x184xf32>,
    return
  }
  func.func @transform_0(%arg0: i32) -> (i32, i32) {
    %c0_i32 = arith.constant 0 : i32
    %c0_i32_0 = arith.constant 0 : i32
    return %arg0, %c0_i32 : i32, i32
  }
  func.func @transform_1(%arg0: i32) -> (i32, i32) {
    %c0_i32 = arith.constant 0 : i32
    %c0_i32_0 = arith.constant 0 : i32
    return %arg0, %c0_i32 : i32, i32
  }
  func.func @transform_2(%arg0: i32) -> (i32, i32) {
    %c0_i32 = arith.constant 0 : i32
    %c0_i32_0 = arith.constant 0 : i32
    return %arg0, %c0_i32 : i32, i32
  }
  func.func @transform_3(%arg0: i32) -> (i32, i32) {
    %c0_i32 = arith.constant 0 : i32
    %c0_i32_0 = arith.constant 0 : i32
    return %arg0, %c0_i32 : i32, i32
  }
  func.func @transform_4(%arg0: i32) -> (i32, i32) {
    %c0_i32 = arith.constant 0 : i32
    %c0_i32_0 = arith.constant 0 : i32
    return %arg0, %c0_i32 : i32, i32
  }
  func.func @transform_5(%arg0: i32) -> (i32, i32) {
    %c0_i32 = arith.constant 0 : i32
    %c0_i32_0 = arith.constant 0 : i32
    return %arg0, %c0_i32 : i32, i32
  }
  func.func @transform_6(%arg0: i32) -> (i32, i32) {
    %c0_i32 = arith.constant 0 : i32
    %c0_i32_0 = arith.constant 0 : i32
    return %arg0, %c0_i32 : i32, i32
  }
  func.func @transform_7(%arg0: i32) -> (i32, i32) {
    %c0_i32 = arith.constant 0 : i32
    %c0_i32_0 = arith.constant 0 : i32
    return %arg0, %c0_i32 : i32, i32
  }
  func.func @transform_8(%arg0: i32) -> (i32, i32) {
    %c0_i32 = arith.constant 0 : i32
    %c0_i32_0 = arith.constant 0 : i32
    return %arg0, %c0_i32 : i32, i32
  }
  func.func @transform_9(%arg0: i32) -> (i32, i32) {
    %c0_i32 = arith.constant 0 : i32
    %c0_i32_0 = arith.constant 0 : i32
    return %arg0, %c0_i32 : i32, i32
  }
}

module attributes {stable_mosaic.version = 11 : i64} {
  func.func @_matmul_bias_relu_kernel(%arg0: i32, %arg1: memref<128x72xf32, #tpu.memory_space<vmem>>, %arg2: memref<72x128xf32, #tpu.memory_space<vmem>>, %arg3: memref<1x128xf32, #tpu.memory_space<vmem>>, %arg4: memref<128x128xf32, #tpu.memory_space<vmem>>) attributes {dimension_semantics = [#tpu.dimension_semantics<parallel>], iteration_bounds = array<i64: 2>, scalar_prefetch = 0 : i64, scratch_operands = 0 : i64, tpu.core_type = #tpu.core_type<tc>, window_params = [{transform_indices = @transform_0, window_bounds = array<i64: 128, 72>}, {pipeline_mode = #tpu.pipeline_mode<synchronous>, transform_indices = @transform_1, window_bounds = array<i64: 72, 128>}, {pipeline_mode = #tpu.pipeline_mode<synchronous>, transform_indices = @transform_2, window_bounds = array<i64: 1, 128>}, {transform_indices = @transform_3, window_bounds = array<i64: 128, 128>}]} {
    %c0 = arith.constant 0 : index
    %c0_0 = arith.constant 0 : index
    %0 = vector.load %arg1[%c0, %c0_0] : memref<128x72xf32, #tpu.memory_space<vmem>>, vector<128x72xf32>
    %c0_1 = arith.constant 0 : index
    %c0_2 = arith.constant 0 : index
    %1 = vector.load %arg2[%c0_1, %c0_2] : memref<72x128xf32, #tpu.memory_space<vmem>>, vector<72x128xf32>
    %cst = arith.constant dense<0.000000e+00> : vector<128x128xf32>
    %2 = tpu.matmul %0, %1, %cst {dimension_numbers = #tpu.dot_dimension_numbers<[1], [0], [0], [1], [0, 0, 1, 1], [], []>} : vector<128x72xf32>, vector<72x128xf32>, vector<128x128xf32> -> vector<128x128xf32>
    %c0_3 = arith.constant 0 : index
    %c0_4 = arith.constant 0 : index
    %3 = vector.load %arg3[%c0_3, %c0_4] : memref<1x128xf32, #tpu.memory_space<vmem>>, vector<1x128xf32>
    %4 = vector.broadcast %3 : vector<1x128xf32> to vector<128x128xf32>
    %5 = arith.addf %2, %4 : vector<128x128xf32>
    %cst_5 = arith.constant 0.000000e+00 : f32
    %6 = vector.broadcast %cst_5 : f32 to vector<128x128xf32>
    %7 = arith.maximumf %5, %6 : vector<128x128xf32>
    %c0_6 = arith.constant 0 : index
    %c0_7 = arith.constant 0 : index
    %8 = vector.load %arg4[%c0_6, %c0_7] : memref<128x128xf32, #tpu.memory_space<vmem>>, vector<128x128xf32>
    tpu.vector_store %arg4[%c0_6, %c0_7], %7 {strides = array<i32>} : memref<128x128xf32, #tpu.memory_space<vmem>>, vector<128x128xf32>,
    return
  }
  func.func @transform_0(%arg0: i32) -> (i32, i32) {
    %c0_i32 = arith.constant 0 : i32
    %c0_i32_0 = arith.constant 0 : i32
    return %arg0, %c0_i32 : i32, i32
  }
  func.func @transform_1(%arg0: i32) -> (i32, i32) {
    %c0_i32 = arith.constant 0 : i32
    %c0_i32_0 = arith.constant 0 : i32
    %c0_i32_1 = arith.constant 0 : i32
    return %c0_i32, %c0_i32_0 : i32, i32
  }
  func.func @transform_2(%arg0: i32) -> (i32, i32) {
    %c0_i32 = arith.constant 0 : i32
    %c0_i32_0 = arith.constant 0 : i32
    %c0_i32_1 = arith.constant 0 : i32
    return %c0_i32, %c0_i32_0 : i32, i32
  }
  func.func @transform_3(%arg0: i32) -> (i32, i32) {
    %c0_i32 = arith.constant 0 : i32
    %c0_i32_0 = arith.constant 0 : i32
    return %arg0, %c0_i32 : i32, i32
  }
}

module attributes {stable_mosaic.version = 11 : i64} {
  func.func @_max_taps_kernel(%arg0: i32, %arg1: memref<10x80xf32, #tpu.memory_space<vmem>>, %arg2: memref<10x80xf32, #tpu.memory_space<vmem>>, %arg3: memref<10x80xf32, #tpu.memory_space<vmem>>, %arg4: memref<10x80xf32, #tpu.memory_space<vmem>>, %arg5: memref<10x80xf32, #tpu.memory_space<vmem>>, %arg6: memref<10x80xf32, #tpu.memory_space<vmem>>, %arg7: memref<10x80xf32, #tpu.memory_space<vmem>>, %arg8: memref<10x80xf32, #tpu.memory_space<vmem>>, %arg9: memref<10x80xf32, #tpu.memory_space<vmem>>, %arg10: memref<10x80xf32, #tpu.memory_space<vmem>>) attributes {dimension_semantics = [#tpu.dimension_semantics<parallel>], iteration_bounds = array<i64: 1>, scalar_prefetch = 0 : i64, scratch_operands = 0 : i64, tpu.core_type = #tpu.core_type<tc>, window_params = [{transform_indices = @transform_0, window_bounds = array<i64: 10, 80>}, {transform_indices = @transform_1, window_bounds = array<i64: 10, 80>}, {transform_indices = @transform_2, window_bounds = array<i64: 10, 80>}, {transform_indices = @transform_3, window_bounds = array<i64: 10, 80>}, {transform_indices = @transform_4, window_bounds = array<i64: 10, 80>}, {transform_indices = @transform_5, window_bounds = array<i64: 10, 80>}, {transform_indices = @transform_6, window_bounds = array<i64: 10, 80>}, {transform_indices = @transform_7, window_bounds = array<i64: 10, 80>}, {transform_indices = @transform_8, window_bounds = array<i64: 10, 80>}, {transform_indices = @transform_9, window_bounds = array<i64: 10, 80>}]} {
    %c0 = arith.constant 0 : index
    %c0_0 = arith.constant 0 : index
    %0 = vector.load %arg1[%c0, %c0_0] : memref<10x80xf32, #tpu.memory_space<vmem>>, vector<10x80xf32>
    %c0_1 = arith.constant 0 : index
    %c0_2 = arith.constant 0 : index
    %1 = vector.load %arg2[%c0_1, %c0_2] : memref<10x80xf32, #tpu.memory_space<vmem>>, vector<10x80xf32>
    %2 = arith.maximumf %0, %1 : vector<10x80xf32>
    %c0_3 = arith.constant 0 : index
    %c0_4 = arith.constant 0 : index
    %3 = vector.load %arg3[%c0_3, %c0_4] : memref<10x80xf32, #tpu.memory_space<vmem>>, vector<10x80xf32>
    %4 = arith.maximumf %2, %3 : vector<10x80xf32>
    %c0_5 = arith.constant 0 : index
    %c0_6 = arith.constant 0 : index
    %5 = vector.load %arg4[%c0_5, %c0_6] : memref<10x80xf32, #tpu.memory_space<vmem>>, vector<10x80xf32>
    %6 = arith.maximumf %4, %5 : vector<10x80xf32>
    %c0_7 = arith.constant 0 : index
    %c0_8 = arith.constant 0 : index
    %7 = vector.load %arg5[%c0_7, %c0_8] : memref<10x80xf32, #tpu.memory_space<vmem>>, vector<10x80xf32>
    %8 = arith.maximumf %6, %7 : vector<10x80xf32>
    %c0_9 = arith.constant 0 : index
    %c0_10 = arith.constant 0 : index
    %9 = vector.load %arg6[%c0_9, %c0_10] : memref<10x80xf32, #tpu.memory_space<vmem>>, vector<10x80xf32>
    %10 = arith.maximumf %8, %9 : vector<10x80xf32>
    %c0_11 = arith.constant 0 : index
    %c0_12 = arith.constant 0 : index
    %11 = vector.load %arg7[%c0_11, %c0_12] : memref<10x80xf32, #tpu.memory_space<vmem>>, vector<10x80xf32>
    %12 = arith.maximumf %10, %11 : vector<10x80xf32>
    %c0_13 = arith.constant 0 : index
    %c0_14 = arith.constant 0 : index
    %13 = vector.load %arg8[%c0_13, %c0_14] : memref<10x80xf32, #tpu.memory_space<vmem>>, vector<10x80xf32>
    %14 = arith.maximumf %12, %13 : vector<10x80xf32>
    %c0_15 = arith.constant 0 : index
    %c0_16 = arith.constant 0 : index
    %15 = vector.load %arg9[%c0_15, %c0_16] : memref<10x80xf32, #tpu.memory_space<vmem>>, vector<10x80xf32>
    %16 = arith.maximumf %14, %15 : vector<10x80xf32>
    %c0_17 = arith.constant 0 : index
    %c0_18 = arith.constant 0 : index
    %17 = vector.load %arg10[%c0_17, %c0_18] : memref<10x80xf32, #tpu.memory_space<vmem>>, vector<10x80xf32>
    tpu.vector_store %arg10[%c0_17, %c0_18], %16 {strides = array<i32>} : memref<10x80xf32, #tpu.memory_space<vmem>>, vector<10x80xf32>,
    return
  }
  func.func @transform_0(%arg0: i32) -> (i32, i32) {
    %c0_i32 = arith.constant 0 : i32
    %c0_i32_0 = arith.constant 0 : i32
    return %arg0, %c0_i32 : i32, i32
  }
  func.func @transform_1(%arg0: i32) -> (i32, i32) {
    %c0_i32 = arith.constant 0 : i32
    %c0_i32_0 = arith.constant 0 : i32
    return %arg0, %c0_i32 : i32, i32
  }
  func.func @transform_2(%arg0: i32) -> (i32, i32) {
    %c0_i32 = arith.constant 0 : i32
    %c0_i32_0 = arith.constant 0 : i32
    return %arg0, %c0_i32 : i32, i32
  }
  func.func @transform_3(%arg0: i32) -> (i32, i32) {
    %c0_i32 = arith.constant 0 : i32
    %c0_i32_0 = arith.constant 0 : i32
    return %arg0, %c0_i32 : i32, i32
  }
  func.func @transform_4(%arg0: i32) -> (i32, i32) {
    %c0_i32 = arith.constant 0 : i32
    %c0_i32_0 = arith.constant 0 : i32
    return %arg0, %c0_i32 : i32, i32
  }
  func.func @transform_5(%arg0: i32) -> (i32, i32) {
    %c0_i32 = arith.constant 0 : i32
    %c0_i32_0 = arith.constant 0 : i32
    return %arg0, %c0_i32 : i32, i32
  }
  func.func @transform_6(%arg0: i32) -> (i32, i32) {
    %c0_i32 = arith.constant 0 : i32
    %c0_i32_0 = arith.constant 0 : i32
    return %arg0, %c0_i32 : i32, i32
  }
  func.func @transform_7(%arg0: i32) -> (i32, i32) {
    %c0_i32 = arith.constant 0 : i32
    %c0_i32_0 = arith.constant 0 : i32
    return %arg0, %c0_i32 : i32, i32
  }
  func.func @transform_8(%arg0: i32) -> (i32, i32) {
    %c0_i32 = arith.constant 0 : i32
    %c0_i32_0 = arith.constant 0 : i32
    return %arg0, %c0_i32 : i32, i32
  }
  func.func @transform_9(%arg0: i32) -> (i32, i32) {
    %c0_i32 = arith.constant 0 : i32
    %c0_i32_0 = arith.constant 0 : i32
    return %arg0, %c0_i32 : i32, i32
  }
}

module attributes {stable_mosaic.version = 11 : i64} {
  func.func @_max_taps_kernel(%arg0: i32, %arg1: memref<2x16xf32, #tpu.memory_space<vmem>>, %arg2: memref<2x16xf32, #tpu.memory_space<vmem>>, %arg3: memref<2x16xf32, #tpu.memory_space<vmem>>, %arg4: memref<2x16xf32, #tpu.memory_space<vmem>>, %arg5: memref<2x16xf32, #tpu.memory_space<vmem>>, %arg6: memref<2x16xf32, #tpu.memory_space<vmem>>, %arg7: memref<2x16xf32, #tpu.memory_space<vmem>>, %arg8: memref<2x16xf32, #tpu.memory_space<vmem>>, %arg9: memref<2x16xf32, #tpu.memory_space<vmem>>, %arg10: memref<2x16xf32, #tpu.memory_space<vmem>>, %arg11: memref<2x16xf32, #tpu.memory_space<vmem>>, %arg12: memref<2x16xf32, #tpu.memory_space<vmem>>, %arg13: memref<2x16xf32, #tpu.memory_space<vmem>>, %arg14: memref<2x16xf32, #tpu.memory_space<vmem>>, %arg15: memref<2x16xf32, #tpu.memory_space<vmem>>, %arg16: memref<2x16xf32, #tpu.memory_space<vmem>>, %arg17: memref<2x16xf32, #tpu.memory_space<vmem>>, %arg18: memref<2x16xf32, #tpu.memory_space<vmem>>, %arg19: memref<2x16xf32, #tpu.memory_space<vmem>>, %arg20: memref<2x16xf32, #tpu.memory_space<vmem>>, %arg21: memref<2x16xf32, #tpu.memory_space<vmem>>, %arg22: memref<2x16xf32, #tpu.memory_space<vmem>>, %arg23: memref<2x16xf32, #tpu.memory_space<vmem>>, %arg24: memref<2x16xf32, #tpu.memory_space<vmem>>, %arg25: memref<2x16xf32, #tpu.memory_space<vmem>>, %arg26: memref<2x16xf32, #tpu.memory_space<vmem>>) attributes {dimension_semantics = [#tpu.dimension_semantics<parallel>], iteration_bounds = array<i64: 1>, scalar_prefetch = 0 : i64, scratch_operands = 0 : i64, tpu.core_type = #tpu.core_type<tc>, window_params = [{transform_indices = @transform_0, window_bounds = array<i64: 2, 16>}, {transform_indices = @transform_1, window_bounds = array<i64: 2, 16>}, {transform_indices = @transform_2, window_bounds = array<i64: 2, 16>}, {transform_indices = @transform_3, window_bounds = array<i64: 2, 16>}, {transform_indices = @transform_4, window_bounds = array<i64: 2, 16>}, {transform_indices = @transform_5, window_bounds = array<i64: 2, 16>}, {transform_indices = @transform_6, window_bounds = array<i64: 2, 16>}, {transform_indices = @transform_7, window_bounds = array<i64: 2, 16>}, {transform_indices = @transform_8, window_bounds = array<i64: 2, 16>}, {transform_indices = @transform_9, window_bounds = array<i64: 2, 16>}, {transform_indices = @transform_10, window_bounds = array<i64: 2, 16>}, {transform_indices = @transform_11, window_bounds = array<i64: 2, 16>}, {transform_indices = @transform_12, window_bounds = array<i64: 2, 16>}, {transform_indices = @transform_13, window_bounds = array<i64: 2, 16>}, {transform_indices = @transform_14, window_bounds = array<i64: 2, 16>}, {transform_indices = @transform_15, window_bounds = array<i64: 2, 16>}, {transform_indices = @transform_16, window_bounds = array<i64: 2, 16>}, {transform_indices = @transform_17, window_bounds = array<i64: 2, 16>}, {transform_indices = @transform_18, window_bounds = array<i64: 2, 16>}, {transform_indices = @transform_19, window_bounds = array<i64: 2, 16>}, {transform_indices = @transform_20, window_bounds = array<i64: 2, 16>}, {transform_indices = @transform_21, window_bounds = array<i64: 2, 16>}, {transform_indices = @transform_22, window_bounds = array<i64: 2, 16>}, {transform_indices = @transform_23, window_bounds = array<i64: 2, 16>}, {transform_indices = @transform_24, window_bounds = array<i64: 2, 16>}, {transform_indices = @transform_25, window_bounds = array<i64: 2, 16>}]} {
    %c0 = arith.constant 0 : index
    %c0_0 = arith.constant 0 : index
    %0 = vector.load %arg1[%c0, %c0_0] : memref<2x16xf32, #tpu.memory_space<vmem>>, vector<2x16xf32>
    %c0_1 = arith.constant 0 : index
    %c0_2 = arith.constant 0 : index
    %1 = vector.load %arg2[%c0_1, %c0_2] : memref<2x16xf32, #tpu.memory_space<vmem>>, vector<2x16xf32>
    %2 = arith.maximumf %0, %1 : vector<2x16xf32>
    %c0_3 = arith.constant 0 : index
    %c0_4 = arith.constant 0 : index
    %3 = vector.load %arg3[%c0_3, %c0_4] : memref<2x16xf32, #tpu.memory_space<vmem>>, vector<2x16xf32>
    %4 = arith.maximumf %2, %3 : vector<2x16xf32>
    %c0_5 = arith.constant 0 : index
    %c0_6 = arith.constant 0 : index
    %5 = vector.load %arg4[%c0_5, %c0_6] : memref<2x16xf32, #tpu.memory_space<vmem>>, vector<2x16xf32>
    %6 = arith.maximumf %4, %5 : vector<2x16xf32>
    %c0_7 = arith.constant 0 : index
    %c0_8 = arith.constant 0 : index
    %7 = vector.load %arg5[%c0_7, %c0_8] : memref<2x16xf32, #tpu.memory_space<vmem>>, vector<2x16xf32>
    %8 = arith.maximumf %6, %7 : vector<2x16xf32>
    %c0_9 = arith.constant 0 : index
    %c0_10 = arith.constant 0 : index
    %9 = vector.load %arg6[%c0_9, %c0_10] : memref<2x16xf32, #tpu.memory_space<vmem>>, vector<2x16xf32>
    %10 = arith.maximumf %8, %9 : vector<2x16xf32>
    %c0_11 = arith.constant 0 : index
    %c0_12 = arith.constant 0 : index
    %11 = vector.load %arg7[%c0_11, %c0_12] : memref<2x16xf32, #tpu.memory_space<vmem>>, vector<2x16xf32>
    %12 = arith.maximumf %10, %11 : vector<2x16xf32>
    %c0_13 = arith.constant 0 : index
    %c0_14 = arith.constant 0 : index
    %13 = vector.load %arg8[%c0_13, %c0_14] : memref<2x16xf32, #tpu.memory_space<vmem>>, vector<2x16xf32>
    %14 = arith.maximumf %12, %13 : vector<2x16xf32>
    %c0_15 = arith.constant 0 : index
    %c0_16 = arith.constant 0 : index
    %15 = vector.load %arg9[%c0_15, %c0_16] : memref<2x16xf32, #tpu.memory_space<vmem>>, vector<2x16xf32>
    %16 = arith.maximumf %14, %15 : vector<2x16xf32>
    %c0_17 = arith.constant 0 : index
    %c0_18 = arith.constant 0 : index
    %17 = vector.load %arg10[%c0_17, %c0_18] : memref<2x16xf32, #tpu.memory_space<vmem>>, vector<2x16xf32>
    %18 = arith.maximumf %16, %17 : vector<2x16xf32>
    %c0_19 = arith.constant 0 : index
    %c0_20 = arith.constant 0 : index
    %19 = vector.load %arg11[%c0_19, %c0_20] : memref<2x16xf32, #tpu.memory_space<vmem>>, vector<2x16xf32>
    %20 = arith.maximumf %18, %19 : vector<2x16xf32>
    %c0_21 = arith.constant 0 : index
    %c0_22 = arith.constant 0 : index
    %21 = vector.load %arg12[%c0_21, %c0_22] : memref<2x16xf32, #tpu.memory_space<vmem>>, vector<2x16xf32>
    %22 = arith.maximumf %20, %21 : vector<2x16xf32>
    %c0_23 = arith.constant 0 : index
    %c0_24 = arith.constant 0 : index
    %23 = vector.load %arg13[%c0_23, %c0_24] : memref<2x16xf32, #tpu.memory_space<vmem>>, vector<2x16xf32>
    %24 = arith.maximumf %22, %23 : vector<2x16xf32>
    %c0_25 = arith.constant 0 : index
    %c0_26 = arith.constant 0 : index
    %25 = vector.load %arg14[%c0_25, %c0_26] : memref<2x16xf32, #tpu.memory_space<vmem>>, vector<2x16xf32>
    %26 = arith.maximumf %24, %25 : vector<2x16xf32>
    %c0_27 = arith.constant 0 : index
    %c0_28 = arith.constant 0 : index
    %27 = vector.load %arg15[%c0_27, %c0_28] : memref<2x16xf32, #tpu.memory_space<vmem>>, vector<2x16xf32>
    %28 = arith.maximumf %26, %27 : vector<2x16xf32>
    %c0_29 = arith.constant 0 : index
    %c0_30 = arith.constant 0 : index
    %29 = vector.load %arg16[%c0_29, %c0_30] : memref<2x16xf32, #tpu.memory_space<vmem>>, vector<2x16xf32>
    %30 = arith.maximumf %28, %29 : vector<2x16xf32>
    %c0_31 = arith.constant 0 : index
    %c0_32 = arith.constant 0 : index
    %31 = vector.load %arg17[%c0_31, %c0_32] : memref<2x16xf32, #tpu.memory_space<vmem>>, vector<2x16xf32>
    %32 = arith.maximumf %30, %31 : vector<2x16xf32>
    %c0_33 = arith.constant 0 : index
    %c0_34 = arith.constant 0 : index
    %33 = vector.load %arg18[%c0_33, %c0_34] : memref<2x16xf32, #tpu.memory_space<vmem>>, vector<2x16xf32>
    %34 = arith.maximumf %32, %33 : vector<2x16xf32>
    %c0_35 = arith.constant 0 : index
    %c0_36 = arith.constant 0 : index
    %35 = vector.load %arg19[%c0_35, %c0_36] : memref<2x16xf32, #tpu.memory_space<vmem>>, vector<2x16xf32>
    %36 = arith.maximumf %34, %35 : vector<2x16xf32>
    %c0_37 = arith.constant 0 : index
    %c0_38 = arith.constant 0 : index
    %37 = vector.load %arg20[%c0_37, %c0_38] : memref<2x16xf32, #tpu.memory_space<vmem>>, vector<2x16xf32>
    %38 = arith.maximumf %36, %37 : vector<2x16xf32>
    %c0_39 = arith.constant 0 : index
    %c0_40 = arith.constant 0 : index
    %39 = vector.load %arg21[%c0_39, %c0_40] : memref<2x16xf32, #tpu.memory_space<vmem>>, vector<2x16xf32>
    %40 = arith.maximumf %38, %39 : vector<2x16xf32>
    %c0_41 = arith.constant 0 : index
    %c0_42 = arith.constant 0 : index
    %41 = vector.load %arg22[%c0_41, %c0_42] : memref<2x16xf32, #tpu.memory_space<vmem>>, vector<2x16xf32>
    %42 = arith.maximumf %40, %41 : vector<2x16xf32>
    %c0_43 = arith.constant 0 : index
    %c0_44 = arith.constant 0 : index
    %43 = vector.load %arg23[%c0_43, %c0_44] : memref<2x16xf32, #tpu.memory_space<vmem>>, vector<2x16xf32>
    %44 = arith.maximumf %42, %43 : vector<2x16xf32>
    %c0_45 = arith.constant 0 : index
    %c0_46 = arith.constant 0 : index
    %45 = vector.load %arg24[%c0_45, %c0_46] : memref<2x16xf32, #tpu.memory_space<vmem>>, vector<2x16xf32>
    %46 = arith.maximumf %44, %45 : vector<2x16xf32>
    %c0_47 = arith.constant 0 : index
    %c0_48 = arith.constant 0 : index
    %47 = vector.load %arg25[%c0_47, %c0_48] : memref<2x16xf32, #tpu.memory_space<vmem>>, vector<2x16xf32>
    %48 = arith.maximumf %46, %47 : vector<2x16xf32>
    %c0_49 = arith.constant 0 : index
    %c0_50 = arith.constant 0 : index
    %49 = vector.load %arg26[%c0_49, %c0_50] : memref<2x16xf32, #tpu.memory_space<vmem>>, vector<2x16xf32>
    tpu.vector_store %arg26[%c0_49, %c0_50], %48 {strides = array<i32>} : memref<2x16xf32, #tpu.memory_space<vmem>>, vector<2x16xf32>,
    return
  }
  func.func @transform_0(%arg0: i32) -> (i32, i32) {
    %c0_i32 = arith.constant 0 : i32
    %c0_i32_0 = arith.constant 0 : i32
    return %arg0, %c0_i32 : i32, i32
  }
  func.func @transform_1(%arg0: i32) -> (i32, i32) {
    %c0_i32 = arith.constant 0 : i32
    %c0_i32_0 = arith.constant 0 : i32
    return %arg0, %c0_i32 : i32, i32
  }
  func.func @transform_2(%arg0: i32) -> (i32, i32) {
    %c0_i32 = arith.constant 0 : i32
    %c0_i32_0 = arith.constant 0 : i32
    return %arg0, %c0_i32 : i32, i32
  }
  func.func @transform_3(%arg0: i32) -> (i32, i32) {
    %c0_i32 = arith.constant 0 : i32
    %c0_i32_0 = arith.constant 0 : i32
    return %arg0, %c0_i32 : i32, i32
  }
  func.func @transform_4(%arg0: i32) -> (i32, i32) {
    %c0_i32 = arith.constant 0 : i32
    %c0_i32_0 = arith.constant 0 : i32
    return %arg0, %c0_i32 : i32, i32
  }
  func.func @transform_5(%arg0: i32) -> (i32, i32) {
    %c0_i32 = arith.constant 0 : i32
    %c0_i32_0 = arith.constant 0 : i32
    return %arg0, %c0_i32 : i32, i32
  }
  func.func @transform_6(%arg0: i32) -> (i32, i32) {
    %c0_i32 = arith.constant 0 : i32
    %c0_i32_0 = arith.constant 0 : i32
    return %arg0, %c0_i32 : i32, i32
  }
  func.func @transform_7(%arg0: i32) -> (i32, i32) {
    %c0_i32 = arith.constant 0 : i32
    %c0_i32_0 = arith.constant 0 : i32
    return %arg0, %c0_i32 : i32, i32
  }
  func.func @transform_8(%arg0: i32) -> (i32, i32) {
    %c0_i32 = arith.constant 0 : i32
    %c0_i32_0 = arith.constant 0 : i32
    return %arg0, %c0_i32 : i32, i32
  }
  func.func @transform_9(%arg0: i32) -> (i32, i32) {
    %c0_i32 = arith.constant 0 : i32
    %c0_i32_0 = arith.constant 0 : i32
    return %arg0, %c0_i32 : i32, i32
  }
  func.func @transform_10(%arg0: i32) -> (i32, i32) {
    %c0_i32 = arith.constant 0 : i32
    %c0_i32_0 = arith.constant 0 : i32
    return %arg0, %c0_i32 : i32, i32
  }
  func.func @transform_11(%arg0: i32) -> (i32, i32) {
    %c0_i32 = arith.constant 0 : i32
    %c0_i32_0 = arith.constant 0 : i32
    return %arg0, %c0_i32 : i32, i32
  }
  func.func @transform_12(%arg0: i32) -> (i32, i32) {
    %c0_i32 = arith.constant 0 : i32
    %c0_i32_0 = arith.constant 0 : i32
    return %arg0, %c0_i32 : i32, i32
  }
  func.func @transform_13(%arg0: i32) -> (i32, i32) {
    %c0_i32 = arith.constant 0 : i32
    %c0_i32_0 = arith.constant 0 : i32
    return %arg0, %c0_i32 : i32, i32
  }
  func.func @transform_14(%arg0: i32) -> (i32, i32) {
    %c0_i32 = arith.constant 0 : i32
    %c0_i32_0 = arith.constant 0 : i32
    return %arg0, %c0_i32 : i32, i32
  }
  func.func @transform_15(%arg0: i32) -> (i32, i32) {
    %c0_i32 = arith.constant 0 : i32
    %c0_i32_0 = arith.constant 0 : i32
    return %arg0, %c0_i32 : i32, i32
  }
  func.func @transform_16(%arg0: i32) -> (i32, i32) {
    %c0_i32 = arith.constant 0 : i32
    %c0_i32_0 = arith.constant 0 : i32
    return %arg0, %c0_i32 : i32, i32
  }
  func.func @transform_17(%arg0: i32) -> (i32, i32) {
    %c0_i32 = arith.constant 0 : i32
    %c0_i32_0 = arith.constant 0 : i32
    return %arg0, %c0_i32 : i32, i32
  }
  func.func @transform_18(%arg0: i32) -> (i32, i32) {
    %c0_i32 = arith.constant 0 : i32
    %c0_i32_0 = arith.constant 0 : i32
    return %arg0, %c0_i32 : i32, i32
  }
  func.func @transform_19(%arg0: i32) -> (i32, i32) {
    %c0_i32 = arith.constant 0 : i32
    %c0_i32_0 = arith.constant 0 : i32
    return %arg0, %c0_i32 : i32, i32
  }
  func.func @transform_20(%arg0: i32) -> (i32, i32) {
    %c0_i32 = arith.constant 0 : i32
    %c0_i32_0 = arith.constant 0 : i32
    return %arg0, %c0_i32 : i32, i32
  }
  func.func @transform_21(%arg0: i32) -> (i32, i32) {
    %c0_i32 = arith.constant 0 : i32
    %c0_i32_0 = arith.constant 0 : i32
    return %arg0, %c0_i32 : i32, i32
  }
  func.func @transform_22(%arg0: i32) -> (i32, i32) {
    %c0_i32 = arith.constant 0 : i32
    %c0_i32_0 = arith.constant 0 : i32
    return %arg0, %c0_i32 : i32, i32
  }
  func.func @transform_23(%arg0: i32) -> (i32, i32) {
    %c0_i32 = arith.constant 0 : i32
    %c0_i32_0 = arith.constant 0 : i32
    return %arg0, %c0_i32 : i32, i32
  }
  func.func @transform_24(%arg0: i32) -> (i32, i32) {
    %c0_i32 = arith.constant 0 : i32
    %c0_i32_0 = arith.constant 0 : i32
    return %arg0, %c0_i32 : i32, i32
  }
  func.func @transform_25(%arg0: i32) -> (i32, i32) {
    %c0_i32 = arith.constant 0 : i32
    %c0_i32_0 = arith.constant 0 : i32
    return %arg0, %c0_i32 : i32, i32
  }
}

</mosaic_0001>

<llo_original>
// kernel: cnn_forward.5
$region0: #{cnn_forward.5}
  #allocation0 [shape = 'u32[]', space=smem, size = 0x4, offset = 0x4, fixed_abs, tag = 'smem constant byte address 0x4 - core index']
  #allocation1 [shape = 'u32[144,128]{1,0:T(1,128)}', space=vmem, size = 0x12000, scoped, tag = 'internal scratch']
  %s0 = inlined_call_operand.vmem [shape: f32[4418,9], index: 0, kind: input, shape index: {}]
  %s1 = inlined_call_operand.vmem [shape: f32[9,128], index: 1, kind: input, shape index: {}]
  %s2 = inlined_call_operand.vmem [shape: f32[1,128], index: 2, kind: input, shape index: {}]
  %s3 = inlined_call_operand.vmem [shape: f32[4418,128], index: 3, kind: output, shape index: {}]
  %s4 = sld [smem:[#allocation0]]
  $region93: #{cnn_forward.5} parent=0
    _
  %s6 = ssub.s32 1, %s4
  %s7 = scalar_select 0, %s6, %s4
  $region1: #{cnn_forward.5} parent=0
    #allocation2 [shape = 'u8[1048576]{0}', space=vmem, size = 0x100000, scoped, tag = 'output window, operand 0']
    loop: start=0, step=1, limit=7
    $region2: #{cnn_forward.5} parent=1 // loop_pre_header
      _
    $region3: #{cnn_forward.5} parent=1 // loop_header
      %s9 = sphi 0, %s13
      %p10 = scmp.ge.s32.totalorder %s9, 7
      %s19 = sphi 0, %s21
      %s22 = sphi 0, %s19
      %s23 = sphi 0, %s22
      %s39 = sphi 0, %s23
      %s43 = sphi 0, %s43
      %s45 = sphi 0, %s43
      %s46 = sphi 0, %s45
      %s60 = sphi 0, %s46
      %s64 = sphi 0, %s64
      %s66 = sphi 0, %s64
      %s67 = sphi 0, %s66
      %s81 = sphi 0, %s67
      %s87 = sphi 0, %s89
      %s90 = sphi 0, %s87
      %s91 = sphi 0, %s90
      %s107 = sphi 0, %s91
    $region4: #{cnn_forward.5} parent=1 // loop_header_branch
      %12 = sbr.rel (%p10) target = $region8
    $region5: #{cnn_forward.5} parent=1 // loop_body
      %s14 = ssub.s32 %s9, 1
      %s15 = ssub.s32 %s9, 2
      %s16 = sadd.s32 %s9, 1
      %s17 = ssub.s32 %s9, %s16
      %p18 = scmp.eq.s32.totalorder %s17, 0
      %s20 = sadd.s32 %s19, 1
      %s21 = scalar_select %p18, %s19, %s20
      %p24 = pneg %p18
      %p25 = scmp.eq.s32.totalorder %s9, 4
      %p26 = por %p24, %p25
      %p27 = scmp.ne.s32.totalorder %s19, %s22
      %p28 = scmp.eq.s32.totalorder %s9, 0
      %p29 = por %p27, %p28
      %p30 = scmp.ne.s32.totalorder %s19, %s22
      %p31 = scmp.eq.s32.totalorder %s14, 4
      %p32 = por %p30, %p31
      %p33 = scmp.ne.s32.totalorder %s22, %s23
      %p34 = scmp.eq.s32.totalorder %s14, 0
      %p35 = por %p33, %p34
      %p36 = scmp.ne.s32.totalorder %s22, %s23
      %p37 = scmp.eq.s32.totalorder %s15, 4
      %p38 = por %p36, %p37
      %p40 = scmp.ne.s32.totalorder %s23, %s39
      %p41 = scmp.eq.s32.totalorder %s15, 0
      %p42 = por %p40, %p41
      %s44 = sadd.s32 %s43, 1
      %p47 = scmp.eq.s32.totalorder %s9, 4
      %p48 = scmp.ne.s32.totalorder %s43, %s45
      %p49 = scmp.eq.s32.totalorder %s9, 0
      %p50 = por %p48, %p49
      %p51 = scmp.ne.s32.totalorder %s43, %s45
      %p52 = scmp.eq.s32.totalorder %s14, 4
      %p53 = por %p51, %p52
      %p54 = scmp.ne.s32.totalorder %s45, %s46
      %p55 = scmp.eq.s32.totalorder %s14, 0
      %p56 = por %p54, %p55
      %p57 = scmp.ne.s32.totalorder %s45, %s46
      %p58 = scmp.eq.s32.totalorder %s15, 4
      %p59 = por %p57, %p58
      %p61 = scmp.ne.s32.totalorder %s46, %s60
      %p62 = scmp.eq.s32.totalorder %s15, 0
      %p63 = por %p61, %p62
      %s65 = sadd.s32 %s64, 1
      %p68 = scmp.eq.s32.totalorder %s9, 4
      %p69 = scmp.ne.s32.totalorder %s64, %s66
      %p70 = scmp.eq.s32.totalorder %s9, 0
      %p71 = por %p69, %p70
      %p72 = scmp.ne.s32.totalorder %s64, %s66
      %p73 = scmp.eq.s32.totalorder %s14, 4
      %p74 = por %p72, %p73
      %p75 = scmp.ne.s32.totalorder %s66, %s67
      %p76 = scmp.eq.s32.totalorder %s14, 0
      %p77 = por %p75, %p76
      %p78 = scmp.ne.s32.totalorder %s66, %s67
      %p79 = scmp.eq.s32.totalorder %s15, 4
      %p80 = por %p78, %p79
      %p82 = scmp.ne.s32.totalorder %s67, %s81
      %p83 = scmp.eq.s32.totalorder %s15, 0
      %p84 = por %p82, %p83
      %s85 = ssub.s32 %s9, %s16
      %p86 = scmp.eq.s32.totalorder %s85, 0
      %s88 = sadd.s32 %s87, 1
      %s89 = scalar_select %p86, %s87, %s88
      %p92 = pneg %p86
      %p93 = scmp.eq.s32.totalorder %s9, 4
      %p94 = por %p92, %p93
      %p95 = scmp.ne.s32.totalorder %s87, %s90
      %p96 = scmp.eq.s32.totalorder %s9, 0
      %p97 = por %p95, %p96
      %p98 = scmp.ne.s32.totalorder %s87, %s90
      %p99 = scmp.eq.s32.totalorder %s14, 4
      %p100 = por %p98, %p99
      %p101 = scmp.ne.s32.totalorder %s90, %s91
      %p102 = scmp.eq.s32.totalorder %s14, 0
      %p103 = por %p101, %p102
      %p104 = scmp.ne.s32.totalorder %s90, %s91
      %p105 = scmp.eq.s32.totalorder %s15, 4
      %p106 = por %p104, %p105
      %p108 = scmp.ne.s32.totalorder %s91, %s107
      %p109 = scmp.eq.s32.totalorder %s15, 0
      %p110 = por %p108, %p109
      %p111 = scmp.le.s32.totalorder 1, %s9
      %p112 = scmp.lt.s32.totalorder %s9, 6
      %p113 = pnand %p111, %p112
      %p114 = pneg %p113
      // Predicated region
      $region9: #{cnn_forward.5} parent=5 // pred_check
        _
      $region10: #{cnn_forward.5} parent=5 // pred_check_branch
        %116 = sbr.rel (%p113) target = $region12
      $region11: #{cnn_forward.5} parent=5 // pred_region
        %s117 = ssub.s32 %s9, 1
        // Predicated region
        $region13: #{cnn_forward.5} parent=11 // pred_check
          %p118 = pneg %p56
        $region14: #{cnn_forward.5} parent=11 // pred_check_branch
          %120 = sbr.rel (%p118) target = $region16
        $region15: #{cnn_forward.5} parent=11 // pred_region
          _
        $region16: #{cnn_forward.5} parent=11 // pred_fallthru
          _
        // Predicated region
        $region17: #{cnn_forward.5} parent=11 // pred_check
          %p121 = pneg %p77
        $region18: #{cnn_forward.5} parent=11 // pred_check_branch
          %123 = sbr.rel (%p121) target = $region20
        $region19: #{cnn_forward.5} parent=11 // pred_region
          _
        $region20: #{cnn_forward.5} parent=11 // pred_fallthru
          _
      $region12: #{cnn_forward.5} parent=5 // pred_fallthru
        _
      %p124 = scmp.lt.s32.totalorder %s9, 5
      // Predicated region
      $region21: #{cnn_forward.5} parent=5 // pred_check
        %p125 = pneg %p124
      $region22: #{cnn_forward.5} parent=5 // pred_check_branch
        %127 = sbr.rel (%p125) target = $region24
      $region23: #{cnn_forward.5} parent=5 // pred_region
        // Predicated region
        $region25: #{cnn_forward.5} parent=23 // pred_check
          %p128 = pneg %p29
        $region26: #{cnn_forward.5} parent=23 // pred_check_branch
          %130 = sbr.rel (%p128) target = $region28
        $region27: #{cnn_forward.5} parent=23 // pred_region
          %s131 = smul.u32 128, %s9
          %s132 = ssub.s32 553, %s131
          %p133 = scmp.lt.s32.totalorder %s132, 128
          %s134 = scalar_select %p133, %s132, 128
          %s135 = smul.u32 128, %s134
          %p136 = scmp.lt.s32.totalorder %s131, 552
          %s137 = scalar_select %p136, %s131, 552
          %s138 = smul.addr %s137, 8
          %s139 = scalar_lea.vmem %s0, %s138
          %s140 = smul.u32 128, %s9
          %s141 = ssub.s32 553, %s140
          %p142 = scmp.lt.s32.totalorder %s141, 128
          %s143 = scalar_select %p142, %s141, 128
          %s144 = smul.u32 128, %s143
        $region28: #{cnn_forward.5} parent=23 // pred_fallthru
          _
      $region24: #{cnn_forward.5} parent=5 // pred_fallthru
        _
      %p145 = scmp.le.s32.totalorder 1, %s9
      %p146 = scmp.lt.s32.totalorder %s9, 6
      %p147 = pnand %p145, %p146
      %p148 = pneg %p147
      // Predicated region
      $region29: #{cnn_forward.5} parent=5 // pred_check
        _
      $region30: #{cnn_forward.5} parent=5 // pred_check_branch
        %150 = sbr.rel (%p147) target = $region32
      $region31: #{cnn_forward.5} parent=5 // pred_region
        %s151 = ssub.s32 %s9, 1
        %s152 = smul.u32 128, %s14
        %s153 = ssub.s32 553, %s152
        %p154 = scmp.lt.s32.totalorder %s153, 128
        %s155 = scalar_select %p154, %s153, 128
        %s156 = smul.u32 128, %s155
        %p157 = scmp.lt.s32.totalorder %s152, 552
        %s158 = scalar_select %p157, %s152, 552
        %s159 = smul.addr %s158, 8
        %s160 = scalar_lea.vmem %s0, %s159
        %p161 = pneg %p35
        %p162 = pneg %p32
        %p163 = pneg %p56
        %p164 = pneg %p53
        %p165 = pneg %p77
        %p166 = pneg %p74
        %p167 = pneg %p103
        %p168 = pneg %p100
        %s169 = sand.u32 %s90, 1
        %s170 = sand.u32 %s90, 1
        %s171 = smul.addr %s170, 1024
        %s172 = scalar_lea.vmem [#allocation2], %s171
        %s173 = smul.u32 128, %s14
        %s174 = ssub.s32 553, %s173
        %p175 = scmp.lt.s32.totalorder %s174, 128
        %s176 = scalar_select %p175, %s174, 128
        %s177 = smul.u32 128, %s176
        %p178 = scmp.lt.s32.totalorder %s173, 552
        %s179 = scalar_select %p178, %s173, 552
        %s180 = smul.addr %s179, 8
        %s181 = scalar_lea.vmem %s0, %s180
        %s182 = smul.u32 128, %s14
        %s183 = ssub.s32 553, %s182
        %p184 = scmp.lt.s32.totalorder %s183, 128
        %s185 = scalar_select %p184, %s183, 128
        %s186 = smul.u32 128, %s185
        %s187 = smul.u32 128, %s14
        %s188 = ssub.s32 553, %s187
        %p189 = scmp.lt.s32.totalorder %s188, 128
        %s190 = scalar_select %p189, %s188, 128
        %s191 = smul.u32 128, %s190
        %v192 = vld [vmem:[%s181] sm:$0xff]
        %v193 = vld [vmem:[%s181 + $0x8] sm:$0xff]
        %v194 = vld [vmem:[%s181 + $0x10] sm:$0xff]
        %v195 = vld [vmem:[%s181 + $0x18] sm:$0xff]
        %v196 = vld [vmem:[%s181 + $0x20] sm:$0xff]
        %v197 = vld [vmem:[%s181 + $0x28] sm:$0xff]
        %v198 = vld [vmem:[%s181 + $0x30] sm:$0xff]
        %v199 = vld [vmem:[%s181 + $0x38] sm:$0xff]
        %v200 = vld [vmem:[%s181 + $0x40] sm:$0xff]
        %v201 = vld [vmem:[%s181 + $0x48] sm:$0xff]
        %v202 = vld [vmem:[%s181 + $0x50] sm:$0xff]
        %v203 = vld [vmem:[%s181 + $0x58] sm:$0xff]
        %v204 = vld [vmem:[%s181 + $0x60] sm:$0xff]
        %v205 = vld [vmem:[%s181 + $0x68] sm:$0xff]
        %v206 = vld [vmem:[%s181 + $0x70] sm:$0xff]
        %v207 = vld [vmem:[%s181 + $0x78] sm:$0xff]
        %v208 = vld [vmem:[%s181 + $0x80] sm:$0xff]
        %v209 = vld [vmem:[%s181 + $0x88] sm:$0xff]
        %v210 = vld [vmem:[%s181 + $0x90] sm:$0xff]
        %v211 = vld [vmem:[%s181 + $0x98] sm:$0xff]
        %v212 = vld [vmem:[%s181 + $0xa0] sm:$0xff]
        %v213 = vld [vmem:[%s181 + $0xa8] sm:$0xff]
        %v214 = vld [vmem:[%s181 + $0xb0] sm:$0xff]
        %v215 = vld [vmem:[%s181 + $0xb8] sm:$0xff]
        %v216 = vld [vmem:[%s181 + $0xc0] sm:$0xff]
        %v217 = vld [vmem:[%s181 + $0xc8] sm:$0xff]
        %v218 = vld [vmem:[%s181 + $0xd0] sm:$0xff]
        %v219 = vld [vmem:[%s181 + $0xd8] sm:$0xff]
        %v220 = vld [vmem:[%s181 + $0xe0] sm:$0xff]
        %v221 = vld [vmem:[%s181 + $0xe8] sm:$0xff]
        %v222 = vld [vmem:[%s181 + $0xf0] sm:$0xff]
        %v223 = vld [vmem:[%s181 + $0xf8] sm:$0xff]
        %v224 = vld [vmem:[%s181 + $0x100] sm:$0xff]
        %v225 = vld [vmem:[%s181 + $0x108] sm:$0xff]
        %v226 = vld [vmem:[%s181 + $0x110] sm:$0xff]
        %v227 = vld [vmem:[%s181 + $0x118] sm:$0xff]
        %v228 = vld [vmem:[%s181 + $0x120] sm:$0xff]
        %v229 = vld [vmem:[%s181 + $0x128] sm:$0xff]
        %v230 = vld [vmem:[%s181 + $0x130] sm:$0xff]
        %v231 = vld [vmem:[%s181 + $0x138] sm:$0xff]
        %v232 = vld [vmem:[%s181 + $0x140] sm:$0xff]
        %v233 = vld [vmem:[%s181 + $0x148] sm:$0xff]
        %v234 = vld [vmem:[%s181 + $0x150] sm:$0xff]
        %v235 = vld [vmem:[%s181 + $0x158] sm:$0xff]
        %v236 = vld [vmem:[%s181 + $0x160] sm:$0xff]
        %v237 = vld [vmem:[%s181 + $0x168] sm:$0xff]
        %v238 = vld [vmem:[%s181 + $0x170] sm:$0xff]
        %v239 = vld [vmem:[%s181 + $0x178] sm:$0xff]
        %v240 = vld [vmem:[%s181 + $0x180] sm:$0xff]
        %v241 = vld [vmem:[%s181 + $0x188] sm:$0xff]
        %v242 = vld [vmem:[%s181 + $0x190] sm:$0xff]
        %v243 = vld [vmem:[%s181 + $0x198] sm:$0xff]
        %v244 = vld [vmem:[%s181 + $0x1a0] sm:$0xff]
        %v245 = vld [vmem:[%s181 + $0x1a8] sm:$0xff]
        %v246 = vld [vmem:[%s181 + $0x1b0] sm:$0xff]
        %v247 = vld [vmem:[%s181 + $0x1b8] sm:$0xff]
        %v248 = vld [vmem:[%s181 + $0x1c0] sm:$0xff]
        %v249 = vld [vmem:[%s181 + $0x1c8] sm:$0xff]
        %v250 = vld [vmem:[%s181 + $0x1d0] sm:$0xff]
        %v251 = vld [vmem:[%s181 + $0x1d8] sm:$0xff]
        %v252 = vld [vmem:[%s181 + $0x1e0] sm:$0xff]
        %v253 = vld [vmem:[%s181 + $0x1e8] sm:$0xff]
        %v254 = vld [vmem:[%s181 + $0x1f0] sm:$0xff]
        %v255 = vld [vmem:[%s181 + $0x1f8] sm:$0xff]
        %v256 = vld [vmem:[%s181 + $0x200] sm:$0xff]
        %v257 = vld [vmem:[%s181 + $0x208] sm:$0xff]
        %v258 = vld [vmem:[%s181 + $0x210] sm:$0xff]
        %v259 = vld [vmem:[%s181 + $0x218] sm:$0xff]
        %v260 = vld [vmem:[%s181 + $0x220] sm:$0xff]
        %v261 = vld [vmem:[%s181 + $0x228] sm:$0xff]
        %v262 = vld [vmem:[%s181 + $0x230] sm:$0xff]
        %v263 = vld [vmem:[%s181 + $0x238] sm:$0xff]
        %v264 = vld [vmem:[%s181 + $0x240] sm:$0xff]
        %v265 = vld [vmem:[%s181 + $0x248] sm:$0xff]
        %v266 = vld [vmem:[%s181 + $0x250] sm:$0xff]
        %v267 = vld [vmem:[%s181 + $0x258] sm:$0xff]
        %v268 = vld [vmem:[%s181 + $0x260] sm:$0xff]
        %v269 = vld [vmem:[%s181 + $0x268] sm:$0xff]
        %v270 = vld [vmem:[%s181 + $0x270] sm:$0xff]
        %v271 = vld [vmem:[%s181 + $0x278] sm:$0xff]
        %v272 = vld [vmem:[%s181 + $0x280] sm:$0xff]
        %v273 = vld [vmem:[%s181 + $0x288] sm:$0xff]
        %v274 = vld [vmem:[%s181 + $0x290] sm:$0xff]
        %v275 = vld [vmem:[%s181 + $0x298] sm:$0xff]
        %v276 = vld [vmem:[%s181 + $0x2a0] sm:$0xff]
        %v277 = vld [vmem:[%s181 + $0x2a8] sm:$0xff]
        %v278 = vld [vmem:[%s181 + $0x2b0] sm:$0xff]
        %v279 = vld [vmem:[%s181 + $0x2b8] sm:$0xff]
        %v280 = vld [vmem:[%s181 + $0x2c0] sm:$0xff]
        %v281 = vld [vmem:[%s181 + $0x2c8] sm:$0xff]
        %v282 = vld [vmem:[%s181 + $0x2d0] sm:$0xff]
        %v283 = vld [vmem:[%s181 + $0x2d8] sm:$0xff]
        %v284 = vld [vmem:[%s181 + $0x2e0] sm:$0xff]
        %v285 = vld [vmem:[%s181 + $0x2e8] sm:$0xff]
        %v286 = vld [vmem:[%s181 + $0x2f0] sm:$0xff]
        %v287 = vld [vmem:[%s181 + $0x2f8] sm:$0xff]
        %v288 = vld [vmem:[%s181 + $0x300] sm:$0xff]
        %v289 = vld [vmem:[%s181 + $0x308] sm:$0xff]
        %v290 = vld [vmem:[%s181 + $0x310] sm:$0xff]
        %v291 = vld [vmem:[%s181 + $0x318] sm:$0xff]
        %v292 = vld [vmem:[%s181 + $0x320] sm:$0xff]
        %v293 = vld [vmem:[%s181 + $0x328] sm:$0xff]
        %v294 = vld [vmem:[%s181 + $0x330] sm:$0xff]
        %v295 = vld [vmem:[%s181 + $0x338] sm:$0xff]
        %v296 = vld [vmem:[%s181 + $0x340] sm:$0xff]
        %v297 = vld [vmem:[%s181 + $0x348] sm:$0xff]
        %v298 = vld [vmem:[%s181 + $0x350] sm:$0xff]
        %v299 = vld [vmem:[%s181 + $0x358] sm:$0xff]
        %v300 = vld [vmem:[%s181 + $0x360] sm:$0xff]
        %v301 = vld [vmem:[%s181 + $0x368] sm:$0xff]
        %v302 = vld [vmem:[%s181 + $0x370] sm:$0xff]
        %v303 = vld [vmem:[%s181 + $0x378] sm:$0xff]
        %v304 = vld [vmem:[%s181 + $0x380] sm:$0xff]
        %v305 = vld [vmem:[%s181 + $0x388] sm:$0xff]
        %v306 = vld [vmem:[%s181 + $0x390] sm:$0xff]
        %v307 = vld [vmem:[%s181 + $0x398] sm:$0xff]
        %v308 = vld [vmem:[%s181 + $0x3a0] sm:$0xff]
        %v309 = vld [vmem:[%s181 + $0x3a8] sm:$0xff]
        %v310 = vld [vmem:[%s181 + $0x3b0] sm:$0xff]
        %v311 = vld [vmem:[%s181 + $0x3b8] sm:$0xff]
        %v312 = vld [vmem:[%s181 + $0x3c0] sm:$0xff]
        %v313 = vld [vmem:[%s181 + $0x3c8] sm:$0xff]
        %v314 = vld [vmem:[%s181 + $0x3d0] sm:$0xff]
        %v315 = vld [vmem:[%s181 + $0x3d8] sm:$0xff]
        %v316 = vld [vmem:[%s181 + $0x3e0] sm:$0xff]
        %v317 = vld [vmem:[%s181 + $0x3e8] sm:$0xff]
        %v318 = vld [vmem:[%s181 + $0x3f0] sm:$0xff]
        %v319 = vld [vmem:[%s181 + $0x3f8] sm:$0xff]
        %v320 = vld [vmem:[%s1] sm:$0xff]
        %v321 = vld [vmem:[%s1 + $0x8] sm:$0x1]
        %v322 = vld [vmem:[%s2] sm:$0x1]
        %v324 = vlaneseq
        %v325 = vshrl.u32 %v324, 7
        %v326 = vsub.s32 0, %v325
        %v327 = vrot.slane %v322, %v326
        %vm329 = vcmask 72704
        %v331 = vsel %vm329, %v192, 0
        %v334 = vsel %vm329, %v193, 0
        %v337 = vsel %vm329, %v194, 0
        %v340 = vsel %vm329, %v195, 0
        %v343 = vsel %vm329, %v196, 0
        %v346 = vsel %vm329, %v197, 0
        %v349 = vsel %vm329, %v198, 0
        %v352 = vsel %vm329, %v199, 0
        %v355 = vsel %vm329, %v200, 0
        %v358 = vsel %vm329, %v201, 0
        %v361 = vsel %vm329, %v202, 0
        %v364 = vsel %vm329, %v203, 0
        %v367 = vsel %vm329, %v204, 0
        %v370 = vsel %vm329, %v205, 0
        %v373 = vsel %vm329, %v206, 0
        %v376 = vsel %vm329, %v207, 0
        %v379 = vsel %vm329, %v208, 0
        %v382 = vsel %vm329, %v209, 0
        %v385 = vsel %vm329, %v210, 0
        %v388 = vsel %vm329, %v211, 0
        %v391 = vsel %vm329, %v212, 0
        %v394 = vsel %vm329, %v213, 0
        %v397 = vsel %vm329, %v214, 0
        %v400 = vsel %vm329, %v215, 0
        %v403 = vsel %vm329, %v216, 0
        %v406 = vsel %vm329, %v217, 0
        %v409 = vsel %vm329, %v218, 0
        %v412 = vsel %vm329, %v219, 0
        %v415 = vsel %vm329, %v220, 0
        %v418 = vsel %vm329, %v221, 0
        %v421 = vsel %vm329, %v222, 0
        %v424 = vsel %vm329, %v223, 0
        %v427 = vsel %vm329, %v224, 0
        %v430 = vsel %vm329, %v225, 0
        %v433 = vsel %vm329, %v226, 0
        %v436 = vsel %vm329, %v227, 0
        %v439 = vsel %vm329, %v228, 0
        %v442 = vsel %vm329, %v229, 0
        %v445 = vsel %vm329, %v230, 0
        %v448 = vsel %vm329, %v231, 0
        %v451 = vsel %vm329, %v232, 0
        %v454 = vsel %vm329, %v233, 0
        %v457 = vsel %vm329, %v234, 0
        %v460 = vsel %vm329, %v235, 0
        %v463 = vsel %vm329, %v236, 0
        %v466 = vsel %vm329, %v237, 0
        %v469 = vsel %vm329, %v238, 0
        %v472 = vsel %vm329, %v239, 0
        %v475 = vsel %vm329, %v240, 0
        %v478 = vsel %vm329, %v241, 0
        %v481 = vsel %vm329, %v242, 0
        %v484 = vsel %vm329, %v243, 0
        %v487 = vsel %vm329, %v244, 0
        %v490 = vsel %vm329, %v245, 0
        %v493 = vsel %vm329, %v246, 0
        %v496 = vsel %vm329, %v247, 0
        %v499 = vsel %vm329, %v248, 0
        %v502 = vsel %vm329, %v249, 0
        %v505 = vsel %vm329, %v250, 0
        %v508 = vsel %vm329, %v251, 0
        %v511 = vsel %vm329, %v252, 0
        %v514 = vsel %vm329, %v253, 0
        %v517 = vsel %vm329, %v254, 0
        %v520 = vsel %vm329, %v255, 0
        %v523 = vsel %vm329, %v256, 0
        %v526 = vsel %vm329, %v257, 0
        %v529 = vsel %vm329, %v258, 0
        %v532 = vsel %vm329, %v259, 0
        %v535 = vsel %vm329, %v260, 0
        %v538 = vsel %vm329, %v261, 0
        %v541 = vsel %vm329, %v262, 0
        %v544 = vsel %vm329, %v263, 0
        %v547 = vsel %vm329, %v264, 0
        %v550 = vsel %vm329, %v265, 0
        %v553 = vsel %vm329, %v266, 0
        %v556 = vsel %vm329, %v267, 0
        %v559 = vsel %vm329, %v268, 0
        %v562 = vsel %vm329, %v269, 0
        %v565 = vsel %vm329, %v270, 0
        %v568 = vsel %vm329, %v271, 0
        %v571 = vsel %vm329, %v272, 0
        %v574 = vsel %vm329, %v273, 0
        %v577 = vsel %vm329, %v274, 0
        %v580 = vsel %vm329, %v275, 0
        %v583 = vsel %vm329, %v276, 0
        %v586 = vsel %vm329, %v277, 0
        %v589 = vsel %vm329, %v278, 0
        %v592 = vsel %vm329, %v279, 0
        %v595 = vsel %vm329, %v280, 0
        %v598 = vsel %vm329, %v281, 0
        %v601 = vsel %vm329, %v282, 0
        %v604 = vsel %vm329, %v283, 0
        %v607 = vsel %vm329, %v284, 0
        %v610 = vsel %vm329, %v285, 0
        %v613 = vsel %vm329, %v286, 0
        %v616 = vsel %vm329, %v287, 0
        %v619 = vsel %vm329, %v288, 0
        %v622 = vsel %vm329, %v289, 0
        %v625 = vsel %vm329, %v290, 0
        %v628 = vsel %vm329, %v291, 0
        %v631 = vsel %vm329, %v292, 0
        %v634 = vsel %vm329, %v293, 0
        %v637 = vsel %vm329, %v294, 0
        %v640 = vsel %vm329, %v295, 0
        %v643 = vsel %vm329, %v296, 0
        %v646 = vsel %vm329, %v297, 0
        %v649 = vsel %vm329, %v298, 0
        %v652 = vsel %vm329, %v299, 0
        %v655 = vsel %vm329, %v300, 0
        %v658 = vsel %vm329, %v301, 0
        %v661 = vsel %vm329, %v302, 0
        %v664 = vsel %vm329, %v303, 0
        %v667 = vsel %vm329, %v304, 0
        %v670 = vsel %vm329, %v305, 0
        %v673 = vsel %vm329, %v306, 0
        %v676 = vsel %vm329, %v307, 0
        %v679 = vsel %vm329, %v308, 0
        %v682 = vsel %vm329, %v309, 0
        %v685 = vsel %vm329, %v310, 0
        %v688 = vsel %vm329, %v311, 0
        %v691 = vsel %vm329, %v312, 0
        %v694 = vsel %vm329, %v313, 0
        %v697 = vsel %vm329, %v314, 0
        %v700 = vsel %vm329, %v315, 0
        %v703 = vsel %vm329, %v316, 0
        %v706 = vsel %vm329, %v317, 0
        %v709 = vsel %vm329, %v318, 0
        %v712 = vsel %vm329, %v319, 0
        %vm714 = vcmask 1040384
        %v716 = vsel %vm714, %v321, 0
        %718 = vmatprep.subr.mxu0 0.0
        %719 = vmatpush1.msra.mxu0 0.0
        %720 = vmatprep.subr.mxu0 0.0
        %721 = vmatpush1.msra.mxu0 0.0
        %722 = vmatprep.subr.mxu0 0.0
        %723 = vmatpush1.msra.mxu0 0.0
        %724 = vmatprep.subr.mxu0 0.0
        %725 = vmatpush1.msra.mxu0 0.0
        %726 = vmatprep.subr.mxu0 0.0
        %727 = vmatpush1.msra.mxu0 0.0
        %728 = vmatprep.subr.mxu0 0.0
        %729 = vmatpush1.msra.mxu0 0.0
        %730 = vmatprep.subr.mxu0 0.0
        %731 = vmatpush1.msra.mxu0 0.0
        %732 = vmatprep.subr.mxu0 0.0
        %733 = vmatpush1.msra.mxu0 0.0
        %734 = vmatprep.subr.mxu0 0.0
        %735 = vmatpush1.msra.mxu0 0.0
        %736 = vmatprep.subr.mxu0 0.0
        %737 = vmatpush1.msra.mxu0 0.0
        %738 = vmatprep.subr.mxu0 0.0
        %739 = vmatpush1.msra.mxu0 0.0
        %740 = vmatprep.subr.mxu0 0.0
        %741 = vmatpush1.msra.mxu0 0.0
        %742 = vmatprep.subr.mxu0 0.0
        %743 = vmatpush1.msra.mxu0 0.0
        %744 = vmatprep.subr.mxu0 0.0
        %745 = vmatpush1.msra.mxu0 0.0
        %746 = vmatprep.subr.mxu0 0.0
        %747 = vmatpush1.msra.mxu0 %v716
        %748 = vmatprep.subr.mxu0 0.0
        %749 = vmatpush1.msra.mxu0 %v320
        %750 = vmatprep.subr.mxu0 0.0
        %751 = vmatpush2.msra.mxu0 0.0
        %752 = vmatprep.subr.mxu0 0.0
        %753 = vmatpush2.msra.mxu0 0.0
        %754 = vmatprep.subr.mxu0 0.0
        %755 = vmatpush2.msra.mxu0 0.0
        %756 = vmatprep.subr.mxu0 0.0
        %757 = vmatpush2.msra.mxu0 0.0
        %758 = vmatprep.subr.mxu0 0.0
        %759 = vmatpush2.msra.mxu0 0.0
        %760 = vmatprep.subr.mxu0 0.0
        %761 = vmatpush2.msra.mxu0 0.0
        %762 = vmatprep.subr.mxu0 0.0
        %763 = vmatpush2.msra.mxu0 0.0
        %764 = vmatprep.subr.mxu0 0.0
        %765 = vmatpush2.msra.mxu0 0.0
        %766 = vmatprep.subr.mxu0 0.0
        %767 = vmatpush2.msra.mxu0 0.0
        %768 = vmatprep.subr.mxu0 0.0
        %769 = vmatpush2.msra.mxu0 0.0
        %770 = vmatprep.subr.mxu0 0.0
        %771 = vmatpush2.msra.mxu0 0.0
        %772 = vmatprep.subr.mxu0 0.0
        %773 = vmatpush2.msra.mxu0 0.0
        %774 = vmatprep.subr.mxu0 0.0
        %775 = vmatpush2.msra.mxu0 0.0
        %776 = vmatprep.subr.mxu0 0.0
        %777 = vmatpush2.msra.mxu0 0.0
        %778 = vmatprep.subr.mxu0 0.0
        %779 = vmatpush2.msra.mxu0 0.0
        %780 = vmatprep.subr.mxu0 0.0
        %781 = vmatpush2.msra.mxu0 0.0
        %782 = vmatprep.mubr.f32.mxu0 0.0
        %783 = vmatmul.mubr.f32.gmra.mxu0 %v331
        %v784 = vpop.f32.mrf.mxu0
        %v785 = vadd.f32 %v327, %v784
        %v786 = vpop.f32.mrf.mxu0
        %787 = vmatprep.mubr.f32.mxu0 0.0
        %788 = vmatmul.mubr.f32.gmra.mxu0 %v334
        %v789 = vpop.f32.mrf.mxu0
        %v790 = vadd.f32 %v327, %v789
        %v791 = vpop.f32.mrf.mxu0
        %792 = vmatprep.mubr.f32.mxu0 0.0
        %793 = vmatmul.mubr.f32.gmra.mxu0 %v337
        %v794 = vpop.f32.mrf.mxu0
        %v795 = vadd.f32 %v327, %v794
        %v796 = vpop.f32.mrf.mxu0
        %797 = vmatprep.mubr.f32.mxu0 0.0
        %798 = vmatmul.mubr.f32.gmra.mxu0 %v340
        %v799 = vpop.f32.mrf.mxu0
        %v800 = vadd.f32 %v327, %v799
        %v801 = vpop.f32.mrf.mxu0
        %802 = vmatprep.mubr.f32.mxu0 0.0
        %803 = vmatmul.mubr.f32.gmra.mxu0 %v343
        %v804 = vpop.f32.mrf.mxu0
        %v805 = vadd.f32 %v327, %v804
        %v806 = vpop.f32.mrf.mxu0
        %807 = vmatprep.mubr.f32.mxu0 0.0
        %808 = vmatmul.mubr.f32.gmra.mxu0 %v346
        %v809 = vpop.f32.mrf.mxu0
        %v810 = vadd.f32 %v327, %v809
        %v811 = vpop.f32.mrf.mxu0
        %812 = vmatprep.mubr.f32.mxu0 0.0
        %813 = vmatmul.mubr.f32.gmra.mxu0 %v349
        %v814 = vpop.f32.mrf.mxu0
        %v815 = vadd.f32 %v327, %v814
        %v816 = vpop.f32.mrf.mxu0
        %817 = vmatprep.mubr.f32.mxu0 0.0
        %818 = vmatmul.mubr.f32.gmra.mxu0 %v352
        %v819 = vpop.f32.mrf.mxu0
        %v820 = vadd.f32 %v327, %v819
        %v821 = vpop.f32.mrf.mxu0
        %822 = vmatprep.mubr.f32.mxu0 0.0
        %823 = vmatmul.mubr.f32.gmra.mxu0 %v355
        %v824 = vpop.f32.mrf.mxu0
        %v825 = vadd.f32 %v327, %v824
        %v826 = vpop.f32.mrf.mxu0
        %827 = vmatprep.mubr.f32.mxu0 0.0
        %828 = vmatmul.mubr.f32.gmra.mxu0 %v358
        %v829 = vpop.f32.mrf.mxu0
        %v830 = vadd.f32 %v327, %v829
        %v831 = vpop.f32.mrf.mxu0
        %832 = vmatprep.mubr.f32.mxu0 0.0
        %833 = vmatmul.mubr.f32.gmra.mxu0 %v361
        %v834 = vpop.f32.mrf.mxu0
        %v835 = vadd.f32 %v327, %v834
        %v836 = vpop.f32.mrf.mxu0
        %837 = vmatprep.mubr.f32.mxu0 0.0
        %838 = vmatmul.mubr.f32.gmra.mxu0 %v364
        %v839 = vpop.f32.mrf.mxu0
        %v840 = vadd.f32 %v327, %v839
        %v841 = vpop.f32.mrf.mxu0
        %842 = vmatprep.mubr.f32.mxu0 0.0
        %843 = vmatmul.mubr.f32.gmra.mxu0 %v367
        %v844 = vpop.f32.mrf.mxu0
        %v845 = vadd.f32 %v327, %v844
        %v846 = vpop.f32.mrf.mxu0
        %847 = vmatprep.mubr.f32.mxu0 0.0
        %848 = vmatmul.mubr.f32.gmra.mxu0 %v370
        %v849 = vpop.f32.mrf.mxu0
        %v850 = vadd.f32 %v327, %v849
        %v851 = vpop.f32.mrf.mxu0
        %852 = vmatprep.mubr.f32.mxu0 0.0
        %853 = vmatmul.mubr.f32.gmra.mxu0 %v373
        %v854 = vpop.f32.mrf.mxu0
        %v855 = vadd.f32 %v327, %v854
        %v856 = vpop.f32.mrf.mxu0
        %857 = vmatprep.mubr.f32.mxu0 0.0
        %858 = vmatmul.mubr.f32.gmra.mxu0 %v376
        %v859 = vpop.f32.mrf.mxu0
        %v860 = vadd.f32 %v327, %v859
        %v861 = vpop.f32.mrf.mxu0
        %862 = vmatprep.mubr.f32.mxu0 0.0
        %863 = vmatmul.mubr.f32.gmra.mxu0 %v379
        %v864 = vpop.f32.mrf.mxu0
        %v865 = vadd.f32 %v327, %v864
        %v866 = vpop.f32.mrf.mxu0
        %867 = vmatprep.mubr.f32.mxu0 0.0
        %868 = vmatmul.mubr.f32.gmra.mxu0 %v382
        %v869 = vpop.f32.mrf.mxu0
        %v870 = vadd.f32 %v327, %v869
        %v871 = vpop.f32.mrf.mxu0
        %872 = vmatprep.mubr.f32.mxu0 0.0
        %873 = vmatmul.mubr.f32.gmra.mxu0 %v385
        %v874 = vpop.f32.mrf.mxu0
        %v875 = vadd.f32 %v327, %v874
        %v876 = vpop.f32.mrf.mxu0
        %877 = vmatprep.mubr.f32.mxu0 0.0
        %878 = vmatmul.mubr.f32.gmra.mxu0 %v388
        %v879 = vpop.f32.mrf.mxu0
        %v880 = vadd.f32 %v327, %v879
        %v881 = vpop.f32.mrf.mxu0
        %882 = vmatprep.mubr.f32.mxu0 0.0
        %883 = vmatmul.mubr.f32.gmra.mxu0 %v391
        %v884 = vpop.f32.mrf.mxu0
        %v885 = vadd.f32 %v327, %v884
        %v886 = vpop.f32.mrf.mxu0
        %887 = vmatprep.mubr.f32.mxu0 0.0
        %888 = vmatmul.mubr.f32.gmra.mxu0 %v394
        %v889 = vpop.f32.mrf.mxu0
        %v890 = vadd.f32 %v327, %v889
        %v891 = vpop.f32.mrf.mxu0
        %892 = vmatprep.mubr.f32.mxu0 0.0
        %893 = vmatmul.mubr.f32.gmra.mxu0 %v397
        %v894 = vpop.f32.mrf.mxu0
        %v895 = vadd.f32 %v327, %v894
        %v896 = vpop.f32.mrf.mxu0
        %897 = vmatprep.mubr.f32.mxu0 0.0
        %898 = vmatmul.mubr.f32.gmra.mxu0 %v400
        %v899 = vpop.f32.mrf.mxu0
        %v900 = vadd.f32 %v327, %v899
        %v901 = vpop.f32.mrf.mxu0
        %902 = vmatprep.mubr.f32.mxu0 0.0
        %903 = vmatmul.mubr.f32.gmra.mxu0 %v403
        %v904 = vpop.f32.mrf.mxu0
        %v905 = vadd.f32 %v327, %v904
        %v906 = vpop.f32.mrf.mxu0
        %907 = vmatprep.mubr.f32.mxu0 0.0
        %908 = vmatmul.mubr.f32.gmra.mxu0 %v406
        %v909 = vpop.f32.mrf.mxu0
        %v910 = vadd.f32 %v327, %v909
        %v911 = vpop.f32.mrf.mxu0
        %912 = vmatprep.mubr.f32.mxu0 0.0
        %913 = vmatmul.mubr.f32.gmra.mxu0 %v409
        %v914 = vpop.f32.mrf.mxu0
        %v915 = vadd.f32 %v327, %v914
        %v916 = vpop.f32.mrf.mxu0
        %917 = vmatprep.mubr.f32.mxu0 0.0
        %918 = vmatmul.mubr.f32.gmra.mxu0 %v412
        %v919 = vpop.f32.mrf.mxu0
        %v920 = vadd.f32 %v327, %v919
        %v921 = vpop.f32.mrf.mxu0
        %922 = vmatprep.mubr.f32.mxu0 0.0
        %923 = vmatmul.mubr.f32.gmra.mxu0 %v415
        %v924 = vpop.f32.mrf.mxu0
        %v925 = vadd.f32 %v327, %v924
        %v926 = vpop.f32.mrf.mxu0
        %927 = vmatprep.mubr.f32.mxu0 0.0
        %928 = vmatmul.mubr.f32.gmra.mxu0 %v418
        %v929 = vpop.f32.mrf.mxu0
        %v930 = vadd.f32 %v327, %v929
        %v931 = vpop.f32.mrf.mxu0
        %932 = vmatprep.mubr.f32.mxu0 0.0
        %933 = vmatmul.mubr.f32.gmra.mxu0 %v421
        %v934 = vpop.f32.mrf.mxu0
        %v935 = vadd.f32 %v327, %v934
        %v936 = vpop.f32.mrf.mxu0
        %937 = vmatprep.mubr.f32.mxu0 0.0
        %938 = vmatmul.mubr.f32.gmra.mxu0 %v424
        %v939 = vpop.f32.mrf.mxu0
        %v940 = vadd.f32 %v327, %v939
        %v941 = vpop.f32.mrf.mxu0
        %942 = vmatprep.mubr.f32.mxu0 0.0
        %943 = vmatmul.mubr.f32.gmra.mxu0 %v427
        %v944 = vpop.f32.mrf.mxu0
        %v945 = vadd.f32 %v327, %v944
        %v946 = vpop.f32.mrf.mxu0
        %947 = vmatprep.mubr.f32.mxu0 0.0
        %948 = vmatmul.mubr.f32.gmra.mxu0 %v430
        %v949 = vpop.f32.mrf.mxu0
        %v950 = vadd.f32 %v327, %v949
        %v951 = vpop.f32.mrf.mxu0
        %952 = vmatprep.mubr.f32.mxu0 0.0
        %953 = vmatmul.mubr.f32.gmra.mxu0 %v433
        %v954 = vpop.f32.mrf.mxu0
        %v955 = vadd.f32 %v327, %v954
        %v956 = vpop.f32.mrf.mxu0
        %957 = vmatprep.mubr.f32.mxu0 0.0
        %958 = vmatmul.mubr.f32.gmra.mxu0 %v436
        %v959 = vpop.f32.mrf.mxu0
        %v960 = vadd.f32 %v327, %v959
        %v961 = vpop.f32.mrf.mxu0
        %962 = vmatprep.mubr.f32.mxu0 0.0
        %963 = vmatmul.mubr.f32.gmra.mxu0 %v439
        %v964 = vpop.f32.mrf.mxu0
        %v965 = vadd.f32 %v327, %v964
        %v966 = vpop.f32.mrf.mxu0
        %967 = vmatprep.mubr.f32.mxu0 0.0
        %968 = vmatmul.mubr.f32.gmra.mxu0 %v442
        %v969 = vpop.f32.mrf.mxu0
        %v970 = vadd.f32 %v327, %v969
        %v971 = vpop.f32.mrf.mxu0
        %972 = vmatprep.mubr.f32.mxu0 0.0
        %973 = vmatmul.mubr.f32.gmra.mxu0 %v445
        %v974 = vpop.f32.mrf.mxu0
        %v975 = vadd.f32 %v327, %v974
        %v976 = vpop.f32.mrf.mxu0
        %977 = vmatprep.mubr.f32.mxu0 0.0
        %978 = vmatmul.mubr.f32.gmra.mxu0 %v448
        %v979 = vpop.f32.mrf.mxu0
        %v980 = vadd.f32 %v327, %v979
        %v981 = vpop.f32.mrf.mxu0
        %982 = vmatprep.mubr.f32.mxu0 0.0
        %983 = vmatmul.mubr.f32.gmra.mxu0 %v451
        %v984 = vpop.f32.mrf.mxu0
        %v985 = vadd.f32 %v327, %v984
        %v986 = vpop.f32.mrf.mxu0
        %987 = vmatprep.mubr.f32.mxu0 0.0
        %988 = vmatmul.mubr.f32.gmra.mxu0 %v454
        %v989 = vpop.f32.mrf.mxu0
        %v990 = vadd.f32 %v327, %v989
        %v991 = vpop.f32.mrf.mxu0
        %992 = vmatprep.mubr.f32.mxu0 0.0
        %993 = vmatmul.mubr.f32.gmra.mxu0 %v457
        %v994 = vpop.f32.mrf.mxu0
        %v995 = vadd.f32 %v327, %v994
        %v996 = vpop.f32.mrf.mxu0
        %997 = vmatprep.mubr.f32.mxu0 0.0
        %998 = vmatmul.mubr.f32.gmra.mxu0 %v460
        %v999 = vpop.f32.mrf.mxu0
        %v1000 = vadd.f32 %v327, %v999
        %v1001 = vpop.f32.mrf.mxu0
        %1002 = vmatprep.mubr.f32.mxu0 0.0
        %1003 = vmatmul.mubr.f32.gmra.mxu0 %v463
        %v1004 = vpop.f32.mrf.mxu0
        %v1005 = vadd.f32 %v327, %v1004
        %v1006 = vpop.f32.mrf.mxu0
        %1007 = vmatprep.mubr.f32.mxu0 0.0
        %1008 = vmatmul.mubr.f32.gmra.mxu0 %v466
        %v1009 = vpop.f32.mrf.mxu0
        %v1010 = vadd.f32 %v327, %v1009
        %v1011 = vpop.f32.mrf.mxu0
        %1012 = vmatprep.mubr.f32.mxu0 0.0
        %1013 = vmatmul.mubr.f32.gmra.mxu0 %v469
        %v1014 = vpop.f32.mrf.mxu0
        %v1015 = vadd.f32 %v327, %v1014
        %v1016 = vpop.f32.mrf.mxu0
        %1017 = vmatprep.mubr.f32.mxu0 0.0
        %1018 = vmatmul.mubr.f32.gmra.mxu0 %v472
        %v1019 = vpop.f32.mrf.mxu0
        %v1020 = vadd.f32 %v327, %v1019
        %v1021 = vpop.f32.mrf.mxu0
        %1022 = vmatprep.mubr.f32.mxu0 0.0
        %1023 = vmatmul.mubr.f32.gmra.mxu0 %v475
        %v1024 = vpop.f32.mrf.mxu0
        %v1025 = vadd.f32 %v327, %v1024
        %v1026 = vpop.f32.mrf.mxu0
        %1027 = vmatprep.mubr.f32.mxu0 0.0
        %1028 = vmatmul.mubr.f32.gmra.mxu0 %v478
        %v1029 = vpop.f32.mrf.mxu0
        %v1030 = vadd.f32 %v327, %v1029
        %v1031 = vpop.f32.mrf.mxu0
        %1032 = vmatprep.mubr.f32.mxu0 0.0
        %1033 = vmatmul.mubr.f32.gmra.mxu0 %v481
        %v1034 = vpop.f32.mrf.mxu0
        %v1035 = vadd.f32 %v327, %v1034
        %v1036 = vpop.f32.mrf.mxu0
        %1037 = vmatprep.mubr.f32.mxu0 0.0
        %1038 = vmatmul.mubr.f32.gmra.mxu0 %v484
        %v1039 = vpop.f32.mrf.mxu0
        %v1040 = vadd.f32 %v327, %v1039
        %v1041 = vpop.f32.mrf.mxu0
        %1042 = vmatprep.mubr.f32.mxu0 0.0
        %1043 = vmatmul.mubr.f32.gmra.mxu0 %v487
        %v1044 = vpop.f32.mrf.mxu0
        %v1045 = vadd.f32 %v327, %v1044
        %v1046 = vpop.f32.mrf.mxu0
        %1047 = vmatprep.mubr.f32.mxu0 0.0
        %1048 = vmatmul.mubr.f32.gmra.mxu0 %v490
        %v1049 = vpop.f32.mrf.mxu0
        %v1050 = vadd.f32 %v327, %v1049
        %v1051 = vpop.f32.mrf.mxu0
        %1052 = vmatprep.mubr.f32.mxu0 0.0
        %1053 = vmatmul.mubr.f32.gmra.mxu0 %v493
        %v1054 = vpop.f32.mrf.mxu0
        %v1055 = vadd.f32 %v327, %v1054
        %v1056 = vpop.f32.mrf.mxu0
        %1057 = vmatprep.mubr.f32.mxu0 0.0
        %1058 = vmatmul.mubr.f32.gmra.mxu0 %v496
        %v1059 = vpop.f32.mrf.mxu0
        %v1060 = vadd.f32 %v327, %v1059
        %v1061 = vpop.f32.mrf.mxu0
        %1062 = vmatprep.mubr.f32.mxu0 0.0
        %1063 = vmatmul.mubr.f32.gmra.mxu0 %v499
        %v1064 = vpop.f32.mrf.mxu0
        %v1065 = vadd.f32 %v327, %v1064
        %v1066 = vpop.f32.mrf.mxu0
        %1067 = vmatprep.mubr.f32.mxu0 0.0
        %1068 = vmatmul.mubr.f32.gmra.mxu0 %v502
        %v1069 = vpop.f32.mrf.mxu0
        %v1070 = vadd.f32 %v327, %v1069
        %v1071 = vpop.f32.mrf.mxu0
        %1072 = vmatprep.mubr.f32.mxu0 0.0
        %1073 = vmatmul.mubr.f32.gmra.mxu0 %v505
        %v1074 = vpop.f32.mrf.mxu0
        %v1075 = vadd.f32 %v327, %v1074
        %v1076 = vpop.f32.mrf.mxu0
        %1077 = vmatprep.mubr.f32.mxu0 0.0
        %1078 = vmatmul.mubr.f32.gmra.mxu0 %v508
        %v1079 = vpop.f32.mrf.mxu0
        %v1080 = vadd.f32 %v327, %v1079
        %v1081 = vpop.f32.mrf.mxu0
        %1082 = vmatprep.mubr.f32.mxu0 0.0
        %1083 = vmatmul.mubr.f32.gmra.mxu0 %v511
        %v1084 = vpop.f32.mrf.mxu0
        %v1085 = vadd.f32 %v327, %v1084
        %v1086 = vpop.f32.mrf.mxu0
        %1087 = vmatprep.mubr.f32.mxu0 0.0
        %1088 = vmatmul.mubr.f32.gmra.mxu0 %v514
        %v1089 = vpop.f32.mrf.mxu0
        %v1090 = vadd.f32 %v327, %v1089
        %v1091 = vpop.f32.mrf.mxu0
        %1092 = vmatprep.mubr.f32.mxu0 0.0
        %1093 = vmatmul.mubr.f32.gmra.mxu0 %v517
        %v1094 = vpop.f32.mrf.mxu0
        %v1095 = vadd.f32 %v327, %v1094
        %v1096 = vpop.f32.mrf.mxu0
        %1097 = vmatprep.mubr.f32.mxu0 0.0
        %1098 = vmatmul.mubr.f32.gmra.mxu0 %v520
        %v1099 = vpop.f32.mrf.mxu0
        %v1100 = vadd.f32 %v327, %v1099
        %v1101 = vpop.f32.mrf.mxu0
        %1102 = vmatprep.mubr.f32.mxu0 0.0
        %1103 = vmatmul.mubr.f32.gmra.mxu0 %v523
        %v1104 = vpop.f32.mrf.mxu0
        %v1105 = vadd.f32 %v327, %v1104
        %v1106 = vpop.f32.mrf.mxu0
        %1107 = vmatprep.mubr.f32.mxu0 0.0
        %1108 = vmatmul.mubr.f32.gmra.mxu0 %v526
        %v1109 = vpop.f32.mrf.mxu0
        %v1110 = vadd.f32 %v327, %v1109
        %v1111 = vpop.f32.mrf.mxu0
        %1112 = vmatprep.mubr.f32.mxu0 0.0
        %1113 = vmatmul.mubr.f32.gmra.mxu0 %v529
        %v1114 = vpop.f32.mrf.mxu0
        %v1115 = vadd.f32 %v327, %v1114
        %v1116 = vpop.f32.mrf.mxu0
        %1117 = vmatprep.mubr.f32.mxu0 0.0
        %1118 = vmatmul.mubr.f32.gmra.mxu0 %v532
        %v1119 = vpop.f32.mrf.mxu0
        %v1120 = vadd.f32 %v327, %v1119
        %v1121 = vpop.f32.mrf.mxu0
        %1122 = vmatprep.mubr.f32.mxu0 0.0
        %1123 = vmatmul.mubr.f32.gmra.mxu0 %v535
        %v1124 = vpop.f32.mrf.mxu0
        %v1125 = vadd.f32 %v327, %v1124
        %v1126 = vpop.f32.mrf.mxu0
        %1127 = vmatprep.mubr.f32.mxu0 0.0
        %1128 = vmatmul.mubr.f32.gmra.mxu0 %v538
        %v1129 = vpop.f32.mrf.mxu0
        %v1130 = vadd.f32 %v327, %v1129
        %v1131 = vpop.f32.mrf.mxu0
        %1132 = vmatprep.mubr.f32.mxu0 0.0
        %1133 = vmatmul.mubr.f32.gmra.mxu0 %v541
        %v1134 = vpop.f32.mrf.mxu0
        %v1135 = vadd.f32 %v327, %v1134
        %v1136 = vpop.f32.mrf.mxu0
        %1137 = vmatprep.mubr.f32.mxu0 0.0
        %1138 = vmatmul.mubr.f32.gmra.mxu0 %v544
        %v1139 = vpop.f32.mrf.mxu0
        %v1140 = vadd.f32 %v327, %v1139
        %v1141 = vpop.f32.mrf.mxu0
        %1142 = vmatprep.mubr.f32.mxu0 0.0
        %1143 = vmatmul.mubr.f32.gmra.mxu0 %v547
        %v1144 = vpop.f32.mrf.mxu0
        %v1145 = vadd.f32 %v327, %v1144
        %v1146 = vpop.f32.mrf.mxu0
        %1147 = vmatprep.mubr.f32.mxu0 0.0
        %1148 = vmatmul.mubr.f32.gmra.mxu0 %v550
        %v1149 = vpop.f32.mrf.mxu0
        %v1150 = vadd.f32 %v327, %v1149
        %v1151 = vpop.f32.mrf.mxu0
        %1152 = vmatprep.mubr.f32.mxu0 0.0
        %1153 = vmatmul.mubr.f32.gmra.mxu0 %v553
        %v1154 = vpop.f32.mrf.mxu0
        %v1155 = vadd.f32 %v327, %v1154
        %v1156 = vpop.f32.mrf.mxu0
        %1157 = vmatprep.mubr.f32.mxu0 0.0
        %1158 = vmatmul.mubr.f32.gmra.mxu0 %v556
        %v1159 = vpop.f32.mrf.mxu0
        %v1160 = vadd.f32 %v327, %v1159
        %v1161 = vpop.f32.mrf.mxu0
        %1162 = vmatprep.mubr.f32.mxu0 0.0
        %1163 = vmatmul.mubr.f32.gmra.mxu0 %v559
        %v1164 = vpop.f32.mrf.mxu0
        %v1165 = vadd.f32 %v327, %v1164
        %v1166 = vpop.f32.mrf.mxu0
        %1167 = vmatprep.mubr.f32.mxu0 0.0
        %1168 = vmatmul.mubr.f32.gmra.mxu0 %v562
        %v1169 = vpop.f32.mrf.mxu0
        %v1170 = vadd.f32 %v327, %v1169
        %v1171 = vpop.f32.mrf.mxu0
        %1172 = vmatprep.mubr.f32.mxu0 0.0
        %1173 = vmatmul.mubr.f32.gmra.mxu0 %v565
        %v1174 = vpop.f32.mrf.mxu0
        %v1175 = vadd.f32 %v327, %v1174
        %v1176 = vpop.f32.mrf.mxu0
        %1177 = vmatprep.mubr.f32.mxu0 0.0
        %1178 = vmatmul.mubr.f32.gmra.mxu0 %v568
        %v1179 = vpop.f32.mrf.mxu0
        %v1180 = vadd.f32 %v327, %v1179
        %v1181 = vpop.f32.mrf.mxu0
        %1182 = vmatprep.mubr.f32.mxu0 0.0
        %1183 = vmatmul.mubr.f32.gmra.mxu0 %v571
        %v1184 = vpop.f32.mrf.mxu0
        %v1185 = vadd.f32 %v327, %v1184
        %v1186 = vpop.f32.mrf.mxu0
        %1187 = vmatprep.mubr.f32.mxu0 0.0
        %1188 = vmatmul.mubr.f32.gmra.mxu0 %v574
        %v1189 = vpop.f32.mrf.mxu0
        %v1190 = vadd.f32 %v327, %v1189
        %v1191 = vpop.f32.mrf.mxu0
        %1192 = vmatprep.mubr.f32.mxu0 0.0
        %1193 = vmatmul.mubr.f32.gmra.mxu0 %v577
        %v1194 = vpop.f32.mrf.mxu0
        %v1195 = vadd.f32 %v327, %v1194
        %v1196 = vpop.f32.mrf.mxu0
        %1197 = vmatprep.mubr.f32.mxu0 0.0
        %1198 = vmatmul.mubr.f32.gmra.mxu0 %v580
        %v1199 = vpop.f32.mrf.mxu0
        %v1200 = vadd.f32 %v327, %v1199
        %v1201 = vpop.f32.mrf.mxu0
        %1202 = vmatprep.mubr.f32.mxu0 0.0
        %1203 = vmatmul.mubr.f32.gmra.mxu0 %v583
        %v1204 = vpop.f32.mrf.mxu0
        %v1205 = vadd.f32 %v327, %v1204
        %v1206 = vpop.f32.mrf.mxu0
        %1207 = vmatprep.mubr.f32.mxu0 0.0
        %1208 = vmatmul.mubr.f32.gmra.mxu0 %v586
        %v1209 = vpop.f32.mrf.mxu0
        %v1210 = vadd.f32 %v327, %v1209
        %v1211 = vpop.f32.mrf.mxu0
        %1212 = vmatprep.mubr.f32.mxu0 0.0
        %1213 = vmatmul.mubr.f32.gmra.mxu0 %v589
        %v1214 = vpop.f32.mrf.mxu0
        %v1215 = vadd.f32 %v327, %v1214
        %v1216 = vpop.f32.mrf.mxu0
        %1217 = vmatprep.mubr.f32.mxu0 0.0
        %1218 = vmatmul.mubr.f32.gmra.mxu0 %v592
        %v1219 = vpop.f32.mrf.mxu0
        %v1220 = vadd.f32 %v327, %v1219
        %v1221 = vpop.f32.mrf.mxu0
        %1222 = vmatprep.mubr.f32.mxu0 0.0
        %1223 = vmatmul.mubr.f32.gmra.mxu0 %v595
        %v1224 = vpop.f32.mrf.mxu0
        %v1225 = vadd.f32 %v327, %v1224
        %v1226 = vpop.f32.mrf.mxu0
        %1227 = vmatprep.mubr.f32.mxu0 0.0
        %1228 = vmatmul.mubr.f32.gmra.mxu0 %v598
        %v1229 = vpop.f32.mrf.mxu0
        %v1230 = vadd.f32 %v327, %v1229
        %v1231 = vpop.f32.mrf.mxu0
        %1232 = vmatprep.mubr.f32.mxu0 0.0
        %1233 = vmatmul.mubr.f32.gmra.mxu0 %v601
        %v1234 = vpop.f32.mrf.mxu0
        %v1235 = vadd.f32 %v327, %v1234
        %v1236 = vpop.f32.mrf.mxu0
        %1237 = vmatprep.mubr.f32.mxu0 0.0
        %1238 = vmatmul.mubr.f32.gmra.mxu0 %v604
        %v1239 = vpop.f32.mrf.mxu0
        %v1240 = vadd.f32 %v327, %v1239
        %v1241 = vpop.f32.mrf.mxu0
        %1242 = vmatprep.mubr.f32.mxu0 0.0
        %1243 = vmatmul.mubr.f32.gmra.mxu0 %v607
        %v1244 = vpop.f32.mrf.mxu0
        %v1245 = vadd.f32 %v327, %v1244
        %v1246 = vpop.f32.mrf.mxu0
        %1247 = vmatprep.mubr.f32.mxu0 0.0
        %1248 = vmatmul.mubr.f32.gmra.mxu0 %v610
        %v1249 = vpop.f32.mrf.mxu0
        %v1250 = vadd.f32 %v327, %v1249
        %v1251 = vpop.f32.mrf.mxu0
        %1252 = vmatprep.mubr.f32.mxu0 0.0
        %1253 = vmatmul.mubr.f32.gmra.mxu0 %v613
        %v1254 = vpop.f32.mrf.mxu0
        %v1255 = vadd.f32 %v327, %v1254
        %v1256 = vpop.f32.mrf.mxu0
        %1257 = vmatprep.mubr.f32.mxu0 0.0
        %1258 = vmatmul.mubr.f32.gmra.mxu0 %v616
        %v1259 = vpop.f32.mrf.mxu0
        %v1260 = vadd.f32 %v327, %v1259
        %v1261 = vpop.f32.mrf.mxu0
        %1262 = vmatprep.mubr.f32.mxu0 0.0
        %1263 = vmatmul.mubr.f32.gmra.mxu0 %v619
        %v1264 = vpop.f32.mrf.mxu0
        %v1265 = vadd.f32 %v327, %v1264
        %v1266 = vpop.f32.mrf.mxu0
        %1267 = vmatprep.mubr.f32.mxu0 0.0
        %1268 = vmatmul.mubr.f32.gmra.mxu0 %v622
        %v1269 = vpop.f32.mrf.mxu0
        %v1270 = vadd.f32 %v327, %v1269
        %v1271 = vpop.f32.mrf.mxu0
        %1272 = vmatprep.mubr.f32.mxu0 0.0
        %1273 = vmatmul.mubr.f32.gmra.mxu0 %v625
        %v1274 = vpop.f32.mrf.mxu0
        %v1275 = vadd.f32 %v327, %v1274
        %v1276 = vpop.f32.mrf.mxu0
        %1277 = vmatprep.mubr.f32.mxu0 0.0
        %1278 = vmatmul.mubr.f32.gmra.mxu0 %v628
        %v1279 = vpop.f32.mrf.mxu0
        %v1280 = vadd.f32 %v327, %v1279
        %v1281 = vpop.f32.mrf.mxu0
        %1282 = vmatprep.mubr.f32.mxu0 0.0
        %1283 = vmatmul.mubr.f32.gmra.mxu0 %v631
        %v1284 = vpop.f32.mrf.mxu0
        %v1285 = vadd.f32 %v327, %v1284
        %v1286 = vpop.f32.mrf.mxu0
        %1287 = vmatprep.mubr.f32.mxu0 0.0
        %1288 = vmatmul.mubr.f32.gmra.mxu0 %v634
        %v1289 = vpop.f32.mrf.mxu0
        %v1290 = vadd.f32 %v327, %v1289
        %v1291 = vpop.f32.mrf.mxu0
        %1292 = vmatprep.mubr.f32.mxu0 0.0
        %1293 = vmatmul.mubr.f32.gmra.mxu0 %v637
        %v1294 = vpop.f32.mrf.mxu0
        %v1295 = vadd.f32 %v327, %v1294
        %v1296 = vpop.f32.mrf.mxu0
        %1297 = vmatprep.mubr.f32.mxu0 0.0
        %1298 = vmatmul.mubr.f32.gmra.mxu0 %v640
        %v1299 = vpop.f32.mrf.mxu0
        %v1300 = vadd.f32 %v327, %v1299
        %v1301 = vpop.f32.mrf.mxu0
        %1302 = vmatprep.mubr.f32.mxu0 0.0
        %1303 = vmatmul.mubr.f32.gmra.mxu0 %v643
        %v1304 = vpop.f32.mrf.mxu0
        %v1305 = vadd.f32 %v327, %v1304
        %v1306 = vpop.f32.mrf.mxu0
        %1307 = vmatprep.mubr.f32.mxu0 0.0
        %1308 = vmatmul.mubr.f32.gmra.mxu0 %v646
        %v1309 = vpop.f32.mrf.mxu0
        %v1310 = vadd.f32 %v327, %v1309
        %v1311 = vpop.f32.mrf.mxu0
        %1312 = vmatprep.mubr.f32.mxu0 0.0
        %1313 = vmatmul.mubr.f32.gmra.mxu0 %v649
        %v1314 = vpop.f32.mrf.mxu0
        %v1315 = vadd.f32 %v327, %v1314
        %v1316 = vpop.f32.mrf.mxu0
        %1317 = vmatprep.mubr.f32.mxu0 0.0
        %1318 = vmatmul.mubr.f32.gmra.mxu0 %v652
        %v1319 = vpop.f32.mrf.mxu0
        %v1320 = vadd.f32 %v327, %v1319
        %v1321 = vpop.f32.mrf.mxu0
        %1322 = vmatprep.mubr.f32.mxu0 0.0
        %1323 = vmatmul.mubr.f32.gmra.mxu0 %v655
        %v1324 = vpop.f32.mrf.mxu0
        %v1325 = vadd.f32 %v327, %v1324
        %v1326 = vpop.f32.mrf.mxu0
        %1327 = vmatprep.mubr.f32.mxu0 0.0
        %1328 = vmatmul.mubr.f32.gmra.mxu0 %v658
        %v1329 = vpop.f32.mrf.mxu0
        %v1330 = vadd.f32 %v327, %v1329
        %v1331 = vpop.f32.mrf.mxu0
        %1332 = vmatprep.mubr.f32.mxu0 0.0
        %1333 = vmatmul.mubr.f32.gmra.mxu0 %v661
        %v1334 = vpop.f32.mrf.mxu0
        %v1335 = vadd.f32 %v327, %v1334
        %v1336 = vpop.f32.mrf.mxu0
        %1337 = vmatprep.mubr.f32.mxu0 0.0
        %1338 = vmatmul.mubr.f32.gmra.mxu0 %v664
        %v1339 = vpop.f32.mrf.mxu0
        %v1340 = vadd.f32 %v327, %v1339
        %v1341 = vpop.f32.mrf.mxu0
        %1342 = vmatprep.mubr.f32.mxu0 0.0
        %1343 = vmatmul.mubr.f32.gmra.mxu0 %v667
        %v1344 = vpop.f32.mrf.mxu0
        %v1345 = vadd.f32 %v327, %v1344
        %v1346 = vpop.f32.mrf.mxu0
        %1347 = vmatprep.mubr.f32.mxu0 0.0
        %1348 = vmatmul.mubr.f32.gmra.mxu0 %v670
        %v1349 = vpop.f32.mrf.mxu0
        %v1350 = vadd.f32 %v327, %v1349
        %v1351 = vpop.f32.mrf.mxu0
        %1352 = vmatprep.mubr.f32.mxu0 0.0
        %1353 = vmatmul.mubr.f32.gmra.mxu0 %v673
        %v1354 = vpop.f32.mrf.mxu0
        %v1355 = vadd.f32 %v327, %v1354
        %v1356 = vpop.f32.mrf.mxu0
        %1357 = vmatprep.mubr.f32.mxu0 0.0
        %1358 = vmatmul.mubr.f32.gmra.mxu0 %v676
        %v1359 = vpop.f32.mrf.mxu0
        %v1360 = vadd.f32 %v327, %v1359
        %v1361 = vpop.f32.mrf.mxu0
        %1362 = vmatprep.mubr.f32.mxu0 0.0
        %1363 = vmatmul.mubr.f32.gmra.mxu0 %v679
        %v1364 = vpop.f32.mrf.mxu0
        %v1365 = vadd.f32 %v327, %v1364
        %v1366 = vpop.f32.mrf.mxu0
        %1367 = vmatprep.mubr.f32.mxu0 0.0
        %1368 = vmatmul.mubr.f32.gmra.mxu0 %v682
        %v1369 = vpop.f32.mrf.mxu0
        %v1370 = vadd.f32 %v327, %v1369
        %v1371 = vpop.f32.mrf.mxu0
        %1372 = vmatprep.mubr.f32.mxu0 0.0
        %1373 = vmatmul.mubr.f32.gmra.mxu0 %v685
        %v1374 = vpop.f32.mrf.mxu0
        %v1375 = vadd.f32 %v327, %v1374
        %v1376 = vpop.f32.mrf.mxu0
        %1377 = vmatprep.mubr.f32.mxu0 0.0
        %1378 = vmatmul.mubr.f32.gmra.mxu0 %v688
        %v1379 = vpop.f32.mrf.mxu0
        %v1380 = vadd.f32 %v327, %v1379
        %v1381 = vpop.f32.mrf.mxu0
        %1382 = vmatprep.mubr.f32.mxu0 0.0
        %1383 = vmatmul.mubr.f32.gmra.mxu0 %v691
        %v1384 = vpop.f32.mrf.mxu0
        %v1385 = vadd.f32 %v327, %v1384
        %v1386 = vpop.f32.mrf.mxu0
        %1387 = vmatprep.mubr.f32.mxu0 0.0
        %1388 = vmatmul.mubr.f32.gmra.mxu0 %v694
        %v1389 = vpop.f32.mrf.mxu0
        %v1390 = vadd.f32 %v327, %v1389
        %v1391 = vpop.f32.mrf.mxu0
        %1392 = vmatprep.mubr.f32.mxu0 0.0
        %1393 = vmatmul.mubr.f32.gmra.mxu0 %v697
        %v1394 = vpop.f32.mrf.mxu0
        %v1395 = vadd.f32 %v327, %v1394
        %v1396 = vpop.f32.mrf.mxu0
        %1397 = vmatprep.mubr.f32.mxu0 0.0
        %1398 = vmatmul.mubr.f32.gmra.mxu0 %v700
        %v1399 = vpop.f32.mrf.mxu0
        %v1400 = vadd.f32 %v327, %v1399
        %v1401 = vpop.f32.mrf.mxu0
        %1402 = vmatprep.mubr.f32.mxu0 0.0
        %1403 = vmatmul.mubr.f32.gmra.mxu0 %v703
        %v1404 = vpop.f32.mrf.mxu0
        %v1405 = vadd.f32 %v327, %v1404
        %v1406 = vpop.f32.mrf.mxu0
        %1407 = vmatprep.mubr.f32.mxu0 0.0
        %1408 = vmatmul.mubr.f32.gmra.mxu0 %v706
        %v1409 = vpop.f32.mrf.mxu0
        %v1410 = vadd.f32 %v327, %v1409
        %v1411 = vpop.f32.mrf.mxu0
        %1412 = vmatprep.mubr.f32.mxu0 0.0
        %1413 = vmatmul.mubr.f32.gmra.mxu0 %v709
        %v1414 = vpop.f32.mrf.mxu0
        %v1415 = vadd.f32 %v327, %v1414
        %v1416 = vpop.f32.mrf.mxu0
        %1417 = vmatprep.mubr.f32.mxu0 0.0
        %1418 = vmatmul.mubr.f32.gmra.mxu0 %v712
        %v1419 = vpop.f32.mrf.mxu0
        %v1420 = vadd.f32 %v327, %v1419
        %v1421 = vpop.f32.mrf.mxu0
        %1422 = vdwg.mxu0
        %v1423 = vmax.f32 %v785, 0.0
        %v1424 = vmax.f32 %v790, 0.0
        %v1425 = vmax.f32 %v795, 0.0
        %v1426 = vmax.f32 %v800, 0.0
        %v1427 = vmax.f32 %v805, 0.0
        %v1428 = vmax.f32 %v810, 0.0
        %v1429 = vmax.f32 %v815, 0.0
        %v1430 = vmax.f32 %v820, 0.0
        %v1431 = vmax.f32 %v825, 0.0
        %v1432 = vmax.f32 %v830, 0.0
        %v1433 = vmax.f32 %v835, 0.0
        %v1434 = vmax.f32 %v840, 0.0
        %v1435 = vmax.f32 %v845, 0.0
        %v1436 = vmax.f32 %v850, 0.0
        %v1437 = vmax.f32 %v855, 0.0
        %v1438 = vmax.f32 %v860, 0.0
        %v1439 = vmax.f32 %v865, 0.0
        %v1440 = vmax.f32 %v870, 0.0
        %v1441 = vmax.f32 %v875, 0.0
        %v1442 = vmax.f32 %v880, 0.0
        %v1443 = vmax.f32 %v885, 0.0
        %v1444 = vmax.f32 %v890, 0.0
        %v1445 = vmax.f32 %v895, 0.0
        %v1446 = vmax.f32 %v900, 0.0
        %v1447 = vmax.f32 %v905, 0.0
        %v1448 = vmax.f32 %v910, 0.0
        %v1449 = vmax.f32 %v915, 0.0
        %v1450 = vmax.f32 %v920, 0.0
        %v1451 = vmax.f32 %v925, 0.0
        %v1452 = vmax.f32 %v930, 0.0
        %v1453 = vmax.f32 %v935, 0.0
        %v1454 = vmax.f32 %v940, 0.0
        %v1455 = vmax.f32 %v945, 0.0
        %v1456 = vmax.f32 %v950, 0.0
        %v1457 = vmax.f32 %v955, 0.0
        %v1458 = vmax.f32 %v960, 0.0
        %v1459 = vmax.f32 %v965, 0.0
        %v1460 = vmax.f32 %v970, 0.0
        %v1461 = vmax.f32 %v975, 0.0
        %v1462 = vmax.f32 %v980, 0.0
        %v1463 = vmax.f32 %v985, 0.0
        %v1464 = vmax.f32 %v990, 0.0
        %v1465 = vmax.f32 %v995, 0.0
        %v1466 = vmax.f32 %v1000, 0.0
        %v1467 = vmax.f32 %v1005, 0.0
        %v1468 = vmax.f32 %v1010, 0.0
        %v1469 = vmax.f32 %v1015, 0.0
        %v1470 = vmax.f32 %v1020, 0.0
        %v1471 = vmax.f32 %v1025, 0.0
        %v1472 = vmax.f32 %v1030, 0.0
        %v1473 = vmax.f32 %v1035, 0.0
        %v1474 = vmax.f32 %v1040, 0.0
        %v1475 = vmax.f32 %v1045, 0.0
        %v1476 = vmax.f32 %v1050, 0.0
        %v1477 = vmax.f32 %v1055, 0.0
        %v1478 = vmax.f32 %v1060, 0.0
        %v1479 = vmax.f32 %v1065, 0.0
        %v1480 = vmax.f32 %v1070, 0.0
        %v1481 = vmax.f32 %v1075, 0.0
        %v1482 = vmax.f32 %v1080, 0.0
        %v1483 = vmax.f32 %v1085, 0.0
        %v1484 = vmax.f32 %v1090, 0.0
        %v1485 = vmax.f32 %v1095, 0.0
        %v1486 = vmax.f32 %v1100, 0.0
        %v1487 = vmax.f32 %v1105, 0.0
        %v1488 = vmax.f32 %v1110, 0.0
        %v1489 = vmax.f32 %v1115, 0.0
        %v1490 = vmax.f32 %v1120, 0.0
        %v1491 = vmax.f32 %v1125, 0.0
        %v1492 = vmax.f32 %v1130, 0.0
        %v1493 = vmax.f32 %v1135, 0.0
        %v1494 = vmax.f32 %v1140, 0.0
        %v1495 = vmax.f32 %v1145, 0.0
        %v1496 = vmax.f32 %v1150, 0.0
        %v1497 = vmax.f32 %v1155, 0.0
        %v1498 = vmax.f32 %v1160, 0.0
        %v1499 = vmax.f32 %v1165, 0.0
        %v1500 = vmax.f32 %v1170, 0.0
        %v1501 = vmax.f32 %v1175, 0.0
        %v1502 = vmax.f32 %v1180, 0.0
        %v1503 = vmax.f32 %v1185, 0.0
        %v1504 = vmax.f32 %v1190, 0.0
        %v1505 = vmax.f32 %v1195, 0.0
        %v1506 = vmax.f32 %v1200, 0.0
        %v1507 = vmax.f32 %v1205, 0.0
        %v1508 = vmax.f32 %v1210, 0.0
        %v1509 = vmax.f32 %v1215, 0.0
        %v1510 = vmax.f32 %v1220, 0.0
        %v1511 = vmax.f32 %v1225, 0.0
        %v1512 = vmax.f32 %v1230, 0.0
        %v1513 = vmax.f32 %v1235, 0.0
        %v1514 = vmax.f32 %v1240, 0.0
        %v1515 = vmax.f32 %v1245, 0.0
        %v1516 = vmax.f32 %v1250, 0.0
        %v1517 = vmax.f32 %v1255, 0.0
        %v1518 = vmax.f32 %v1260, 0.0
        %v1519 = vmax.f32 %v1265, 0.0
        %v1520 = vmax.f32 %v1270, 0.0
        %v1521 = vmax.f32 %v1275, 0.0
        %v1522 = vmax.f32 %v1280, 0.0
        %v1523 = vmax.f32 %v1285, 0.0
        %v1524 = vmax.f32 %v1290, 0.0
        %v1525 = vmax.f32 %v1295, 0.0
        %v1526 = vmax.f32 %v1300, 0.0
        %v1527 = vmax.f32 %v1305, 0.0
        %v1528 = vmax.f32 %v1310, 0.0
        %v1529 = vmax.f32 %v1315, 0.0
        %v1530 = vmax.f32 %v1320, 0.0
        %v1531 = vmax.f32 %v1325, 0.0
        %v1532 = vmax.f32 %v1330, 0.0
        %v1533 = vmax.f32 %v1335, 0.0
        %v1534 = vmax.f32 %v1340, 0.0
        %v1535 = vmax.f32 %v1345, 0.0
        %v1536 = vmax.f32 %v1350, 0.0
        %v1537 = vmax.f32 %v1355, 0.0
        %v1538 = vmax.f32 %v1360, 0.0
        %v1539 = vmax.f32 %v1365, 0.0
        %v1540 = vmax.f32 %v1370, 0.0
        %v1541 = vmax.f32 %v1375, 0.0
        %v1542 = vmax.f32 %v1380, 0.0
        %v1543 = vmax.f32 %v1385, 0.0
        %v1544 = vmax.f32 %v1390, 0.0
        %v1545 = vmax.f32 %v1395, 0.0
        %v1546 = vmax.f32 %v1400, 0.0
        %v1547 = vmax.f32 %v1405, 0.0
        %v1548 = vmax.f32 %v1410, 0.0
        %v1549 = vmax.f32 %v1415, 0.0
        %v1550 = vmax.f32 %v1420, 0.0
        %1551 = vst [vmem:[%s172] sm:$0xff] %v1423
        %1552 = vst [vmem:[%s172 + $0x8] sm:$0xff] %v1424
        %1553 = vst [vmem:[%s172 + $0x10] sm:$0xff] %v1425
        %1554 = vst [vmem:[%s172 + $0x18] sm:$0xff] %v1426
        %1555 = vst [vmem:[%s172 + $0x20] sm:$0xff] %v1427
        %1556 = vst [vmem:[%s172 + $0x28] sm:$0xff] %v1428
        %1557 = vst [vmem:[%s172 + $0x30] sm:$0xff] %v1429
        %1558 = vst [vmem:[%s172 + $0x38] sm:$0xff] %v1430
        %1559 = vst [vmem:[%s172 + $0x40] sm:$0xff] %v1431
        %1560 = vst [vmem:[%s172 + $0x48] sm:$0xff] %v1432
        %1561 = vst [vmem:[%s172 + $0x50] sm:$0xff] %v1433
        %1562 = vst [vmem:[%s172 + $0x58] sm:$0xff] %v1434
        %1563 = vst [vmem:[%s172 + $0x60] sm:$0xff] %v1435
        %1564 = vst [vmem:[%s172 + $0x68] sm:$0xff] %v1436
        %1565 = vst [vmem:[%s172 + $0x70] sm:$0xff] %v1437
        %1566 = vst [vmem:[%s172 + $0x78] sm:$0xff] %v1438
        %1567 = vst [vmem:[%s172 + $0x80] sm:$0xff] %v1439
        %1568 = vst [vmem:[%s172 + $0x88] sm:$0xff] %v1440
        %1569 = vst [vmem:[%s172 + $0x90] sm:$0xff] %v1441
        %1570 = vst [vmem:[%s172 + $0x98] sm:$0xff] %v1442
        %1571 = vst [vmem:[%s172 + $0xa0] sm:$0xff] %v1443
        %1572 = vst [vmem:[%s172 + $0xa8] sm:$0xff] %v1444
        %1573 = vst [vmem:[%s172 + $0xb0] sm:$0xff] %v1445
        %1574 = vst [vmem:[%s172 + $0xb8] sm:$0xff] %v1446
        %1575 = vst [vmem:[%s172 + $0xc0] sm:$0xff] %v1447
        %1576 = vst [vmem:[%s172 + $0xc8] sm:$0xff] %v1448
        %1577 = vst [vmem:[%s172 + $0xd0] sm:$0xff] %v1449
        %1578 = vst [vmem:[%s172 + $0xd8] sm:$0xff] %v1450
        %1579 = vst [vmem:[%s172 + $0xe0] sm:$0xff] %v1451
        %1580 = vst [vmem:[%s172 + $0xe8] sm:$0xff] %v1452
        %1581 = vst [vmem:[%s172 + $0xf0] sm:$0xff] %v1453
        %1582 = vst [vmem:[%s172 + $0xf8] sm:$0xff] %v1454
        %1583 = vst [vmem:[%s172 + $0x100] sm:$0xff] %v1455
        %1584 = vst [vmem:[%s172 + $0x108] sm:$0xff] %v1456
        %1585 = vst [vmem:[%s172 + $0x110] sm:$0xff] %v1457
        %1586 = vst [vmem:[%s172 + $0x118] sm:$0xff] %v1458
        %1587 = vst [vmem:[%s172 + $0x120] sm:$0xff] %v1459
        %1588 = vst [vmem:[%s172 + $0x128] sm:$0xff] %v1460
        %1589 = vst [vmem:[%s172 + $0x130] sm:$0xff] %v1461
        %1590 = vst [vmem:[%s172 + $0x138] sm:$0xff] %v1462
        %1591 = vst [vmem:[%s172 + $0x140] sm:$0xff] %v1463
        %1592 = vst [vmem:[%s172 + $0x148] sm:$0xff] %v1464
        %1593 = vst [vmem:[%s172 + $0x150] sm:$0xff] %v1465
        %1594 = vst [vmem:[%s172 + $0x158] sm:$0xff] %v1466
        %1595 = vst [vmem:[%s172 + $0x160] sm:$0xff] %v1467
        %1596 = vst [vmem:[%s172 + $0x168] sm:$0xff] %v1468
        %1597 = vst [vmem:[%s172 + $0x170] sm:$0xff] %v1469
        %1598 = vst [vmem:[%s172 + $0x178] sm:$0xff] %v1470
        %1599 = vst [vmem:[%s172 + $0x180] sm:$0xff] %v1471
        %1600 = vst [vmem:[%s172 + $0x188] sm:$0xff] %v1472
        %1601 = vst [vmem:[%s172 + $0x190] sm:$0xff] %v1473
        %1602 = vst [vmem:[%s172 + $0x198] sm:$0xff] %v1474
        %1603 = vst [vmem:[%s172 + $0x1a0] sm:$0xff] %v1475
        %1604 = vst [vmem:[%s172 + $0x1a8] sm:$0xff] %v1476
        %1605 = vst [vmem:[%s172 + $0x1b0] sm:$0xff] %v1477
        %1606 = vst [vmem:[%s172 + $0x1b8] sm:$0xff] %v1478
        %1607 = vst [vmem:[%s172 + $0x1c0] sm:$0xff] %v1479
        %1608 = vst [vmem:[%s172 + $0x1c8] sm:$0xff] %v1480
        %1609 = vst [vmem:[%s172 + $0x1d0] sm:$0xff] %v1481
        %1610 = vst [vmem:[%s172 + $0x1d8] sm:$0xff] %v1482
        %1611 = vst [vmem:[%s172 + $0x1e0] sm:$0xff] %v1483
        %1612 = vst [vmem:[%s172 + $0x1e8] sm:$0xff] %v1484
        %1613 = vst [vmem:[%s172 + $0x1f0] sm:$0xff] %v1485
        %1614 = vst [vmem:[%s172 + $0x1f8] sm:$0xff] %v1486
        %1615 = vst [vmem:[%s172 + $0x200] sm:$0xff] %v1487
        %1616 = vst [vmem:[%s172 + $0x208] sm:$0xff] %v1488
        %1617 = vst [vmem:[%s172 + $0x210] sm:$0xff] %v1489
        %1618 = vst [vmem:[%s172 + $0x218] sm:$0xff] %v1490
        %1619 = vst [vmem:[%s172 + $0x220] sm:$0xff] %v1491
        %1620 = vst [vmem:[%s172 + $0x228] sm:$0xff] %v1492
        %1621 = vst [vmem:[%s172 + $0x230] sm:$0xff] %v1493
        %1622 = vst [vmem:[%s172 + $0x238] sm:$0xff] %v1494
        %1623 = vst [vmem:[%s172 + $0x240] sm:$0xff] %v1495
        %1624 = vst [vmem:[%s172 + $0x248] sm:$0xff] %v1496
        %1625 = vst [vmem:[%s172 + $0x250] sm:$0xff] %v1497
        %1626 = vst [vmem:[%s172 + $0x258] sm:$0xff] %v1498
        %1627 = vst [vmem:[%s172 + $0x260] sm:$0xff] %v1499
        %1628 = vst [vmem:[%s172 + $0x268] sm:$0xff] %v1500
        %1629 = vst [vmem:[%s172 + $0x270] sm:$0xff] %v1501
        %1630 = vst [vmem:[%s172 + $0x278] sm:$0xff] %v1502
        %1631 = vst [vmem:[%s172 + $0x280] sm:$0xff] %v1503
        %1632 = vst [vmem:[%s172 + $0x288] sm:$0xff] %v1504
        %1633 = vst [vmem:[%s172 + $0x290] sm:$0xff] %v1505
        %1634 = vst [vmem:[%s172 + $0x298] sm:$0xff] %v1506
        %1635 = vst [vmem:[%s172 + $0x2a0] sm:$0xff] %v1507
        %1636 = vst [vmem:[%s172 + $0x2a8] sm:$0xff] %v1508
        %1637 = vst [vmem:[%s172 + $0x2b0] sm:$0xff] %v1509
        %1638 = vst [vmem:[%s172 + $0x2b8] sm:$0xff] %v1510
        %1639 = vst [vmem:[%s172 + $0x2c0] sm:$0xff] %v1511
        %1640 = vst [vmem:[%s172 + $0x2c8] sm:$0xff] %v1512
        %1641 = vst [vmem:[%s172 + $0x2d0] sm:$0xff] %v1513
        %1642 = vst [vmem:[%s172 + $0x2d8] sm:$0xff] %v1514
        %1643 = vst [vmem:[%s172 + $0x2e0] sm:$0xff] %v1515
        %1644 = vst [vmem:[%s172 + $0x2e8] sm:$0xff] %v1516
        %1645 = vst [vmem:[%s172 + $0x2f0] sm:$0xff] %v1517
        %1646 = vst [vmem:[%s172 + $0x2f8] sm:$0xff] %v1518
        %1647 = vst [vmem:[%s172 + $0x300] sm:$0xff] %v1519
        %1648 = vst [vmem:[%s172 + $0x308] sm:$0xff] %v1520
        %1649 = vst [vmem:[%s172 + $0x310] sm:$0xff] %v1521
        %1650 = vst [vmem:[%s172 + $0x318] sm:$0xff] %v1522
        %1651 = vst [vmem:[%s172 + $0x320] sm:$0xff] %v1523
        %1652 = vst [vmem:[%s172 + $0x328] sm:$0xff] %v1524
        %1653 = vst [vmem:[%s172 + $0x330] sm:$0xff] %v1525
        %1654 = vst [vmem:[%s172 + $0x338] sm:$0xff] %v1526
        %1655 = vst [vmem:[%s172 + $0x340] sm:$0xff] %v1527
        %1656 = vst [vmem:[%s172 + $0x348] sm:$0xff] %v1528
        %1657 = vst [vmem:[%s172 + $0x350] sm:$0xff] %v1529
        %1658 = vst [vmem:[%s172 + $0x358] sm:$0xff] %v1530
        %1659 = vst [vmem:[%s172 + $0x360] sm:$0xff] %v1531
        %1660 = vst [vmem:[%s172 + $0x368] sm:$0xff] %v1532
        %1661 = vst [vmem:[%s172 + $0x370] sm:$0xff] %v1533
        %1662 = vst [vmem:[%s172 + $0x378] sm:$0xff] %v1534
        %1663 = vst [vmem:[%s172 + $0x380] sm:$0xff] %v1535
        %1664 = vst [vmem:[%s172 + $0x388] sm:$0xff] %v1536
        %1665 = vst [vmem:[%s172 + $0x390] sm:$0xff] %v1537
        %1666 = vst [vmem:[%s172 + $0x398] sm:$0xff] %v1538
        %1667 = vst [vmem:[%s172 + $0x3a0] sm:$0xff] %v1539
        %1668 = vst [vmem:[%s172 + $0x3a8] sm:$0xff] %v1540
        %1669 = vst [vmem:[%s172 + $0x3b0] sm:$0xff] %v1541
        %1670 = vst [vmem:[%s172 + $0x3b8] sm:$0xff] %v1542
        %1671 = vst [vmem:[%s172 + $0x3c0] sm:$0xff] %v1543
        %1672 = vst [vmem:[%s172 + $0x3c8] sm:$0xff] %v1544
        %1673 = vst [vmem:[%s172 + $0x3d0] sm:$0xff] %v1545
        %1674 = vst [vmem:[%s172 + $0x3d8] sm:$0xff] %v1546
        %1675 = vst [vmem:[%s172 + $0x3e0] sm:$0xff] %v1547
        %1676 = vst [vmem:[%s172 + $0x3e8] sm:$0xff] %v1548
        %1677 = vst [vmem:[%s172 + $0x3f0] sm:$0xff] %v1549
        %1678 = vst [vmem:[%s172 + $0x3f8] sm:$0xff] %v1550
        %s1679 = sand.u32 %s90, 1
        %s1680 = sand.u32 %s90, 1
        %s1681 = smul.addr %s1680, 1024
        %s1682 = scalar_lea.vmem [#allocation2], %s1681
        // Predicated region
        $region33: #{cnn_forward.5} parent=31 // pred_check
          %p1683 = pneg %p100
        $region34: #{cnn_forward.5} parent=31 // pred_check_branch
          %1685 = sbr.rel (%p1683) target = $region36
        $region35: #{cnn_forward.5} parent=31 // pred_region
          %s1686 = smul.u32 128, %s14
          %s1687 = ssub.s32 553, %s1686
          %p1688 = scmp.lt.s32.totalorder %s1687, 128
          %s1689 = scalar_select %p1688, %s1687, 128
          %s1690 = smul.u32 128, %s1689
          %p1691 = scmp.ne.s32.totalorder 0, %s1690
          %s1692 = smul.addr %s1686, 8
          %s1693 = scalar_lea.vmem %s3, %s1692
          // Predicated region
          $region37: #{cnn_forward.5} parent=35 // pred_check
            %p1694 = pneg %p1691
          $region38: #{cnn_forward.5} parent=35 // pred_check_branch
            %1696 = sbr.rel (%p1694) target = $region40
          $region39: #{cnn_forward.5} parent=35 // pred_region
            // Predicated region
            $region41: #{cnn_forward.5} parent=39 // pred_check
              _
            $region42: #{cnn_forward.5} parent=39 // pred_check_branch
              %1698 = sbr.rel (0) target = $region44
            $region43: #{cnn_forward.5} parent=39 // pred_region
              // Predicated region
              $region63: #{cnn_forward.5} parent=43 // pred_check
                _
              $region64: #{cnn_forward.5} parent=43 // pred_check_branch
                %1874 = sbr.rel (0) target = $region66
              $region65: #{cnn_forward.5} parent=43 // pred_region
                %s1875 = sshrl.u32 %s1689, 6
                // While loop
                $region67: #{cnn_forward.5} parent=65 // loop_pre_header
                  _
                $region68: #{cnn_forward.5} parent=65 // loop_header
                  %s1877 = sphi 0, %s1879
                  %p1878 = scmp.ge.s32.totalorder %s1877, %s1875
                  %s1882 = sphi 0, %s2015
                  %s1883 = sphi %s1682, %s2018
                  %s1884 = sphi %s1693, %s2019
                $region69: #{cnn_forward.5} parent=65 // loop_header_branch
                  %1881 = sbr.rel (%p1878) target = $region73
                $region70: #{cnn_forward.5} parent=65 // loop_body
                  %v1885 = vld [vmem:[%s1883] sm:$0xff]
                  %1886 = vst [vmem:[%s1884] sm:$0xff] %v1885
                  %v1887 = vld [vmem:[%s1883 + $0x8] sm:$0xff]
                  %1888 = vst [vmem:[%s1884 + $0x8] sm:$0xff] %v1887
                  %v1889 = vld [vmem:[%s1883 + $0x10] sm:$0xff]
                  %1890 = vst [vmem:[%s1884 + $0x10] sm:$0xff] %v1889
                  %v1891 = vld [vmem:[%s1883 + $0x18] sm:$0xff]
                  %1892 = vst [vmem:[%s1884 + $0x18] sm:$0xff] %v1891
                  %v1893 = vld [vmem:[%s1883 + $0x20] sm:$0xff]
                  %1894 = vst [vmem:[%s1884 + $0x20] sm:$0xff] %v1893
                  %v1895 = vld [vmem:[%s1883 + $0x28] sm:$0xff]
                  %1896 = vst [vmem:[%s1884 + $0x28] sm:$0xff] %v1895
                  %v1897 = vld [vmem:[%s1883 + $0x30] sm:$0xff]
                  %1898 = vst [vmem:[%s1884 + $0x30] sm:$0xff] %v1897
                  %v1899 = vld [vmem:[%s1883 + $0x38] sm:$0xff]
                  %1900 = vst [vmem:[%s1884 + $0x38] sm:$0xff] %v1899
                  %v1901 = vld [vmem:[%s1883 + $0x40] sm:$0xff]
                  %1902 = vst [vmem:[%s1884 + $0x40] sm:$0xff] %v1901
                  %v1903 = vld [vmem:[%s1883 + $0x48] sm:$0xff]
                  %1904 = vst [vmem:[%s1884 + $0x48] sm:$0xff] %v1903
                  %v1905 = vld [vmem:[%s1883 + $0x50] sm:$0xff]
                  %1906 = vst [vmem:[%s1884 + $0x50] sm:$0xff] %v1905
                  %v1907 = vld [vmem:[%s1883 + $0x58] sm:$0xff]
                  %1908 = vst [vmem:[%s1884 + $0x58] sm:$0xff] %v1907
                  %v1909 = vld [vmem:[%s1883 + $0x60] sm:$0xff]
                  %1910 = vst [vmem:[%s1884 + $0x60] sm:$0xff] %v1909
                  %v1911 = vld [vmem:[%s1883 + $0x68] sm:$0xff]
                  %1912 = vst [vmem:[%s1884 + $0x68] sm:$0xff] %v1911
                  %v1913 = vld [vmem:[%s1883 + $0x70] sm:$0xff]
                  %1914 = vst [vmem:[%s1884 + $0x70] sm:$0xff] %v1913
                  %v1915 = vld [vmem:[%s1883 + $0x78] sm:$0xff]
                  %1916 = vst [vmem:[%s1884 + $0x78] sm:$0xff] %v1915
                  %v1917 = vld [vmem:[%s1883 + $0x80] sm:$0xff]
                  %1918 = vst [vmem:[%s1884 + $0x80] sm:$0xff] %v1917
                  %v1919 = vld [vmem:[%s1883 + $0x88] sm:$0xff]
                  %1920 = vst [vmem:[%s1884 + $0x88] sm:$0xff] %v1919
                  %v1921 = vld [vmem:[%s1883 + $0x90] sm:$0xff]
                  %1922 = vst [vmem:[%s1884 + $0x90] sm:$0xff] %v1921
                  %v1923 = vld [vmem:[%s1883 + $0x98] sm:$0xff]
                  %1924 = vst [vmem:[%s1884 + $0x98] sm:$0xff] %v1923
                  %v1925 = vld [vmem:[%s1883 + $0xa0] sm:$0xff]
                  %1926 = vst [vmem:[%s1884 + $0xa0] sm:$0xff] %v1925
                  %v1927 = vld [vmem:[%s1883 + $0xa8] sm:$0xff]
                  %1928 = vst [vmem:[%s1884 + $0xa8] sm:$0xff] %v1927
                  %v1929 = vld [vmem:[%s1883 + $0xb0] sm:$0xff]
                  %1930 = vst [vmem:[%s1884 + $0xb0] sm:$0xff] %v1929
                  %v1931 = vld [vmem:[%s1883 + $0xb8] sm:$0xff]
                  %1932 = vst [vmem:[%s1884 + $0xb8] sm:$0xff] %v1931
                  %v1933 = vld [vmem:[%s1883 + $0xc0] sm:$0xff]
                  %1934 = vst [vmem:[%s1884 + $0xc0] sm:$0xff] %v1933
                  %v1935 = vld [vmem:[%s1883 + $0xc8] sm:$0xff]
                  %1936 = vst [vmem:[%s1884 + $0xc8] sm:$0xff] %v1935
                  %v1937 = vld [vmem:[%s1883 + $0xd0] sm:$0xff]
                  %1938 = vst [vmem:[%s1884 + $0xd0] sm:$0xff] %v1937
                  %v1939 = vld [vmem:[%s1883 + $0xd8] sm:$0xff]
                  %1940 = vst [vmem:[%s1884 + $0xd8] sm:$0xff] %v1939
                  %v1941 = vld [vmem:[%s1883 + $0xe0] sm:$0xff]
                  %1942 = vst [vmem:[%s1884 + $0xe0] sm:$0xff] %v1941
                  %v1943 = vld [vmem:[%s1883 + $0xe8] sm:$0xff]
                  %1944 = vst [vmem:[%s1884 + $0xe8] sm:$0xff] %v1943
                  %v1945 = vld [vmem:[%s1883 + $0xf0] sm:$0xff]
                  %1946 = vst [vmem:[%s1884 + $0xf0] sm:$0xff] %v1945
                  %v1947 = vld [vmem:[%s1883 + $0xf8] sm:$0xff]
                  %1948 = vst [vmem:[%s1884 + $0xf8] sm:$0xff] %v1947
                  %v1949 = vld [vmem:[%s1883 + $0x100] sm:$0xff]
                  %1950 = vst [vmem:[%s1884 + $0x100] sm:$0xff] %v1949
                  %v1951 = vld [vmem:[%s1883 + $0x108] sm:$0xff]
                  %1952 = vst [vmem:[%s1884 + $0x108] sm:$0xff] %v1951
                  %v1953 = vld [vmem:[%s1883 + $0x110] sm:$0xff]
                  %1954 = vst [vmem:[%s1884 + $0x110] sm:$0xff] %v1953
                  %v1955 = vld [vmem:[%s1883 + $0x118] sm:$0xff]
                  %1956 = vst [vmem:[%s1884 + $0x118] sm:$0xff] %v1955
                  %v1957 = vld [vmem:[%s1883 + $0x120] sm:$0xff]
                  %1958 = vst [vmem:[%s1884 + $0x120] sm:$0xff] %v1957
                  %v1959 = vld [vmem:[%s1883 + $0x128] sm:$0xff]
                  %1960 = vst [vmem:[%s1884 + $0x128] sm:$0xff] %v1959
                  %v1961 = vld [vmem:[%s1883 + $0x130] sm:$0xff]
                  %1962 = vst [vmem:[%s1884 + $0x130] sm:$0xff] %v1961
                  %v1963 = vld [vmem:[%s1883 + $0x138] sm:$0xff]
                  %1964 = vst [vmem:[%s1884 + $0x138] sm:$0xff] %v1963
                  %v1965 = vld [vmem:[%s1883 + $0x140] sm:$0xff]
                  %1966 = vst [vmem:[%s1884 + $0x140] sm:$0xff] %v1965
                  %v1967 = vld [vmem:[%s1883 + $0x148] sm:$0xff]
                  %1968 = vst [vmem:[%s1884 + $0x148] sm:$0xff] %v1967
                  %v1969 = vld [vmem:[%s1883 + $0x150] sm:$0xff]
                  %1970 = vst [vmem:[%s1884 + $0x150] sm:$0xff] %v1969
                  %v1971 = vld [vmem:[%s1883 + $0x158] sm:$0xff]
                  %1972 = vst [vmem:[%s1884 + $0x158] sm:$0xff] %v1971
                  %v1973 = vld [vmem:[%s1883 + $0x160] sm:$0xff]
                  %1974 = vst [vmem:[%s1884 + $0x160] sm:$0xff] %v1973
                  %v1975 = vld [vmem:[%s1883 + $0x168] sm:$0xff]
                  %1976 = vst [vmem:[%s1884 + $0x168] sm:$0xff] %v1975
                  %v1977 = vld [vmem:[%s1883 + $0x170] sm:$0xff]
                  %1978 = vst [vmem:[%s1884 + $0x170] sm:$0xff] %v1977
                  %v1979 = vld [vmem:[%s1883 + $0x178] sm:$0xff]
                  %1980 = vst [vmem:[%s1884 + $0x178] sm:$0xff] %v1979
                  %v1981 = vld [vmem:[%s1883 + $0x180] sm:$0xff]
                  %1982 = vst [vmem:[%s1884 + $0x180] sm:$0xff] %v1981
                  %v1983 = vld [vmem:[%s1883 + $0x188] sm:$0xff]
                  %1984 = vst [vmem:[%s1884 + $0x188] sm:$0xff] %v1983
                  %v1985 = vld [vmem:[%s1883 + $0x190] sm:$0xff]
                  %1986 = vst [vmem:[%s1884 + $0x190] sm:$0xff] %v1985
                  %v1987 = vld [vmem:[%s1883 + $0x198] sm:$0xff]
                  %1988 = vst [vmem:[%s1884 + $0x198] sm:$0xff] %v1987
                  %v1989 = vld [vmem:[%s1883 + $0x1a0] sm:$0xff]
                  %1990 = vst [vmem:[%s1884 + $0x1a0] sm:$0xff] %v1989
                  %v1991 = vld [vmem:[%s1883 + $0x1a8] sm:$0xff]
                  %1992 = vst [vmem:[%s1884 + $0x1a8] sm:$0xff] %v1991
                  %v1993 = vld [vmem:[%s1883 + $0x1b0] sm:$0xff]
                  %1994 = vst [vmem:[%s1884 + $0x1b0] sm:$0xff] %v1993
                  %v1995 = vld [vmem:[%s1883 + $0x1b8] sm:$0xff]
                  %1996 = vst [vmem:[%s1884 + $0x1b8] sm:$0xff] %v1995
                  %v1997 = vld [vmem:[%s1883 + $0x1c0] sm:$0xff]
                  %1998 = vst [vmem:[%s1884 + $0x1c0] sm:$0xff] %v1997
                  %v1999 = vld [vmem:[%s1883 + $0x1c8] sm:$0xff]
                  %2000 = vst [vmem:[%s1884 + $0x1c8] sm:$0xff] %v1999
                  %v2001 = vld [vmem:[%s1883 + $0x1d0] sm:$0xff]
                  %2002 = vst [vmem:[%s1884 + $0x1d0] sm:$0xff] %v2001
                  %v2003 = vld [vmem:[%s1883 + $0x1d8] sm:$0xff]
                  %2004 = vst [vmem:[%s1884 + $0x1d8] sm:$0xff] %v2003
                  %v2005 = vld [vmem:[%s1883 + $0x1e0] sm:$0xff]
                  %2006 = vst [vmem:[%s1884 + $0x1e0] sm:$0xff] %v2005
                  %v2007 = vld [vmem:[%s1883 + $0x1e8] sm:$0xff]
                  %2008 = vst [vmem:[%s1884 + $0x1e8] sm:$0xff] %v2007
                  %v2009 = vld [vmem:[%s1883 + $0x1f0] sm:$0xff]
                  %2010 = vst [vmem:[%s1884 + $0x1f0] sm:$0xff] %v2009
                  %v2011 = vld [vmem:[%s1883 + $0x1f8] sm:$0xff]
                  %2012 = vst [vmem:[%s1884 + $0x1f8] sm:$0xff] %v2011
                  %s2013 = sadd.s32 1, %s1882
                  %p2014 = scmp.ge.s32.totalorder %s2013, %s1875
                  %s2015 = scalar_select %p2014, 0, %s2013
                  %s2016 = smul.u32 %s2015, 512
                  %s2017 = smul.u32 %s2015, 512
                  %s2018 = scalar_lea.vmem %s1682, %s2016 [#allocation2]
                  %s2019 = scalar_lea.vmem %s1693, %s2017
                $region71: #{cnn_forward.5} parent=65 // loop_footer
                  %s1879 = sadd.s32 %s1877, 1
                $region72: #{cnn_forward.5} parent=65 // loop_footer_branch
                  %1876 = sbr.rel target = $region68
                $region73: #{cnn_forward.5} parent=65 // loop_exit
                  _
                %s2020 = sshrl.u32 %s1689, 6
                %s2021 = sand.u32 %s1689, 63
                %s2022 = smul.u32 %s2020, 64
                %s2023 = smul.u32 8, %s2022
                %s2024 = scalar_lea.vmem %s1682, %s2023 [#allocation2]
                %s2025 = smul.u32 8, %s2022
                %s2026 = scalar_lea.vmem %s1693, %s2025
                // While loop
                $region74: #{cnn_forward.5} parent=65 // loop_pre_header
                  _
                $region75: #{cnn_forward.5} parent=65 // loop_header
                  %s2028 = sphi 0, %s2030
                  %p2029 = scmp.ge.s32.totalorder %s2028, %s2021
                  %s2033 = sphi 0, %s2040
                  %s2034 = sphi %s2024, %s2043
                  %s2035 = sphi %s2026, %s2044
                $region76: #{cnn_forward.5} parent=65 // loop_header_branch
                  %2032 = sbr.rel (%p2029) target = $region80
                $region77: #{cnn_forward.5} parent=65 // loop_body
                  %v2036 = vld [vmem:[%s2034] sm:$0xff]
                  %2037 = vst [vmem:[%s2035] sm:$0xff] %v2036
                  %s2038 = sadd.s32 1, %s2033
                  %p2039 = scmp.ge.s32.totalorder %s2038, %s2021
                  %s2040 = scalar_select %p2039, 0, %s2038
                  %s2041 = smul.u32 %s2040, 8
                  %s2042 = smul.u32 %s2040, 8
                  %s2043 = scalar_lea.vmem %s2024, %s2041 [#allocation2]
                  %s2044 = scalar_lea.vmem %s2026, %s2042
                $region78: #{cnn_forward.5} parent=65 // loop_footer
                  %s2030 = sadd.s32 %s2028, 1
                $region79: #{cnn_forward.5} parent=65 // loop_footer_branch
                  %2027 = sbr.rel target = $region75
                $region80: #{cnn_forward.5} parent=65 // loop_exit
                  _
              $region66: #{cnn_forward.5} parent=43 // pred_fallthru
                _
              // Predicated region
              $region81: #{cnn_forward.5} parent=43 // pred_check
                _
              $region82: #{cnn_forward.5} parent=43 // pred_check_branch
                %2046 = sbr.rel target = $region84
              $region83: #{cnn_forward.5} parent=43 // pred_region
                _
              $region84: #{cnn_forward.5} parent=43 // pred_fallthru
                _
            $region44: #{cnn_forward.5} parent=39 // pred_fallthru
              _
            // Predicated region
            $region45: #{cnn_forward.5} parent=39 // pred_check
              _
            $region46: #{cnn_forward.5} parent=39 // pred_check_branch
              %1700 = sbr.rel target = $region48
            $region47: #{cnn_forward.5} parent=39 // pred_region
              %s1702 = ssub.s32 256, 1
              %s1703 = sshrl.u32 %s1689, 6
              // While loop
              $region49: #{cnn_forward.5} parent=47 // loop_pre_header
                _
              $region50: #{cnn_forward.5} parent=47 // loop_header
                %s1705 = sphi 0, %s1707
                %p1706 = scmp.ge.s32.totalorder %s1705, %s1703
                %s1710 = sphi 0, %s1843
                %s1711 = sphi %s1682, %s1846
                %s1712 = sphi %s1693, %s1847
              $region51: #{cnn_forward.5} parent=47 // loop_header_branch
                %1709 = sbr.rel (%p1706) target = $region55
              $region52: #{cnn_forward.5} parent=47 // loop_body
                %v1713 = vld [vmem:[%s1711] sm:%s1702]
                %1714 = vst [vmem:[%s1712] sm:%s1702] %v1713
                %v1715 = vld [vmem:[%s1711 + $0x8] sm:%s1702]
                %1716 = vst [vmem:[%s1712 + $0x8] sm:%s1702] %v1715
                %v1717 = vld [vmem:[%s1711 + $0x10] sm:%s1702]
                %1718 = vst [vmem:[%s1712 + $0x10] sm:%s1702] %v1717
                %v1719 = vld [vmem:[%s1711 + $0x18] sm:%s1702]
                %1720 = vst [vmem:[%s1712 + $0x18] sm:%s1702] %v1719
                %v1721 = vld [vmem:[%s1711 + $0x20] sm:%s1702]
                %1722 = vst [vmem:[%s1712 + $0x20] sm:%s1702] %v1721
                %v1723 = vld [vmem:[%s1711 + $0x28] sm:%s1702]
                %1724 = vst [vmem:[%s1712 + $0x28] sm:%s1702] %v1723
                %v1725 = vld [vmem:[%s1711 + $0x30] sm:%s1702]
                %1726 = vst [vmem:[%s1712 + $0x30] sm:%s1702] %v1725
                %v1727 = vld [vmem:[%s1711 + $0x38] sm:%s1702]
                %1728 = vst [vmem:[%s1712 + $0x38] sm:%s1702] %v1727
                %v1729 = vld [vmem:[%s1711 + $0x40] sm:%s1702]
                %1730 = vst [vmem:[%s1712 + $0x40] sm:%s1702] %v1729
                %v1731 = vld [vmem:[%s1711 + $0x48] sm:%s1702]
                %1732 = vst [vmem:[%s1712 + $0x48] sm:%s1702] %v1731
                %v1733 = vld [vmem:[%s1711 + $0x50] sm:%s1702]
                %1734 = vst [vmem:[%s1712 + $0x50] sm:%s1702] %v1733
                %v1735 = vld [vmem:[%s1711 + $0x58] sm:%s1702]
                %1736 = vst [vmem:[%s1712 + $0x58] sm:%s1702] %v1735
                %v1737 = vld [vmem:[%s1711 + $0x60] sm:%s1702]
                %1738 = vst [vmem:[%s1712 + $0x60] sm:%s1702] %v1737
                %v1739 = vld [vmem:[%s1711 + $0x68] sm:%s1702]
                %1740 = vst [vmem:[%s1712 + $0x68] sm:%s1702] %v1739
                %v1741 = vld [vmem:[%s1711 + $0x70] sm:%s1702]
                %1742 = vst [vmem:[%s1712 + $0x70] sm:%s1702] %v1741
                %v1743 = vld [vmem:[%s1711 + $0x78] sm:%s1702]
                %1744 = vst [vmem:[%s1712 + $0x78] sm:%s1702] %v1743
                %v1745 = vld [vmem:[%s1711 + $0x80] sm:%s1702]
                %1746 = vst [vmem:[%s1712 + $0x80] sm:%s1702] %v1745
                %v1747 = vld [vmem:[%s1711 + $0x88] sm:%s1702]
                %1748 = vst [vmem:[%s1712 + $0x88] sm:%s1702] %v1747
                %v1749 = vld [vmem:[%s1711 + $0x90] sm:%s1702]
                %1750 = vst [vmem:[%s1712 + $0x90] sm:%s1702] %v1749
                %v1751 = vld [vmem:[%s1711 + $0x98] sm:%s1702]
                %1752 = vst [vmem:[%s1712 + $0x98] sm:%s1702] %v1751
                %v1753 = vld [vmem:[%s1711 + $0xa0] sm:%s1702]
                %1754 = vst [vmem:[%s1712 + $0xa0] sm:%s1702] %v1753
                %v1755 = vld [vmem:[%s1711 + $0xa8] sm:%s1702]
                %1756 = vst [vmem:[%s1712 + $0xa8] sm:%s1702] %v1755
                %v1757 = vld [vmem:[%s1711 + $0xb0] sm:%s1702]
                %1758 = vst [vmem:[%s1712 + $0xb0] sm:%s1702] %v1757
                %v1759 = vld [vmem:[%s1711 + $0xb8] sm:%s1702]
                %1760 = vst [vmem:[%s1712 + $0xb8] sm:%s1702] %v1759
                %v1761 = vld [vmem:[%s1711 + $0xc0] sm:%s1702]
                %1762 = vst [vmem:[%s1712 + $0xc0] sm:%s1702] %v1761
                %v1763 = vld [vmem:[%s1711 + $0xc8] sm:%s1702]
                %1764 = vst [vmem:[%s1712 + $0xc8] sm:%s1702] %v1763
                %v1765 = vld [vmem:[%s1711 + $0xd0] sm:%s1702]
                %1766 = vst [vmem:[%s1712 + $0xd0] sm:%s1702] %v1765
                %v1767 = vld [vmem:[%s1711 + $0xd8] sm:%s1702]
                %1768 = vst [vmem:[%s1712 + $0xd8] sm:%s1702] %v1767
                %v1769 = vld [vmem:[%s1711 + $0xe0] sm:%s1702]
                %1770 = vst [vmem:[%s1712 + $0xe0] sm:%s1702] %v1769
                %v1771 = vld [vmem:[%s1711 + $0xe8] sm:%s1702]
                %1772 = vst [vmem:[%s1712 + $0xe8] sm:%s1702] %v1771
                %v1773 = vld [vmem:[%s1711 + $0xf0] sm:%s1702]
                %1774 = vst [vmem:[%s1712 + $0xf0] sm:%s1702] %v1773
                %v1775 = vld [vmem:[%s1711 + $0xf8] sm:%s1702]
                %1776 = vst [vmem:[%s1712 + $0xf8] sm:%s1702] %v1775
                %v1777 = vld [vmem:[%s1711 + $0x100] sm:%s1702]
                %1778 = vst [vmem:[%s1712 + $0x100] sm:%s1702] %v1777
                %v1779 = vld [vmem:[%s1711 + $0x108] sm:%s1702]
                %1780 = vst [vmem:[%s1712 + $0x108] sm:%s1702] %v1779
                %v1781 = vld [vmem:[%s1711 + $0x110] sm:%s1702]
                %1782 = vst [vmem:[%s1712 + $0x110] sm:%s1702] %v1781
                %v1783 = vld [vmem:[%s1711 + $0x118] sm:%s1702]
                %1784 = vst [vmem:[%s1712 + $0x118] sm:%s1702] %v1783
                %v1785 = vld [vmem:[%s1711 + $0x120] sm:%s1702]
                %1786 = vst [vmem:[%s1712 + $0x120] sm:%s1702] %v1785
                %v1787 = vld [vmem:[%s1711 + $0x128] sm:%s1702]
                %1788 = vst [vmem:[%s1712 + $0x128] sm:%s1702] %v1787
                %v1789 = vld [vmem:[%s1711 + $0x130] sm:%s1702]
                %1790 = vst [vmem:[%s1712 + $0x130] sm:%s1702] %v1789
                %v1791 = vld [vmem:[%s1711 + $0x138] sm:%s1702]
                %1792 = vst [vmem:[%s1712 + $0x138] sm:%s1702] %v1791
                %v1793 = vld [vmem:[%s1711 + $0x140] sm:%s1702]
                %1794 = vst [vmem:[%s1712 + $0x140] sm:%s1702] %v1793
                %v1795 = vld [vmem:[%s1711 + $0x148] sm:%s1702]
                %1796 = vst [vmem:[%s1712 + $0x148] sm:%s1702] %v1795
                %v1797 = vld [vmem:[%s1711 + $0x150] sm:%s1702]
                %1798 = vst [vmem:[%s1712 + $0x150] sm:%s1702] %v1797
                %v1799 = vld [vmem:[%s1711 + $0x158] sm:%s1702]
                %1800 = vst [vmem:[%s1712 + $0x158] sm:%s1702] %v1799
                %v1801 = vld [vmem:[%s1711 + $0x160] sm:%s1702]
                %1802 = vst [vmem:[%s1712 + $0x160] sm:%s1702] %v1801
                %v1803 = vld [vmem:[%s1711 + $0x168] sm:%s1702]
                %1804 = vst [vmem:[%s1712 + $0x168] sm:%s1702] %v1803
                %v1805 = vld [vmem:[%s1711 + $0x170] sm:%s1702]
                %1806 = vst [vmem:[%s1712 + $0x170] sm:%s1702] %v1805
                %v1807 = vld [vmem:[%s1711 + $0x178] sm:%s1702]
                %1808 = vst [vmem:[%s1712 + $0x178] sm:%s1702] %v1807
                %v1809 = vld [vmem:[%s1711 + $0x180] sm:%s1702]
                %1810 = vst [vmem:[%s1712 + $0x180] sm:%s1702] %v1809
                %v1811 = vld [vmem:[%s1711 + $0x188] sm:%s1702]
                %1812 = vst [vmem:[%s1712 + $0x188] sm:%s1702] %v1811
                %v1813 = vld [vmem:[%s1711 + $0x190] sm:%s1702]
                %1814 = vst [vmem:[%s1712 + $0x190] sm:%s1702] %v1813
                %v1815 = vld [vmem:[%s1711 + $0x198] sm:%s1702]
                %1816 = vst [vmem:[%s1712 + $0x198] sm:%s1702] %v1815
                %v1817 = vld [vmem:[%s1711 + $0x1a0] sm:%s1702]
                %1818 = vst [vmem:[%s1712 + $0x1a0] sm:%s1702] %v1817
                %v1819 = vld [vmem:[%s1711 + $0x1a8] sm:%s1702]
                %1820 = vst [vmem:[%s1712 + $0x1a8] sm:%s1702] %v1819
                %v1821 = vld [vmem:[%s1711 + $0x1b0] sm:%s1702]
                %1822 = vst [vmem:[%s1712 + $0x1b0] sm:%s1702] %v1821
                %v1823 = vld [vmem:[%s1711 + $0x1b8] sm:%s1702]
                %1824 = vst [vmem:[%s1712 + $0x1b8] sm:%s1702] %v1823
                %v1825 = vld [vmem:[%s1711 + $0x1c0] sm:%s1702]
                %1826 = vst [vmem:[%s1712 + $0x1c0] sm:%s1702] %v1825
                %v1827 = vld [vmem:[%s1711 + $0x1c8] sm:%s1702]
                %1828 = vst [vmem:[%s1712 + $0x1c8] sm:%s1702] %v1827
                %v1829 = vld [vmem:[%s1711 + $0x1d0] sm:%s1702]
                %1830 = vst [vmem:[%s1712 + $0x1d0] sm:%s1702] %v1829
                %v1831 = vld [vmem:[%s1711 + $0x1d8] sm:%s1702]
                %1832 = vst [vmem:[%s1712 + $0x1d8] sm:%s1702] %v1831
                %v1833 = vld [vmem:[%s1711 + $0x1e0] sm:%s1702]
                %1834 = vst [vmem:[%s1712 + $0x1e0] sm:%s1702] %v1833
                %v1835 = vld [vmem:[%s1711 + $0x1e8] sm:%s1702]
                %1836 = vst [vmem:[%s1712 + $0x1e8] sm:%s1702] %v1835
                %v1837 = vld [vmem:[%s1711 + $0x1f0] sm:%s1702]
                %1838 = vst [vmem:[%s1712 + $0x1f0] sm:%s1702] %v1837
                %v1839 = vld [vmem:[%s1711 + $0x1f8] sm:%s1702]
                %1840 = vst [vmem:[%s1712 + $0x1f8] sm:%s1702] %v1839
                %s1841 = sadd.s32 1, %s1710
                %p1842 = scmp.ge.s32.totalorder %s1841, %s1703
                %s1843 = scalar_select %p1842, 0, %s1841
                %s1844 = smul.u32 %s1843, 512
                %s1845 = smul.u32 %s1843, 512
                %s1846 = scalar_lea.vmem %s1682, %s1844 [#allocation2]
                %s1847 = scalar_lea.vmem %s1693, %s1845
              $region53: #{cnn_forward.5} parent=47 // loop_footer
                %s1707 = sadd.s32 %s1705, 1
              $region54: #{cnn_forward.5} parent=47 // loop_footer_branch
                %1704 = sbr.rel target = $region50
              $region55: #{cnn_forward.5} parent=47 // loop_exit
                _
              %s1848 = sshrl.u32 %s1689, 6
              %s1849 = sand.u32 %s1689, 63
              %s1850 = smul.u32 %s1848, 64
              %s1851 = smul.u32 8, %s1850
              %s1852 = scalar_lea.vmem %s1682, %s1851 [#allocation2]
              %s1853 = smul.u32 8, %s1850
              %s1854 = scalar_lea.vmem %s1693, %s1853
              // While loop
              $region56: #{cnn_forward.5} parent=47 // loop_pre_header
                _
              $region57: #{cnn_forward.5} parent=47 // loop_header
                %s1856 = sphi 0, %s1858
                %p1857 = scmp.ge.s32.totalorder %s1856, %s1849
                %s1861 = sphi 0, %s1868
                %s1862 = sphi %s1852, %s1871
                %s1863 = sphi %s1854, %s1872
              $region58: #{cnn_forward.5} parent=47 // loop_header_branch
                %1860 = sbr.rel (%p1857) target = $region62
              $region59: #{cnn_forward.5} parent=47 // loop_body
                %v1864 = vld [vmem:[%s1862] sm:%s1702]
                %1865 = vst [vmem:[%s1863] sm:%s1702] %v1864
                %s1866 = sadd.s32 1, %s1861
                %p1867 = scmp.ge.s32.totalorder %s1866, %s1849
                %s1868 = scalar_select %p1867, 0, %s1866
                %s1869 = smul.u32 %s1868, 8
                %s1870 = smul.u32 %s1868, 8
                %s1871 = scalar_lea.vmem %s1852, %s1869 [#allocation2]
                %s1872 = scalar_lea.vmem %s1854, %s1870
              $region60: #{cnn_forward.5} parent=47 // loop_footer
                %s1858 = sadd.s32 %s1856, 1
              $region61: #{cnn_forward.5} parent=47 // loop_footer_branch
                %1855 = sbr.rel target = $region57
              $region62: #{cnn_forward.5} parent=47 // loop_exit
                _
            $region48: #{cnn_forward.5} parent=39 // pred_fallthru
              _
          $region40: #{cnn_forward.5} parent=35 // pred_fallthru
            _
          %2047 = vnop
        $region36: #{cnn_forward.5} parent=31 // pred_fallthru
          _
      $region32: #{cnn_forward.5} parent=5 // pred_fallthru
        _
      %p2048 = scmp.le.s32.totalorder 2, %s9
      // Predicated region
      $region85: #{cnn_forward.5} parent=5 // pred_check
        %p2049 = pneg %p2048
      $region86: #{cnn_forward.5} parent=5 // pred_check_branch
        %2051 = sbr.rel (%p2049) target = $region88
      $region87: #{cnn_forward.5} parent=5 // pred_region
        %s2052 = ssub.s32 %s9, 2
        // Predicated region
        $region89: #{cnn_forward.5} parent=87 // pred_check
          %p2053 = pneg %p106
        $region90: #{cnn_forward.5} parent=87 // pred_check_branch
          %2055 = sbr.rel (%p2053) target = $region92
        $region91: #{cnn_forward.5} parent=87 // pred_region
          %s2056 = sand.u32 %s91, 1
          %s2057 = sand.u32 %s91, 1
          %s2058 = smul.addr %s2057, 1024
          %s2059 = scalar_lea.vmem [#allocation2], %s2058
        $region92: #{cnn_forward.5} parent=87 // pred_fallthru
          _
      $region88: #{cnn_forward.5} parent=5 // pred_fallthru
        _
    $region6: #{cnn_forward.5} parent=1 // loop_footer
      %s13 = sadd.s32 1, %s9
    $region7: #{cnn_forward.5} parent=1 // loop_footer_branch
      %8 = sbr.rel target = $region3
    $region8: #{cnn_forward.5} parent=1 // loop_exit
      _

// kernel: cnn_forward.6
$region0: #{cnn_forward.6}
  #allocation0 [shape = 'u32[]', space=smem, size = 0x4, offset = 0x4, fixed_abs, tag = 'smem constant byte address 0x4 - core index']
  #allocation1 [shape = 'u32[144,128]{1,0:T(1,128)}', space=vmem, size = 0x12000, scoped, tag = 'internal scratch']
  %s0 = inlined_call_operand.vmem [shape: f32[46,184], index: 0, kind: input, shape index: {}]
  %s1 = inlined_call_operand.vmem [shape: f32[46,184], index: 1, kind: input, shape index: {}]
  %s2 = inlined_call_operand.vmem [shape: f32[46,184], index: 2, kind: input, shape index: {}]
  %s3 = inlined_call_operand.vmem [shape: f32[46,184], index: 3, kind: input, shape index: {}]
  %s4 = inlined_call_operand.vmem [shape: f32[46,184], index: 4, kind: input, shape index: {}]
  %s5 = inlined_call_operand.vmem [shape: f32[46,184], index: 5, kind: input, shape index: {}]
  %s6 = inlined_call_operand.vmem [shape: f32[46,184], index: 6, kind: input, shape index: {}]
  %s7 = inlined_call_operand.vmem [shape: f32[46,184], index: 7, kind: input, shape index: {}]
  %s8 = inlined_call_operand.vmem [shape: f32[46,184], index: 8, kind: input, shape index: {}]
  %s9 = inlined_call_operand.vmem [shape: f32[46,184], index: 9, kind: output, shape index: {}]
  %s10 = sld [smem:[#allocation0]]
  $region46: #{cnn_forward.6} parent=0
    _
  %s12 = ssub.s32 1, %s10
  %s13 = scalar_select 0, %s12, %s10
  // Predicated region
  $region2: #{cnn_forward.6} parent=0 // pred_check
    _
  $region3: #{cnn_forward.6} parent=0 // pred_check_branch
    %15 = sbr.rel (0) target = $region5
  $region4: #{cnn_forward.6} parent=0 // pred_region
    _
  $region5: #{cnn_forward.6} parent=0 // pred_fallthru
    _
  // Predicated region
  $region6: #{cnn_forward.6} parent=0 // pred_check
    _
  $region7: #{cnn_forward.6} parent=0 // pred_check_branch
    %17 = sbr.rel (0) target = $region9
  $region8: #{cnn_forward.6} parent=0 // pred_region
    _
  $region9: #{cnn_forward.6} parent=0 // pred_fallthru
    _
  // Predicated region
  $region10: #{cnn_forward.6} parent=0 // pred_check
    _
  $region11: #{cnn_forward.6} parent=0 // pred_check_branch
    %19 = sbr.rel (0) target = $region13
  $region12: #{cnn_forward.6} parent=0 // pred_region
    _
  $region13: #{cnn_forward.6} parent=0 // pred_fallthru
    _
  // Predicated region
  $region14: #{cnn_forward.6} parent=0 // pred_check
    _
  $region15: #{cnn_forward.6} parent=0 // pred_check_branch
    %21 = sbr.rel (0) target = $region17
  $region16: #{cnn_forward.6} parent=0 // pred_region
    _
  $region17: #{cnn_forward.6} parent=0 // pred_fallthru
    _
  // Predicated region
  $region18: #{cnn_forward.6} parent=0 // pred_check
    _
  $region19: #{cnn_forward.6} parent=0 // pred_check_branch
    %23 = sbr.rel (0) target = $region21
  $region20: #{cnn_forward.6} parent=0 // pred_region
    _
  $region21: #{cnn_forward.6} parent=0 // pred_fallthru
    _
  // Predicated region
  $region22: #{cnn_forward.6} parent=0 // pred_check
    _
  $region23: #{cnn_forward.6} parent=0 // pred_check_branch
    %25 = sbr.rel (0) target = $region25
  $region24: #{cnn_forward.6} parent=0 // pred_region
    _
  $region25: #{cnn_forward.6} parent=0 // pred_fallthru
    _
  // Predicated region
  $region26: #{cnn_forward.6} parent=0 // pred_check
    _
  $region27: #{cnn_forward.6} parent=0 // pred_check_branch
    %27 = sbr.rel (0) target = $region29
  $region28: #{cnn_forward.6} parent=0 // pred_region
    _
  $region29: #{cnn_forward.6} parent=0 // pred_fallthru
    _
  // Predicated region
  $region30: #{cnn_forward.6} parent=0 // pred_check
    _
  $region31: #{cnn_forward.6} parent=0 // pred_check_branch
    %29 = sbr.rel (0) target = $region33
  $region32: #{cnn_forward.6} parent=0 // pred_region
    _
  $region33: #{cnn_forward.6} parent=0 // pred_fallthru
    _
  // Predicated region
  $region34: #{cnn_forward.6} parent=0 // pred_check
    _
  $region35: #{cnn_forward.6} parent=0 // pred_check_branch
    %31 = sbr.rel (0) target = $region37
  $region36: #{cnn_forward.6} parent=0 // pred_region
    _
  $region37: #{cnn_forward.6} parent=0 // pred_fallthru
    _
  %v32 = vld [vmem:[%s0] sm:$0xff]
  %v33 = vld [vmem:[%s0 + $0x8] sm:$0xff]
  %v34 = vld [vmem:[%s0 + $0x10] sm:$0xff]
  %v35 = vld [vmem:[%s0 + $0x18] sm:$0xff]
  %v36 = vld [vmem:[%s0 + $0x20] sm:$0xff]
  %v37 = vld [vmem:[%s0 + $0x28] sm:$0xff]
  %v38 = vld [vmem:[%s0 + $0x30] sm:$0xff]
  %v39 = vld [vmem:[%s0 + $0x38] sm:$0xff]
  %v40 = vld [vmem:[%s0 + $0x40] sm:$0xff]
  %v41 = vld [vmem:[%s0 + $0x48] sm:$0xff]
  %v42 = vld [vmem:[%s0 + $0x50] sm:$0x3f]
  %v43 = vld [vmem:[%s0 + $0x58] sm:$0x3f]
  %v44 = vld [vmem:[%s1] sm:$0xff]
  %v45 = vld [vmem:[%s1 + $0x8] sm:$0xff]
  %v46 = vld [vmem:[%s1 + $0x10] sm:$0xff]
  %v47 = vld [vmem:[%s1 + $0x18] sm:$0xff]
  %v48 = vld [vmem:[%s1 + $0x20] sm:$0xff]
  %v49 = vld [vmem:[%s1 + $0x28] sm:$0xff]
  %v50 = vld [vmem:[%s1 + $0x30] sm:$0xff]
  %v51 = vld [vmem:[%s1 + $0x38] sm:$0xff]
  %v52 = vld [vmem:[%s1 + $0x40] sm:$0xff]
  %v53 = vld [vmem:[%s1 + $0x48] sm:$0xff]
  %v54 = vld [vmem:[%s1 + $0x50] sm:$0x3f]
  %v55 = vld [vmem:[%s1 + $0x58] sm:$0x3f]
  %v56 = vmax.f32 %v32, %v44
  %v57 = vmax.f32 %v33, %v45
  %v58 = vmax.f32 %v34, %v46
  %v59 = vmax.f32 %v35, %v47
  %v60 = vmax.f32 %v36, %v48
  %v61 = vmax.f32 %v37, %v49
  %v62 = vmax.f32 %v38, %v50
  %v63 = vmax.f32 %v39, %v51
  %v64 = vmax.f32 %v40, %v52
  %v65 = vmax.f32 %v41, %v53
  %v66 = vmax.f32 %v42, %v54
  %v67 = vmax.f32 %v43, %v55
  %v68 = vld [vmem:[%s2] sm:$0xff]
  %v69 = vld [vmem:[%s2 + $0x8] sm:$0xff]
  %v70 = vld [vmem:[%s2 + $0x10] sm:$0xff]
  %v71 = vld [vmem:[%s2 + $0x18] sm:$0xff]
  %v72 = vld [vmem:[%s2 + $0x20] sm:$0xff]
  %v73 = vld [vmem:[%s2 + $0x28] sm:$0xff]
  %v74 = vld [vmem:[%s2 + $0x30] sm:$0xff]
  %v75 = vld [vmem:[%s2 + $0x38] sm:$0xff]
  %v76 = vld [vmem:[%s2 + $0x40] sm:$0xff]
  %v77 = vld [vmem:[%s2 + $0x48] sm:$0xff]
  %v78 = vld [vmem:[%s2 + $0x50] sm:$0x3f]
  %v79 = vld [vmem:[%s2 + $0x58] sm:$0x3f]
  %v80 = vmax.f32 %v56, %v68
  %v81 = vmax.f32 %v57, %v69
  %v82 = vmax.f32 %v58, %v70
  %v83 = vmax.f32 %v59, %v71
  %v84 = vmax.f32 %v60, %v72
  %v85 = vmax.f32 %v61, %v73
  %v86 = vmax.f32 %v62, %v74
  %v87 = vmax.f32 %v63, %v75
  %v88 = vmax.f32 %v64, %v76
  %v89 = vmax.f32 %v65, %v77
  %v90 = vmax.f32 %v66, %v78
  %v91 = vmax.f32 %v67, %v79
  %v92 = vld [vmem:[%s3] sm:$0xff]
  %v93 = vld [vmem:[%s3 + $0x8] sm:$0xff]
  %v94 = vld [vmem:[%s3 + $0x10] sm:$0xff]
  %v95 = vld [vmem:[%s3 + $0x18] sm:$0xff]
  %v96 = vld [vmem:[%s3 + $0x20] sm:$0xff]
  %v97 = vld [vmem:[%s3 + $0x28] sm:$0xff]
  %v98 = vld [vmem:[%s3 + $0x30] sm:$0xff]
  %v99 = vld [vmem:[%s3 + $0x38] sm:$0xff]
  %v100 = vld [vmem:[%s3 + $0x40] sm:$0xff]
  %v101 = vld [vmem:[%s3 + $0x48] sm:$0xff]
  %v102 = vld [vmem:[%s3 + $0x50] sm:$0x3f]
  %v103 = vld [vmem:[%s3 + $0x58] sm:$0x3f]
  %v104 = vmax.f32 %v80, %v92
  %v105 = vmax.f32 %v81, %v93
  %v106 = vmax.f32 %v82, %v94
  %v107 = vmax.f32 %v83, %v95
  %v108 = vmax.f32 %v84, %v96
  %v109 = vmax.f32 %v85, %v97
  %v110 = vmax.f32 %v86, %v98
  %v111 = vmax.f32 %v87, %v99
  %v112 = vmax.f32 %v88, %v100
  %v113 = vmax.f32 %v89, %v101
  %v114 = vmax.f32 %v90, %v102
  %v115 = vmax.f32 %v91, %v103
  %v116 = vld [vmem:[%s4] sm:$0xff]
  %v117 = vld [vmem:[%s4 + $0x8] sm:$0xff]
  %v118 = vld [vmem:[%s4 + $0x10] sm:$0xff]
  %v119 = vld [vmem:[%s4 + $0x18] sm:$0xff]
  %v120 = vld [vmem:[%s4 + $0x20] sm:$0xff]
  %v121 = vld [vmem:[%s4 + $0x28] sm:$0xff]
  %v122 = vld [vmem:[%s4 + $0x30] sm:$0xff]
  %v123 = vld [vmem:[%s4 + $0x38] sm:$0xff]
  %v124 = vld [vmem:[%s4 + $0x40] sm:$0xff]
  %v125 = vld [vmem:[%s4 + $0x48] sm:$0xff]
  %v126 = vld [vmem:[%s4 + $0x50] sm:$0x3f]
  %v127 = vld [vmem:[%s4 + $0x58] sm:$0x3f]
  %v128 = vmax.f32 %v104, %v116
  %v129 = vmax.f32 %v105, %v117
  %v130 = vmax.f32 %v106, %v118
  %v131 = vmax.f32 %v107, %v119
  %v132 = vmax.f32 %v108, %v120
  %v133 = vmax.f32 %v109, %v121
  %v134 = vmax.f32 %v110, %v122
  %v135 = vmax.f32 %v111, %v123
  %v136 = vmax.f32 %v112, %v124
  %v137 = vmax.f32 %v113, %v125
  %v138 = vmax.f32 %v114, %v126
  %v139 = vmax.f32 %v115, %v127
  %v140 = vld [vmem:[%s5] sm:$0xff]
  %v141 = vld [vmem:[%s5 + $0x8] sm:$0xff]
  %v142 = vld [vmem:[%s5 + $0x10] sm:$0xff]
  %v143 = vld [vmem:[%s5 + $0x18] sm:$0xff]
  %v144 = vld [vmem:[%s5 + $0x20] sm:$0xff]
  %v145 = vld [vmem:[%s5 + $0x28] sm:$0xff]
  %v146 = vld [vmem:[%s5 + $0x30] sm:$0xff]
  %v147 = vld [vmem:[%s5 + $0x38] sm:$0xff]
  %v148 = vld [vmem:[%s5 + $0x40] sm:$0xff]
  %v149 = vld [vmem:[%s5 + $0x48] sm:$0xff]
  %v150 = vld [vmem:[%s5 + $0x50] sm:$0x3f]
  %v151 = vld [vmem:[%s5 + $0x58] sm:$0x3f]
  %v152 = vmax.f32 %v128, %v140
  %v153 = vmax.f32 %v129, %v141
  %v154 = vmax.f32 %v130, %v142
  %v155 = vmax.f32 %v131, %v143
  %v156 = vmax.f32 %v132, %v144
  %v157 = vmax.f32 %v133, %v145
  %v158 = vmax.f32 %v134, %v146
  %v159 = vmax.f32 %v135, %v147
  %v160 = vmax.f32 %v136, %v148
  %v161 = vmax.f32 %v137, %v149
  %v162 = vmax.f32 %v138, %v150
  %v163 = vmax.f32 %v139, %v151
  %v164 = vld [vmem:[%s6] sm:$0xff]
  %v165 = vld [vmem:[%s6 + $0x8] sm:$0xff]
  %v166 = vld [vmem:[%s6 + $0x10] sm:$0xff]
  %v167 = vld [vmem:[%s6 + $0x18] sm:$0xff]
  %v168 = vld [vmem:[%s6 + $0x20] sm:$0xff]
  %v169 = vld [vmem:[%s6 + $0x28] sm:$0xff]
  %v170 = vld [vmem:[%s6 + $0x30] sm:$0xff]
  %v171 = vld [vmem:[%s6 + $0x38] sm:$0xff]
  %v172 = vld [vmem:[%s6 + $0x40] sm:$0xff]
  %v173 = vld [vmem:[%s6 + $0x48] sm:$0xff]
  %v174 = vld [vmem:[%s6 + $0x50] sm:$0x3f]
  %v175 = vld [vmem:[%s6 + $0x58] sm:$0x3f]
  %v176 = vmax.f32 %v152, %v164
  %v177 = vmax.f32 %v153, %v165
  %v178 = vmax.f32 %v154, %v166
  %v179 = vmax.f32 %v155, %v167
  %v180 = vmax.f32 %v156, %v168
  %v181 = vmax.f32 %v157, %v169
  %v182 = vmax.f32 %v158, %v170
  %v183 = vmax.f32 %v159, %v171
  %v184 = vmax.f32 %v160, %v172
  %v185 = vmax.f32 %v161, %v173
  %v186 = vmax.f32 %v162, %v174
  %v187 = vmax.f32 %v163, %v175
  %v188 = vld [vmem:[%s7] sm:$0xff]
  %v189 = vld [vmem:[%s7 + $0x8] sm:$0xff]
  %v190 = vld [vmem:[%s7 + $0x10] sm:$0xff]
  %v191 = vld [vmem:[%s7 + $0x18] sm:$0xff]
  %v192 = vld [vmem:[%s7 + $0x20] sm:$0xff]
  %v193 = vld [vmem:[%s7 + $0x28] sm:$0xff]
  %v194 = vld [vmem:[%s7 + $0x30] sm:$0xff]
  %v195 = vld [vmem:[%s7 + $0x38] sm:$0xff]
  %v196 = vld [vmem:[%s7 + $0x40] sm:$0xff]
  %v197 = vld [vmem:[%s7 + $0x48] sm:$0xff]
  %v198 = vld [vmem:[%s7 + $0x50] sm:$0x3f]
  %v199 = vld [vmem:[%s7 + $0x58] sm:$0x3f]
  %v200 = vmax.f32 %v176, %v188
  %v201 = vmax.f32 %v177, %v189
  %v202 = vmax.f32 %v178, %v190
  %v203 = vmax.f32 %v179, %v191
  %v204 = vmax.f32 %v180, %v192
  %v205 = vmax.f32 %v181, %v193
  %v206 = vmax.f32 %v182, %v194
  %v207 = vmax.f32 %v183, %v195
  %v208 = vmax.f32 %v184, %v196
  %v209 = vmax.f32 %v185, %v197
  %v210 = vmax.f32 %v186, %v198
  %v211 = vmax.f32 %v187, %v199
  %v212 = vld [vmem:[%s8] sm:$0xff]
  %v213 = vld [vmem:[%s8 + $0x8] sm:$0xff]
  %v214 = vld [vmem:[%s8 + $0x10] sm:$0xff]
  %v215 = vld [vmem:[%s8 + $0x18] sm:$0xff]
  %v216 = vld [vmem:[%s8 + $0x20] sm:$0xff]
  %v217 = vld [vmem:[%s8 + $0x28] sm:$0xff]
  %v218 = vld [vmem:[%s8 + $0x30] sm:$0xff]
  %v219 = vld [vmem:[%s8 + $0x38] sm:$0xff]
  %v220 = vld [vmem:[%s8 + $0x40] sm:$0xff]
  %v221 = vld [vmem:[%s8 + $0x48] sm:$0xff]
  %v222 = vld [vmem:[%s8 + $0x50] sm:$0x3f]
  %v223 = vld [vmem:[%s8 + $0x58] sm:$0x3f]
  %v224 = vmax.f32 %v200, %v212
  %v225 = vmax.f32 %v201, %v213
  %v226 = vmax.f32 %v202, %v214
  %v227 = vmax.f32 %v203, %v215
  %v228 = vmax.f32 %v204, %v216
  %v229 = vmax.f32 %v205, %v217
  %v230 = vmax.f32 %v206, %v218
  %v231 = vmax.f32 %v207, %v219
  %v232 = vmax.f32 %v208, %v220
  %v233 = vmax.f32 %v209, %v221
  %v234 = vmax.f32 %v210, %v222
  %v235 = vmax.f32 %v211, %v223
  %236 = vst [vmem:[%s9] sm:$0xff] %v224
  %vm237 = vcmask 457728
  %238 = vst.msk [vmem:[%s9 + $0x8] sm:$0xff] %vm237, %v225
  %239 = vst [vmem:[%s9 + $0x10] sm:$0xff] %v226
  %240 = vst.msk [vmem:[%s9 + $0x18] sm:$0xff] %vm237, %v227
  %241 = vst [vmem:[%s9 + $0x20] sm:$0xff] %v228
  %242 = vst.msk [vmem:[%s9 + $0x28] sm:$0xff] %vm237, %v229
  %243 = vst [vmem:[%s9 + $0x30] sm:$0xff] %v230
  %244 = vst.msk [vmem:[%s9 + $0x38] sm:$0xff] %vm237, %v231
  %245 = vst [vmem:[%s9 + $0x40] sm:$0xff] %v232
  %246 = vst.msk [vmem:[%s9 + $0x48] sm:$0xff] %vm237, %v233
  %247 = vst [vmem:[%s9 + $0x50] sm:$0x3f] %v234
  %vm248 = vcmask 455680
  %249 = vst.msk [vmem:[%s9 + $0x58] sm:$0x3f] %vm248, %v235
  // Predicated region
  $region38: #{cnn_forward.6} parent=0 // pred_check
    _
  $region39: #{cnn_forward.6} parent=0 // pred_check_branch
    %251 = sbr.rel (0) target = $region41
  $region40: #{cnn_forward.6} parent=0 // pred_region
    _
  $region41: #{cnn_forward.6} parent=0 // pred_fallthru
    _
  // Predicated region
  $region42: #{cnn_forward.6} parent=0 // pred_check
    _
  $region43: #{cnn_forward.6} parent=0 // pred_check_branch
    %253 = sbr.rel (0) target = $region45
  $region44: #{cnn_forward.6} parent=0 // pred_region
    _
  $region45: #{cnn_forward.6} parent=0 // pred_fallthru
    _

// kernel: cnn_forward.7
$region0: #{cnn_forward.7}
  #allocation0 [shape = 'u32[]', space=smem, size = 0x4, offset = 0x4, fixed_abs, tag = 'smem constant byte address 0x4 - core index']
  #allocation1 [shape = 'u32[144,128]{1,0:T(1,128)}', space=vmem, size = 0x12000, scoped, tag = 'internal scratch']
  %s0 = inlined_call_operand.vmem [shape: f32[242,72], index: 0, kind: input, shape index: {}]
  %s1 = inlined_call_operand.vmem [shape: f32[72,128], index: 1, kind: input, shape index: {}]
  %s2 = inlined_call_operand.vmem [shape: f32[1,128], index: 2, kind: input, shape index: {}]
  %s3 = inlined_call_operand.vmem [shape: f32[242,128], index: 3, kind: output, shape index: {}]
  %s4 = sld [smem:[#allocation0]]
  $region93: #{cnn_forward.7} parent=0
    _
  %s6 = ssub.s32 1, %s4
  %s7 = scalar_select 0, %s6, %s4
  $region1: #{cnn_forward.7} parent=0
    #allocation2 [shape = 'u8[131072]{0}', space=vmem, size = 0x20000, scoped, tag = 'output window, operand 0']
    loop: start=0, step=1, limit=4
    $region2: #{cnn_forward.7} parent=1 // loop_pre_header
      _
    $region3: #{cnn_forward.7} parent=1 // loop_header
      %s9 = sphi 0, %s13
      %p10 = scmp.ge.s32.totalorder %s9, 4
      %s19 = sphi 0, %s21
      %s22 = sphi 0, %s19
      %s23 = sphi 0, %s22
      %s39 = sphi 0, %s23
      %s43 = sphi 0, %s43
      %s45 = sphi 0, %s43
      %s46 = sphi 0, %s45
      %s60 = sphi 0, %s46
      %s64 = sphi 0, %s64
      %s66 = sphi 0, %s64
      %s67 = sphi 0, %s66
      %s81 = sphi 0, %s67
      %s87 = sphi 0, %s89
      %s90 = sphi 0, %s87
      %s91 = sphi 0, %s90
      %s107 = sphi 0, %s91
    $region4: #{cnn_forward.7} parent=1 // loop_header_branch
      %12 = sbr.rel (%p10) target = $region8
    $region5: #{cnn_forward.7} parent=1 // loop_body
      %s14 = ssub.s32 %s9, 1
      %s15 = ssub.s32 %s9, 2
      %s16 = sadd.s32 %s9, 1
      %s17 = ssub.s32 %s9, %s16
      %p18 = scmp.eq.s32.totalorder %s17, 0
      %s20 = sadd.s32 %s19, 1
      %s21 = scalar_select %p18, %s19, %s20
      %p24 = pneg %p18
      %p25 = scmp.eq.s32.totalorder %s9, 1
      %p26 = por %p24, %p25
      %p27 = scmp.ne.s32.totalorder %s19, %s22
      %p28 = scmp.eq.s32.totalorder %s9, 0
      %p29 = por %p27, %p28
      %p30 = scmp.ne.s32.totalorder %s19, %s22
      %p31 = scmp.eq.s32.totalorder %s14, 1
      %p32 = por %p30, %p31
      %p33 = scmp.ne.s32.totalorder %s22, %s23
      %p34 = scmp.eq.s32.totalorder %s14, 0
      %p35 = por %p33, %p34
      %p36 = scmp.ne.s32.totalorder %s22, %s23
      %p37 = scmp.eq.s32.totalorder %s15, 1
      %p38 = por %p36, %p37
      %p40 = scmp.ne.s32.totalorder %s23, %s39
      %p41 = scmp.eq.s32.totalorder %s15, 0
      %p42 = por %p40, %p41
      %s44 = sadd.s32 %s43, 1
      %p47 = scmp.eq.s32.totalorder %s9, 1
      %p48 = scmp.ne.s32.totalorder %s43, %s45
      %p49 = scmp.eq.s32.totalorder %s9, 0
      %p50 = por %p48, %p49
      %p51 = scmp.ne.s32.totalorder %s43, %s45
      %p52 = scmp.eq.s32.totalorder %s14, 1
      %p53 = por %p51, %p52
      %p54 = scmp.ne.s32.totalorder %s45, %s46
      %p55 = scmp.eq.s32.totalorder %s14, 0
      %p56 = por %p54, %p55
      %p57 = scmp.ne.s32.totalorder %s45, %s46
      %p58 = scmp.eq.s32.totalorder %s15, 1
      %p59 = por %p57, %p58
      %p61 = scmp.ne.s32.totalorder %s46, %s60
      %p62 = scmp.eq.s32.totalorder %s15, 0
      %p63 = por %p61, %p62
      %s65 = sadd.s32 %s64, 1
      %p68 = scmp.eq.s32.totalorder %s9, 1
      %p69 = scmp.ne.s32.totalorder %s64, %s66
      %p70 = scmp.eq.s32.totalorder %s9, 0
      %p71 = por %p69, %p70
      %p72 = scmp.ne.s32.totalorder %s64, %s66
      %p73 = scmp.eq.s32.totalorder %s14, 1
      %p74 = por %p72, %p73
      %p75 = scmp.ne.s32.totalorder %s66, %s67
      %p76 = scmp.eq.s32.totalorder %s14, 0
      %p77 = por %p75, %p76
      %p78 = scmp.ne.s32.totalorder %s66, %s67
      %p79 = scmp.eq.s32.totalorder %s15, 1
      %p80 = por %p78, %p79
      %p82 = scmp.ne.s32.totalorder %s67, %s81
      %p83 = scmp.eq.s32.totalorder %s15, 0
      %p84 = por %p82, %p83
      %s85 = ssub.s32 %s9, %s16
      %p86 = scmp.eq.s32.totalorder %s85, 0
      %s88 = sadd.s32 %s87, 1
      %s89 = scalar_select %p86, %s87, %s88
      %p92 = pneg %p86
      %p93 = scmp.eq.s32.totalorder %s9, 1
      %p94 = por %p92, %p93
      %p95 = scmp.ne.s32.totalorder %s87, %s90
      %p96 = scmp.eq.s32.totalorder %s9, 0
      %p97 = por %p95, %p96
      %p98 = scmp.ne.s32.totalorder %s87, %s90
      %p99 = scmp.eq.s32.totalorder %s14, 1
      %p100 = por %p98, %p99
      %p101 = scmp.ne.s32.totalorder %s90, %s91
      %p102 = scmp.eq.s32.totalorder %s14, 0
      %p103 = por %p101, %p102
      %p104 = scmp.ne.s32.totalorder %s90, %s91
      %p105 = scmp.eq.s32.totalorder %s15, 1
      %p106 = por %p104, %p105
      %p108 = scmp.ne.s32.totalorder %s91, %s107
      %p109 = scmp.eq.s32.totalorder %s15, 0
      %p110 = por %p108, %p109
      %p111 = scmp.le.s32.totalorder 1, %s9
      %p112 = scmp.lt.s32.totalorder %s9, 3
      %p113 = pnand %p111, %p112
      %p114 = pneg %p113
      // Predicated region
      $region9: #{cnn_forward.7} parent=5 // pred_check
        _
      $region10: #{cnn_forward.7} parent=5 // pred_check_branch
        %116 = sbr.rel (%p113) target = $region12
      $region11: #{cnn_forward.7} parent=5 // pred_region
        %s117 = ssub.s32 %s9, 1
        // Predicated region
        $region13: #{cnn_forward.7} parent=11 // pred_check
          %p118 = pneg %p56
        $region14: #{cnn_forward.7} parent=11 // pred_check_branch
          %120 = sbr.rel (%p118) target = $region16
        $region15: #{cnn_forward.7} parent=11 // pred_region
          _
        $region16: #{cnn_forward.7} parent=11 // pred_fallthru
          _
        // Predicated region
        $region17: #{cnn_forward.7} parent=11 // pred_check
          %p121 = pneg %p77
        $region18: #{cnn_forward.7} parent=11 // pred_check_branch
          %123 = sbr.rel (%p121) target = $region20
        $region19: #{cnn_forward.7} parent=11 // pred_region
          _
        $region20: #{cnn_forward.7} parent=11 // pred_fallthru
          _
      $region12: #{cnn_forward.7} parent=5 // pred_fallthru
        _
      %p124 = scmp.lt.s32.totalorder %s9, 2
      // Predicated region
      $region21: #{cnn_forward.7} parent=5 // pred_check
        %p125 = pneg %p124
      $region22: #{cnn_forward.7} parent=5 // pred_check_branch
        %127 = sbr.rel (%p125) target = $region24
      $region23: #{cnn_forward.7} parent=5 // pred_region
        // Predicated region
        $region25: #{cnn_forward.7} parent=23 // pred_check
          %p128 = pneg %p29
        $region26: #{cnn_forward.7} parent=23 // pred_check_branch
          %130 = sbr.rel (%p128) target = $region28
        $region27: #{cnn_forward.7} parent=23 // pred_region
          %s131 = smul.u32 16, %s9
          %s132 = ssub.s32 31, %s131
          %p133 = scmp.lt.s32.totalorder %s132, 16
          %s134 = scalar_select %p133, %s132, 16
          %s135 = smul.u32 128, %s134
          %p136 = scmp.lt.s32.totalorder %s131, 30
          %s137 = scalar_select %p136, %s131, 30
          %s138 = smul.addr %s137, 8
          %s139 = scalar_lea.vmem %s0, %s138
          %s140 = smul.u32 16, %s9
          %s141 = ssub.s32 31, %s140
          %p142 = scmp.lt.s32.totalorder %s141, 16
          %s143 = scalar_select %p142, %s141, 16
          %s144 = smul.u32 128, %s143
        $region28: #{cnn_forward.7} parent=23 // pred_fallthru
          _
      $region24: #{cnn_forward.7} parent=5 // pred_fallthru
        _
      %p145 = scmp.le.s32.totalorder 1, %s9
      %p146 = scmp.lt.s32.totalorder %s9, 3
      %p147 = pnand %p145, %p146
      %p148 = pneg %p147
      // Predicated region
      $region29: #{cnn_forward.7} parent=5 // pred_check
        _
      $region30: #{cnn_forward.7} parent=5 // pred_check_branch
        %150 = sbr.rel (%p147) target = $region32
      $region31: #{cnn_forward.7} parent=5 // pred_region
        %s151 = ssub.s32 %s9, 1
        %s152 = smul.u32 16, %s14
        %s153 = ssub.s32 31, %s152
        %p154 = scmp.lt.s32.totalorder %s153, 16
        %s155 = scalar_select %p154, %s153, 16
        %s156 = smul.u32 128, %s155
        %p157 = scmp.lt.s32.totalorder %s152, 30
        %s158 = scalar_select %p157, %s152, 30
        %s159 = smul.addr %s158, 8
        %s160 = scalar_lea.vmem %s0, %s159
        %p161 = pneg %p35
        %p162 = pneg %p32
        %p163 = pneg %p56
        %p164 = pneg %p53
        %p165 = pneg %p77
        %p166 = pneg %p74
        %p167 = pneg %p103
        %p168 = pneg %p100
        %s169 = sand.u32 %s90, 1
        %s170 = sand.u32 %s90, 1
        %s171 = smul.addr %s170, 128
        %s172 = scalar_lea.vmem [#allocation2], %s171
        %s173 = smul.u32 16, %s14
        %s174 = ssub.s32 31, %s173
        %p175 = scmp.lt.s32.totalorder %s174, 16
        %s176 = scalar_select %p175, %s174, 16
        %s177 = smul.u32 128, %s176
        %p178 = scmp.lt.s32.totalorder %s173, 30
        %s179 = scalar_select %p178, %s173, 30
        %s180 = smul.addr %s179, 8
        %s181 = scalar_lea.vmem %s0, %s180
        %s182 = smul.u32 16, %s14
        %s183 = ssub.s32 31, %s182
        %p184 = scmp.lt.s32.totalorder %s183, 16
        %s185 = scalar_select %p184, %s183, 16
        %s186 = smul.u32 128, %s185
        %s187 = smul.u32 16, %s14
        %s188 = ssub.s32 31, %s187
        %p189 = scmp.lt.s32.totalorder %s188, 16
        %s190 = scalar_select %p189, %s188, 16
        %s191 = smul.u32 128, %s190
        %v192 = vld [vmem:[%s181] sm:$0xff]
        %v193 = vld [vmem:[%s181 + $0x8] sm:$0xff]
        %v194 = vld [vmem:[%s181 + $0x10] sm:$0xff]
        %v195 = vld [vmem:[%s181 + $0x18] sm:$0xff]
        %v196 = vld [vmem:[%s181 + $0x20] sm:$0xff]
        %v197 = vld [vmem:[%s181 + $0x28] sm:$0xff]
        %v198 = vld [vmem:[%s181 + $0x30] sm:$0xff]
        %v199 = vld [vmem:[%s181 + $0x38] sm:$0xff]
        %v200 = vld [vmem:[%s181 + $0x40] sm:$0xff]
        %v201 = vld [vmem:[%s181 + $0x48] sm:$0xff]
        %v202 = vld [vmem:[%s181 + $0x50] sm:$0xff]
        %v203 = vld [vmem:[%s181 + $0x58] sm:$0xff]
        %v204 = vld [vmem:[%s181 + $0x60] sm:$0xff]
        %v205 = vld [vmem:[%s181 + $0x68] sm:$0xff]
        %v206 = vld [vmem:[%s181 + $0x70] sm:$0xff]
        %v207 = vld [vmem:[%s181 + $0x78] sm:$0xff]
        %v208 = vld [vmem:[%s1] sm:$0xff]
        %v209 = vld [vmem:[%s1 + $0x8] sm:$0xff]
        %v210 = vld [vmem:[%s1 + $0x10] sm:$0xff]
        %v211 = vld [vmem:[%s1 + $0x18] sm:$0xff]
        %v212 = vld [vmem:[%s1 + $0x20] sm:$0xff]
        %v213 = vld [vmem:[%s1 + $0x28] sm:$0xff]
        %v214 = vld [vmem:[%s1 + $0x30] sm:$0xff]
        %v215 = vld [vmem:[%s1 + $0x38] sm:$0xff]
        %v216 = vld [vmem:[%s1 + $0x40] sm:$0xff]
        %v217 = vld [vmem:[%s2] sm:$0x1]
        %v219 = vlaneseq
        %v220 = vshrl.u32 %v219, 7
        %v221 = vsub.s32 0, %v220
        %v222 = vrot.slane %v217, %v221
        %vm224 = vcmask 588800
        %v226 = vsel %vm224, %v192, 0
        %v229 = vsel %vm224, %v193, 0
        %v232 = vsel %vm224, %v194, 0
        %v235 = vsel %vm224, %v195, 0
        %v238 = vsel %vm224, %v196, 0
        %v241 = vsel %vm224, %v197, 0
        %v244 = vsel %vm224, %v198, 0
        %v247 = vsel %vm224, %v199, 0
        %v250 = vsel %vm224, %v200, 0
        %v253 = vsel %vm224, %v201, 0
        %v256 = vsel %vm224, %v202, 0
        %v259 = vsel %vm224, %v203, 0
        %v262 = vsel %vm224, %v204, 0
        %v265 = vsel %vm224, %v205, 0
        %v268 = vsel %vm224, %v206, 0
        %v271 = vsel %vm224, %v207, 0
        %273 = vmatprep.subr.mxu0 0.0
        %274 = vmatpush1.msra.mxu0 0.0
        %275 = vmatprep.subr.mxu0 0.0
        %276 = vmatpush1.msra.mxu0 0.0
        %277 = vmatprep.subr.mxu0 0.0
        %278 = vmatpush1.msra.mxu0 0.0
        %279 = vmatprep.subr.mxu0 0.0
        %280 = vmatpush1.msra.mxu0 0.0
        %281 = vmatprep.subr.mxu0 0.0
        %282 = vmatpush1.msra.mxu0 0.0
        %283 = vmatprep.subr.mxu0 0.0
        %284 = vmatpush1.msra.mxu0 0.0
        %285 = vmatprep.subr.mxu0 0.0
        %286 = vmatpush1.msra.mxu0 0.0
        %287 = vmatprep.subr.mxu0 0.0
        %288 = vmatpush1.msra.mxu0 %v216
        %289 = vmatprep.subr.mxu0 0.0
        %290 = vmatpush1.msra.mxu0 %v215
        %291 = vmatprep.subr.mxu0 0.0
        %292 = vmatpush1.msra.mxu0 %v214
        %293 = vmatprep.subr.mxu0 0.0
        %294 = vmatpush1.msra.mxu0 %v213
        %295 = vmatprep.subr.mxu0 0.0
        %296 = vmatpush1.msra.mxu0 %v212
        %297 = vmatprep.subr.mxu0 0.0
        %298 = vmatpush1.msra.mxu0 %v211
        %299 = vmatprep.subr.mxu0 0.0
        %300 = vmatpush1.msra.mxu0 %v210
        %301 = vmatprep.subr.mxu0 0.0
        %302 = vmatpush1.msra.mxu0 %v209
        %303 = vmatprep.subr.mxu0 0.0
        %304 = vmatpush1.msra.mxu0 %v208
        %305 = vmatprep.subr.mxu0 0.0
        %306 = vmatpush2.msra.mxu0 0.0
        %307 = vmatprep.subr.mxu0 0.0
        %308 = vmatpush2.msra.mxu0 0.0
        %309 = vmatprep.subr.mxu0 0.0
        %310 = vmatpush2.msra.mxu0 0.0
        %311 = vmatprep.subr.mxu0 0.0
        %312 = vmatpush2.msra.mxu0 0.0
        %313 = vmatprep.subr.mxu0 0.0
        %314 = vmatpush2.msra.mxu0 0.0
        %315 = vmatprep.subr.mxu0 0.0
        %316 = vmatpush2.msra.mxu0 0.0
        %317 = vmatprep.subr.mxu0 0.0
        %318 = vmatpush2.msra.mxu0 0.0
        %319 = vmatprep.subr.mxu0 0.0
        %320 = vmatpush2.msra.mxu0 0.0
        %321 = vmatprep.subr.mxu0 0.0
        %322 = vmatpush2.msra.mxu0 0.0
        %323 = vmatprep.subr.mxu0 0.0
        %324 = vmatpush2.msra.mxu0 0.0
        %325 = vmatprep.subr.mxu0 0.0
        %326 = vmatpush2.msra.mxu0 0.0
        %327 = vmatprep.subr.mxu0 0.0
        %328 = vmatpush2.msra.mxu0 0.0
        %329 = vmatprep.subr.mxu0 0.0
        %330 = vmatpush2.msra.mxu0 0.0
        %331 = vmatprep.subr.mxu0 0.0
        %332 = vmatpush2.msra.mxu0 0.0
        %333 = vmatprep.subr.mxu0 0.0
        %334 = vmatpush2.msra.mxu0 0.0
        %335 = vmatprep.subr.mxu0 0.0
        %336 = vmatpush2.msra.mxu0 0.0
        %337 = vmatprep.mubr.f32.mxu0 0.0
        %338 = vmatmul.mubr.f32.gmra.mxu0 %v226
        %v339 = vpop.f32.mrf.mxu0
        %v340 = vadd.f32 %v222, %v339
        %v341 = vpop.f32.mrf.mxu0
        %342 = vmatprep.mubr.f32.mxu0 0.0
        %343 = vmatmul.mubr.f32.gmra.mxu0 %v229
        %v344 = vpop.f32.mrf.mxu0
        %v345 = vadd.f32 %v222, %v344
        %v346 = vpop.f32.mrf.mxu0
        %347 = vmatprep.mubr.f32.mxu0 0.0
        %348 = vmatmul.mubr.f32.gmra.mxu0 %v232
        %v349 = vpop.f32.mrf.mxu0
        %v350 = vadd.f32 %v222, %v349
        %v351 = vpop.f32.mrf.mxu0
        %352 = vmatprep.mubr.f32.mxu0 0.0
        %353 = vmatmul.mubr.f32.gmra.mxu0 %v235
        %v354 = vpop.f32.mrf.mxu0
        %v355 = vadd.f32 %v222, %v354
        %v356 = vpop.f32.mrf.mxu0
        %357 = vmatprep.mubr.f32.mxu0 0.0
        %358 = vmatmul.mubr.f32.gmra.mxu0 %v238
        %v359 = vpop.f32.mrf.mxu0
        %v360 = vadd.f32 %v222, %v359
        %v361 = vpop.f32.mrf.mxu0
        %362 = vmatprep.mubr.f32.mxu0 0.0
        %363 = vmatmul.mubr.f32.gmra.mxu0 %v241
        %v364 = vpop.f32.mrf.mxu0
        %v365 = vadd.f32 %v222, %v364
        %v366 = vpop.f32.mrf.mxu0
        %367 = vmatprep.mubr.f32.mxu0 0.0
        %368 = vmatmul.mubr.f32.gmra.mxu0 %v244
        %v369 = vpop.f32.mrf.mxu0
        %v370 = vadd.f32 %v222, %v369
        %v371 = vpop.f32.mrf.mxu0
        %372 = vmatprep.mubr.f32.mxu0 0.0
        %373 = vmatmul.mubr.f32.gmra.mxu0 %v247
        %v374 = vpop.f32.mrf.mxu0
        %v375 = vadd.f32 %v222, %v374
        %v376 = vpop.f32.mrf.mxu0
        %377 = vmatprep.mubr.f32.mxu0 0.0
        %378 = vmatmul.mubr.f32.gmra.mxu0 %v250
        %v379 = vpop.f32.mrf.mxu0
        %v380 = vadd.f32 %v222, %v379
        %v381 = vpop.f32.mrf.mxu0
        %382 = vmatprep.mubr.f32.mxu0 0.0
        %383 = vmatmul.mubr.f32.gmra.mxu0 %v253
        %v384 = vpop.f32.mrf.mxu0
        %v385 = vadd.f32 %v222, %v384
        %v386 = vpop.f32.mrf.mxu0
        %387 = vmatprep.mubr.f32.mxu0 0.0
        %388 = vmatmul.mubr.f32.gmra.mxu0 %v256
        %v389 = vpop.f32.mrf.mxu0
        %v390 = vadd.f32 %v222, %v389
        %v391 = vpop.f32.mrf.mxu0
        %392 = vmatprep.mubr.f32.mxu0 0.0
        %393 = vmatmul.mubr.f32.gmra.mxu0 %v259
        %v394 = vpop.f32.mrf.mxu0
        %v395 = vadd.f32 %v222, %v394
        %v396 = vpop.f32.mrf.mxu0
        %397 = vmatprep.mubr.f32.mxu0 0.0
        %398 = vmatmul.mubr.f32.gmra.mxu0 %v262
        %v399 = vpop.f32.mrf.mxu0
        %v400 = vadd.f32 %v222, %v399
        %v401 = vpop.f32.mrf.mxu0
        %402 = vmatprep.mubr.f32.mxu0 0.0
        %403 = vmatmul.mubr.f32.gmra.mxu0 %v265
        %v404 = vpop.f32.mrf.mxu0
        %v405 = vadd.f32 %v222, %v404
        %v406 = vpop.f32.mrf.mxu0
        %407 = vmatprep.mubr.f32.mxu0 0.0
        %408 = vmatmul.mubr.f32.gmra.mxu0 %v268
        %v409 = vpop.f32.mrf.mxu0
        %v410 = vadd.f32 %v222, %v409
        %v411 = vpop.f32.mrf.mxu0
        %412 = vmatprep.mubr.f32.mxu0 0.0
        %413 = vmatmul.mubr.f32.gmra.mxu0 %v271
        %v414 = vpop.f32.mrf.mxu0
        %v415 = vadd.f32 %v222, %v414
        %v416 = vpop.f32.mrf.mxu0
        %417 = vdwg.mxu0
        %v418 = vmax.f32 %v340, 0.0
        %v419 = vmax.f32 %v345, 0.0
        %v420 = vmax.f32 %v350, 0.0
        %v421 = vmax.f32 %v355, 0.0
        %v422 = vmax.f32 %v360, 0.0
        %v423 = vmax.f32 %v365, 0.0
        %v424 = vmax.f32 %v370, 0.0
        %v425 = vmax.f32 %v375, 0.0
        %v426 = vmax.f32 %v380, 0.0
        %v427 = vmax.f32 %v385, 0.0
        %v428 = vmax.f32 %v390, 0.0
        %v429 = vmax.f32 %v395, 0.0
        %v430 = vmax.f32 %v400, 0.0
        %v431 = vmax.f32 %v405, 0.0
        %v432 = vmax.f32 %v410, 0.0
        %v433 = vmax.f32 %v415, 0.0
        %434 = vst [vmem:[%s172] sm:$0xff] %v418
        %435 = vst [vmem:[%s172 + $0x8] sm:$0xff] %v419
        %436 = vst [vmem:[%s172 + $0x10] sm:$0xff] %v420
        %437 = vst [vmem:[%s172 + $0x18] sm:$0xff] %v421
        %438 = vst [vmem:[%s172 + $0x20] sm:$0xff] %v422
        %439 = vst [vmem:[%s172 + $0x28] sm:$0xff] %v423
        %440 = vst [vmem:[%s172 + $0x30] sm:$0xff] %v424
        %441 = vst [vmem:[%s172 + $0x38] sm:$0xff] %v425
        %442 = vst [vmem:[%s172 + $0x40] sm:$0xff] %v426
        %443 = vst [vmem:[%s172 + $0x48] sm:$0xff] %v427
        %444 = vst [vmem:[%s172 + $0x50] sm:$0xff] %v428
        %445 = vst [vmem:[%s172 + $0x58] sm:$0xff] %v429
        %446 = vst [vmem:[%s172 + $0x60] sm:$0xff] %v430
        %447 = vst [vmem:[%s172 + $0x68] sm:$0xff] %v431
        %448 = vst [vmem:[%s172 + $0x70] sm:$0xff] %v432
        %449 = vst [vmem:[%s172 + $0x78] sm:$0xff] %v433
        %s450 = sand.u32 %s90, 1
        %s451 = sand.u32 %s90, 1
        %s452 = smul.addr %s451, 128
        %s453 = scalar_lea.vmem [#allocation2], %s452
        // Predicated region
        $region33: #{cnn_forward.7} parent=31 // pred_check
          %p454 = pneg %p100
        $region34: #{cnn_forward.7} parent=31 // pred_check_branch
          %456 = sbr.rel (%p454) target = $region36
        $region35: #{cnn_forward.7} parent=31 // pred_region
          %s457 = smul.u32 16, %s14
          %s458 = ssub.s32 31, %s457
          %p459 = scmp.lt.s32.totalorder %s458, 16
          %s460 = scalar_select %p459, %s458, 16
          %s461 = smul.u32 128, %s460
          %p462 = scmp.ne.s32.totalorder 0, %s461
          %s463 = smul.addr %s457, 8
          %s464 = scalar_lea.vmem %s3, %s463
          // Predicated region
          $region37: #{cnn_forward.7} parent=35 // pred_check
            %p465 = pneg %p462
          $region38: #{cnn_forward.7} parent=35 // pred_check_branch
            %467 = sbr.rel (%p465) target = $region40
          $region39: #{cnn_forward.7} parent=35 // pred_region
            // Predicated region
            $region41: #{cnn_forward.7} parent=39 // pred_check
              _
            $region42: #{cnn_forward.7} parent=39 // pred_check_branch
              %469 = sbr.rel (0) target = $region44
            $region43: #{cnn_forward.7} parent=39 // pred_region
              // Predicated region
              $region63: #{cnn_forward.7} parent=43 // pred_check
                _
              $region64: #{cnn_forward.7} parent=43 // pred_check_branch
                %549 = sbr.rel (0) target = $region66
              $region65: #{cnn_forward.7} parent=43 // pred_region
                %s550 = sshrl.u32 %s460, 4
                // While loop
                $region67: #{cnn_forward.7} parent=65 // loop_pre_header
                  _
                $region68: #{cnn_forward.7} parent=65 // loop_header
                  %s552 = sphi 0, %s554
                  %p553 = scmp.ge.s32.totalorder %s552, %s550
                  %s557 = sphi 0, %s594
                  %s558 = sphi %s453, %s597
                  %s559 = sphi %s464, %s598
                $region69: #{cnn_forward.7} parent=65 // loop_header_branch
                  %556 = sbr.rel (%p553) target = $region73
                $region70: #{cnn_forward.7} parent=65 // loop_body
                  %v560 = vld [vmem:[%s558] sm:$0xff]
                  %561 = vst [vmem:[%s559] sm:$0xff] %v560
                  %v562 = vld [vmem:[%s558 + $0x8] sm:$0xff]
                  %563 = vst [vmem:[%s559 + $0x8] sm:$0xff] %v562
                  %v564 = vld [vmem:[%s558 + $0x10] sm:$0xff]
                  %565 = vst [vmem:[%s559 + $0x10] sm:$0xff] %v564
                  %v566 = vld [vmem:[%s558 + $0x18] sm:$0xff]
                  %567 = vst [vmem:[%s559 + $0x18] sm:$0xff] %v566
                  %v568 = vld [vmem:[%s558 + $0x20] sm:$0xff]
                  %569 = vst [vmem:[%s559 + $0x20] sm:$0xff] %v568
                  %v570 = vld [vmem:[%s558 + $0x28] sm:$0xff]
                  %571 = vst [vmem:[%s559 + $0x28] sm:$0xff] %v570
                  %v572 = vld [vmem:[%s558 + $0x30] sm:$0xff]
                  %573 = vst [vmem:[%s559 + $0x30] sm:$0xff] %v572
                  %v574 = vld [vmem:[%s558 + $0x38] sm:$0xff]
                  %575 = vst [vmem:[%s559 + $0x38] sm:$0xff] %v574
                  %v576 = vld [vmem:[%s558 + $0x40] sm:$0xff]
                  %577 = vst [vmem:[%s559 + $0x40] sm:$0xff] %v576
                  %v578 = vld [vmem:[%s558 + $0x48] sm:$0xff]
                  %579 = vst [vmem:[%s559 + $0x48] sm:$0xff] %v578
                  %v580 = vld [vmem:[%s558 + $0x50] sm:$0xff]
                  %581 = vst [vmem:[%s559 + $0x50] sm:$0xff] %v580
                  %v582 = vld [vmem:[%s558 + $0x58] sm:$0xff]
                  %583 = vst [vmem:[%s559 + $0x58] sm:$0xff] %v582
                  %v584 = vld [vmem:[%s558 + $0x60] sm:$0xff]
                  %585 = vst [vmem:[%s559 + $0x60] sm:$0xff] %v584
                  %v586 = vld [vmem:[%s558 + $0x68] sm:$0xff]
                  %587 = vst [vmem:[%s559 + $0x68] sm:$0xff] %v586
                  %v588 = vld [vmem:[%s558 + $0x70] sm:$0xff]
                  %589 = vst [vmem:[%s559 + $0x70] sm:$0xff] %v588
                  %v590 = vld [vmem:[%s558 + $0x78] sm:$0xff]
                  %591 = vst [vmem:[%s559 + $0x78] sm:$0xff] %v590
                  %s592 = sadd.s32 1, %s557
                  %p593 = scmp.ge.s32.totalorder %s592, %s550
                  %s594 = scalar_select %p593, 0, %s592
                  %s595 = smul.u32 %s594, 128
                  %s596 = smul.u32 %s594, 128
                  %s597 = scalar_lea.vmem %s453, %s595 [#allocation2]
                  %s598 = scalar_lea.vmem %s464, %s596
                $region71: #{cnn_forward.7} parent=65 // loop_footer
                  %s554 = sadd.s32 %s552, 1
                $region72: #{cnn_forward.7} parent=65 // loop_footer_branch
                  %551 = sbr.rel target = $region68
                $region73: #{cnn_forward.7} parent=65 // loop_exit
                  _
                %s599 = sshrl.u32 %s460, 4
                %s600 = sand.u32 %s460, 15
                %s601 = smul.u32 %s599, 16
                %s602 = smul.u32 8, %s601
                %s603 = scalar_lea.vmem %s453, %s602 [#allocation2]
                %s604 = smul.u32 8, %s601
                %s605 = scalar_lea.vmem %s464, %s604
                // While loop
                $region74: #{cnn_forward.7} parent=65 // loop_pre_header
                  _
                $region75: #{cnn_forward.7} parent=65 // loop_header
                  %s607 = sphi 0, %s609
                  %p608 = scmp.ge.s32.totalorder %s607, %s600
                  %s612 = sphi 0, %s619
                  %s613 = sphi %s603, %s622
                  %s614 = sphi %s605, %s623
                $region76: #{cnn_forward.7} parent=65 // loop_header_branch
                  %611 = sbr.rel (%p608) target = $region80
                $region77: #{cnn_forward.7} parent=65 // loop_body
                  %v615 = vld [vmem:[%s613] sm:$0xff]
                  %616 = vst [vmem:[%s614] sm:$0xff] %v615
                  %s617 = sadd.s32 1, %s612
                  %p618 = scmp.ge.s32.totalorder %s617, %s600
                  %s619 = scalar_select %p618, 0, %s617
                  %s620 = smul.u32 %s619, 8
                  %s621 = smul.u32 %s619, 8
                  %s622 = scalar_lea.vmem %s603, %s620 [#allocation2]
                  %s623 = scalar_lea.vmem %s605, %s621
                $region78: #{cnn_forward.7} parent=65 // loop_footer
                  %s609 = sadd.s32 %s607, 1
                $region79: #{cnn_forward.7} parent=65 // loop_footer_branch
                  %606 = sbr.rel target = $region75
                $region80: #{cnn_forward.7} parent=65 // loop_exit
                  _
              $region66: #{cnn_forward.7} parent=43 // pred_fallthru
                _
              // Predicated region
              $region81: #{cnn_forward.7} parent=43 // pred_check
                _
              $region82: #{cnn_forward.7} parent=43 // pred_check_branch
                %625 = sbr.rel target = $region84
              $region83: #{cnn_forward.7} parent=43 // pred_region
                _
              $region84: #{cnn_forward.7} parent=43 // pred_fallthru
                _
            $region44: #{cnn_forward.7} parent=39 // pred_fallthru
              _
            // Predicated region
            $region45: #{cnn_forward.7} parent=39 // pred_check
              _
            $region46: #{cnn_forward.7} parent=39 // pred_check_branch
              %471 = sbr.rel target = $region48
            $region47: #{cnn_forward.7} parent=39 // pred_region
              %s473 = ssub.s32 256, 1
              %s474 = sshrl.u32 %s460, 4
              // While loop
              $region49: #{cnn_forward.7} parent=47 // loop_pre_header
                _
              $region50: #{cnn_forward.7} parent=47 // loop_header
                %s476 = sphi 0, %s478
                %p477 = scmp.ge.s32.totalorder %s476, %s474
                %s481 = sphi 0, %s518
                %s482 = sphi %s453, %s521
                %s483 = sphi %s464, %s522
              $region51: #{cnn_forward.7} parent=47 // loop_header_branch
                %480 = sbr.rel (%p477) target = $region55
              $region52: #{cnn_forward.7} parent=47 // loop_body
                %v484 = vld [vmem:[%s482] sm:%s473]
                %485 = vst [vmem:[%s483] sm:%s473] %v484
                %v486 = vld [vmem:[%s482 + $0x8] sm:%s473]
                %487 = vst [vmem:[%s483 + $0x8] sm:%s473] %v486
                %v488 = vld [vmem:[%s482 + $0x10] sm:%s473]
                %489 = vst [vmem:[%s483 + $0x10] sm:%s473] %v488
                %v490 = vld [vmem:[%s482 + $0x18] sm:%s473]
                %491 = vst [vmem:[%s483 + $0x18] sm:%s473] %v490
                %v492 = vld [vmem:[%s482 + $0x20] sm:%s473]
                %493 = vst [vmem:[%s483 + $0x20] sm:%s473] %v492
                %v494 = vld [vmem:[%s482 + $0x28] sm:%s473]
                %495 = vst [vmem:[%s483 + $0x28] sm:%s473] %v494
                %v496 = vld [vmem:[%s482 + $0x30] sm:%s473]
                %497 = vst [vmem:[%s483 + $0x30] sm:%s473] %v496
                %v498 = vld [vmem:[%s482 + $0x38] sm:%s473]
                %499 = vst [vmem:[%s483 + $0x38] sm:%s473] %v498
                %v500 = vld [vmem:[%s482 + $0x40] sm:%s473]
                %501 = vst [vmem:[%s483 + $0x40] sm:%s473] %v500
                %v502 = vld [vmem:[%s482 + $0x48] sm:%s473]
                %503 = vst [vmem:[%s483 + $0x48] sm:%s473] %v502
                %v504 = vld [vmem:[%s482 + $0x50] sm:%s473]
                %505 = vst [vmem:[%s483 + $0x50] sm:%s473] %v504
                %v506 = vld [vmem:[%s482 + $0x58] sm:%s473]
                %507 = vst [vmem:[%s483 + $0x58] sm:%s473] %v506
                %v508 = vld [vmem:[%s482 + $0x60] sm:%s473]
                %509 = vst [vmem:[%s483 + $0x60] sm:%s473] %v508
                %v510 = vld [vmem:[%s482 + $0x68] sm:%s473]
                %511 = vst [vmem:[%s483 + $0x68] sm:%s473] %v510
                %v512 = vld [vmem:[%s482 + $0x70] sm:%s473]
                %513 = vst [vmem:[%s483 + $0x70] sm:%s473] %v512
                %v514 = vld [vmem:[%s482 + $0x78] sm:%s473]
                %515 = vst [vmem:[%s483 + $0x78] sm:%s473] %v514
                %s516 = sadd.s32 1, %s481
                %p517 = scmp.ge.s32.totalorder %s516, %s474
                %s518 = scalar_select %p517, 0, %s516
                %s519 = smul.u32 %s518, 128
                %s520 = smul.u32 %s518, 128
                %s521 = scalar_lea.vmem %s453, %s519 [#allocation2]
                %s522 = scalar_lea.vmem %s464, %s520
              $region53: #{cnn_forward.7} parent=47 // loop_footer
                %s478 = sadd.s32 %s476, 1
              $region54: #{cnn_forward.7} parent=47 // loop_footer_branch
                %475 = sbr.rel target = $region50
              $region55: #{cnn_forward.7} parent=47 // loop_exit
                _
              %s523 = sshrl.u32 %s460, 4
              %s524 = sand.u32 %s460, 15
              %s525 = smul.u32 %s523, 16
              %s526 = smul.u32 8, %s525
              %s527 = scalar_lea.vmem %s453, %s526 [#allocation2]
              %s528 = smul.u32 8, %s525
              %s529 = scalar_lea.vmem %s464, %s528
              // While loop
              $region56: #{cnn_forward.7} parent=47 // loop_pre_header
                _
              $region57: #{cnn_forward.7} parent=47 // loop_header
                %s531 = sphi 0, %s533
                %p532 = scmp.ge.s32.totalorder %s531, %s524
                %s536 = sphi 0, %s543
                %s537 = sphi %s527, %s546
                %s538 = sphi %s529, %s547
              $region58: #{cnn_forward.7} parent=47 // loop_header_branch
                %535 = sbr.rel (%p532) target = $region62
              $region59: #{cnn_forward.7} parent=47 // loop_body
                %v539 = vld [vmem:[%s537] sm:%s473]
                %540 = vst [vmem:[%s538] sm:%s473] %v539
                %s541 = sadd.s32 1, %s536
                %p542 = scmp.ge.s32.totalorder %s541, %s524
                %s543 = scalar_select %p542, 0, %s541
                %s544 = smul.u32 %s543, 8
                %s545 = smul.u32 %s543, 8
                %s546 = scalar_lea.vmem %s527, %s544 [#allocation2]
                %s547 = scalar_lea.vmem %s529, %s545
              $region60: #{cnn_forward.7} parent=47 // loop_footer
                %s533 = sadd.s32 %s531, 1
              $region61: #{cnn_forward.7} parent=47 // loop_footer_branch
                %530 = sbr.rel target = $region57
              $region62: #{cnn_forward.7} parent=47 // loop_exit
                _
            $region48: #{cnn_forward.7} parent=39 // pred_fallthru
              _
          $region40: #{cnn_forward.7} parent=35 // pred_fallthru
            _
          %626 = vnop
        $region36: #{cnn_forward.7} parent=31 // pred_fallthru
          _
      $region32: #{cnn_forward.7} parent=5 // pred_fallthru
        _
      %p627 = scmp.le.s32.totalorder 2, %s9
      // Predicated region
      $region85: #{cnn_forward.7} parent=5 // pred_check
        %p628 = pneg %p627
      $region86: #{cnn_forward.7} parent=5 // pred_check_branch
        %630 = sbr.rel (%p628) target = $region88
      $region87: #{cnn_forward.7} parent=5 // pred_region
        %s631 = ssub.s32 %s9, 2
        // Predicated region
        $region89: #{cnn_forward.7} parent=87 // pred_check
          %p632 = pneg %p106
        $region90: #{cnn_forward.7} parent=87 // pred_check_branch
          %634 = sbr.rel (%p632) target = $region92
        $region91: #{cnn_forward.7} parent=87 // pred_region
          %s635 = sand.u32 %s91, 1
          %s636 = sand.u32 %s91, 1
          %s637 = smul.addr %s636, 128
          %s638 = scalar_lea.vmem [#allocation2], %s637
        $region92: #{cnn_forward.7} parent=87 // pred_fallthru
          _
      $region88: #{cnn_forward.7} parent=5 // pred_fallthru
        _
    $region6: #{cnn_forward.7} parent=1 // loop_footer
      %s13 = sadd.s32 1, %s9
    $region7: #{cnn_forward.7} parent=1 // loop_footer_branch
      %8 = sbr.rel target = $region3
    $region8: #{cnn_forward.7} parent=1 // loop_exit
      _

// kernel: cnn_forward.8
$region0: #{cnn_forward.8}
  #allocation0 [shape = 'u32[]', space=smem, size = 0x4, offset = 0x4, fixed_abs, tag = 'smem constant byte address 0x4 - core index']
  #allocation1 [shape = 'u32[144,128]{1,0:T(1,128)}', space=vmem, size = 0x12000, scoped, tag = 'internal scratch']
  %s0 = inlined_call_operand.vmem [shape: f32[10,80], index: 0, kind: input, shape index: {}]
  %s1 = inlined_call_operand.vmem [shape: f32[10,80], index: 1, kind: input, shape index: {}]
  %s2 = inlined_call_operand.vmem [shape: f32[10,80], index: 2, kind: input, shape index: {}]
  %s3 = inlined_call_operand.vmem [shape: f32[10,80], index: 3, kind: input, shape index: {}]
  %s4 = inlined_call_operand.vmem [shape: f32[10,80], index: 4, kind: input, shape index: {}]
  %s5 = inlined_call_operand.vmem [shape: f32[10,80], index: 5, kind: input, shape index: {}]
  %s6 = inlined_call_operand.vmem [shape: f32[10,80], index: 6, kind: input, shape index: {}]
  %s7 = inlined_call_operand.vmem [shape: f32[10,80], index: 7, kind: input, shape index: {}]
  %s8 = inlined_call_operand.vmem [shape: f32[10,80], index: 8, kind: input, shape index: {}]
  %s9 = inlined_call_operand.vmem [shape: f32[10,80], index: 9, kind: output, shape index: {}]
  %s10 = sld [smem:[#allocation0]]
  $region46: #{cnn_forward.8} parent=0
    _
  %s12 = ssub.s32 1, %s10
  %s13 = scalar_select 0, %s12, %s10
  // Predicated region
  $region2: #{cnn_forward.8} parent=0 // pred_check
    _
  $region3: #{cnn_forward.8} parent=0 // pred_check_branch
    %15 = sbr.rel (0) target = $region5
  $region4: #{cnn_forward.8} parent=0 // pred_region
    _
  $region5: #{cnn_forward.8} parent=0 // pred_fallthru
    _
  // Predicated region
  $region6: #{cnn_forward.8} parent=0 // pred_check
    _
  $region7: #{cnn_forward.8} parent=0 // pred_check_branch
    %17 = sbr.rel (0) target = $region9
  $region8: #{cnn_forward.8} parent=0 // pred_region
    _
  $region9: #{cnn_forward.8} parent=0 // pred_fallthru
    _
  // Predicated region
  $region10: #{cnn_forward.8} parent=0 // pred_check
    _
  $region11: #{cnn_forward.8} parent=0 // pred_check_branch
    %19 = sbr.rel (0) target = $region13
  $region12: #{cnn_forward.8} parent=0 // pred_region
    _
  $region13: #{cnn_forward.8} parent=0 // pred_fallthru
    _
  // Predicated region
  $region14: #{cnn_forward.8} parent=0 // pred_check
    _
  $region15: #{cnn_forward.8} parent=0 // pred_check_branch
    %21 = sbr.rel (0) target = $region17
  $region16: #{cnn_forward.8} parent=0 // pred_region
    _
  $region17: #{cnn_forward.8} parent=0 // pred_fallthru
    _
  // Predicated region
  $region18: #{cnn_forward.8} parent=0 // pred_check
    _
  $region19: #{cnn_forward.8} parent=0 // pred_check_branch
    %23 = sbr.rel (0) target = $region21
  $region20: #{cnn_forward.8} parent=0 // pred_region
    _
  $region21: #{cnn_forward.8} parent=0 // pred_fallthru
    _
  // Predicated region
  $region22: #{cnn_forward.8} parent=0 // pred_check
    _
  $region23: #{cnn_forward.8} parent=0 // pred_check_branch
    %25 = sbr.rel (0) target = $region25
  $region24: #{cnn_forward.8} parent=0 // pred_region
    _
  $region25: #{cnn_forward.8} parent=0 // pred_fallthru
    _
  // Predicated region
  $region26: #{cnn_forward.8} parent=0 // pred_check
    _
  $region27: #{cnn_forward.8} parent=0 // pred_check_branch
    %27 = sbr.rel (0) target = $region29
  $region28: #{cnn_forward.8} parent=0 // pred_region
    _
  $region29: #{cnn_forward.8} parent=0 // pred_fallthru
    _
  // Predicated region
  $region30: #{cnn_forward.8} parent=0 // pred_check
    _
  $region31: #{cnn_forward.8} parent=0 // pred_check_branch
    %29 = sbr.rel (0) target = $region33
  $region32: #{cnn_forward.8} parent=0 // pred_region
    _
  $region33: #{cnn_forward.8} parent=0 // pred_fallthru
    _
  // Predicated region
  $region34: #{cnn_forward.8} parent=0 // pred_check
    _
  $region35: #{cnn_forward.8} parent=0 // pred_check_branch
    %31 = sbr.rel (0) target = $region37
  $region36: #{cnn_forward.8} parent=0 // pred_region
    _
  $region37: #{cnn_forward.8} parent=0 // pred_fallthru
    _
  %v32 = vld [vmem:[%s0] sm:$0xff]
  %v33 = vld [vmem:[%s0 + $0x8] sm:$0x3]
  %v34 = vld [vmem:[%s1] sm:$0xff]
  %v35 = vld [vmem:[%s1 + $0x8] sm:$0x3]
  %v36 = vmax.f32 %v32, %v34
  %v37 = vmax.f32 %v33, %v35
  %v38 = vld [vmem:[%s2] sm:$0xff]
  %v39 = vld [vmem:[%s2 + $0x8] sm:$0x3]
  %v40 = vmax.f32 %v36, %v38
  %v41 = vmax.f32 %v37, %v39
  %v42 = vld [vmem:[%s3] sm:$0xff]
  %v43 = vld [vmem:[%s3 + $0x8] sm:$0x3]
  %v44 = vmax.f32 %v40, %v42
  %v45 = vmax.f32 %v41, %v43
  %v46 = vld [vmem:[%s4] sm:$0xff]
  %v47 = vld [vmem:[%s4 + $0x8] sm:$0x3]
  %v48 = vmax.f32 %v44, %v46
  %v49 = vmax.f32 %v45, %v47
  %v50 = vld [vmem:[%s5] sm:$0xff]
  %v51 = vld [vmem:[%s5 + $0x8] sm:$0x3]
  %v52 = vmax.f32 %v48, %v50
  %v53 = vmax.f32 %v49, %v51
  %v54 = vld [vmem:[%s6] sm:$0xff]
  %v55 = vld [vmem:[%s6 + $0x8] sm:$0x3]
  %v56 = vmax.f32 %v52, %v54
  %v57 = vmax.f32 %v53, %v55
  %v58 = vld [vmem:[%s7] sm:$0xff]
  %v59 = vld [vmem:[%s7 + $0x8] sm:$0x3]
  %v60 = vmax.f32 %v56, %v58
  %v61 = vmax.f32 %v57, %v59
  %v62 = vld [vmem:[%s8] sm:$0xff]
  %v63 = vld [vmem:[%s8 + $0x8] sm:$0x3]
  %v64 = vmax.f32 %v60, %v62
  %v65 = vmax.f32 %v61, %v63
  %vm66 = vcmask 654336
  %67 = vst.msk [vmem:[%s9] sm:$0xff] %vm66, %v64
  %vm68 = vcmask 648192
  %69 = vst.msk [vmem:[%s9 + $0x8] sm:$0x3] %vm68, %v65
  // Predicated region
  $region38: #{cnn_forward.8} parent=0 // pred_check
    _
  $region39: #{cnn_forward.8} parent=0 // pred_check_branch
    %71 = sbr.rel (0) target = $region41
  $region40: #{cnn_forward.8} parent=0 // pred_region
    _
  $region41: #{cnn_forward.8} parent=0 // pred_fallthru
    _
  // Predicated region
  $region42: #{cnn_forward.8} parent=0 // pred_check
    _
  $region43: #{cnn_forward.8} parent=0 // pred_check_branch
    %73 = sbr.rel (0) target = $region45
  $region44: #{cnn_forward.8} parent=0 // pred_region
    _
  $region45: #{cnn_forward.8} parent=0 // pred_fallthru
    _

// kernel: cnn_forward.9
$region0: #{cnn_forward.9}
  #allocation0 [shape = 'u32[]', space=smem, size = 0x4, offset = 0x4, fixed_abs, tag = 'smem constant byte address 0x4 - core index']
  #allocation1 [shape = 'u32[144,128]{1,0:T(1,128)}', space=vmem, size = 0x12000, scoped, tag = 'internal scratch']
  %s0 = inlined_call_operand.vmem [shape: f32[2,16], index: 0, kind: input, shape index: {}]
  %s1 = inlined_call_operand.vmem [shape: f32[2,16], index: 1, kind: input, shape index: {}]
  %s2 = inlined_call_operand.vmem [shape: f32[2,16], index: 2, kind: input, shape index: {}]
  %s3 = inlined_call_operand.vmem [shape: f32[2,16], index: 3, kind: input, shape index: {}]
  %s4 = inlined_call_operand.vmem [shape: f32[2,16], index: 4, kind: input, shape index: {}]
  %s5 = inlined_call_operand.vmem [shape: f32[2,16], index: 5, kind: input, shape index: {}]
  %s6 = inlined_call_operand.vmem [shape: f32[2,16], index: 6, kind: input, shape index: {}]
  %s7 = inlined_call_operand.vmem [shape: f32[2,16], index: 7, kind: input, shape index: {}]
  %s8 = inlined_call_operand.vmem [shape: f32[2,16], index: 8, kind: input, shape index: {}]
  %s9 = inlined_call_operand.vmem [shape: f32[2,16], index: 9, kind: input, shape index: {}]
  %s10 = inlined_call_operand.vmem [shape: f32[2,16], index: 10, kind: input, shape index: {}]
  %s11 = inlined_call_operand.vmem [shape: f32[2,16], index: 11, kind: input, shape index: {}]
  %s12 = inlined_call_operand.vmem [shape: f32[2,16], index: 12, kind: input, shape index: {}]
  %s13 = inlined_call_operand.vmem [shape: f32[2,16], index: 13, kind: input, shape index: {}]
  %s14 = inlined_call_operand.vmem [shape: f32[2,16], index: 14, kind: input, shape index: {}]
  %s15 = inlined_call_operand.vmem [shape: f32[2,16], index: 15, kind: input, shape index: {}]
  %s16 = inlined_call_operand.vmem [shape: f32[2,16], index: 16, kind: input, shape index: {}]
  %s17 = inlined_call_operand.vmem [shape: f32[2,16], index: 17, kind: input, shape index: {}]
  %s18 = inlined_call_operand.vmem [shape: f32[2,16], index: 18, kind: input, shape index: {}]
  %s19 = inlined_call_operand.vmem [shape: f32[2,16], index: 19, kind: input, shape index: {}]
  %s20 = inlined_call_operand.vmem [shape: f32[2,16], index: 20, kind: input, shape index: {}]
  %s21 = inlined_call_operand.vmem [shape: f32[2,16], index: 21, kind: input, shape index: {}]
  %s22 = inlined_call_operand.vmem [shape: f32[2,16], index: 22, kind: input, shape index: {}]
  %s23 = inlined_call_operand.vmem [shape: f32[2,16], index: 23, kind: input, shape index: {}]
  %s24 = inlined_call_operand.vmem [shape: f32[2,16], index: 24, kind: input, shape index: {}]
  %s25 = inlined_call_operand.hbm [shape: f32[2,16], index: 25, kind: output, shape index: {}]
  %s26 = sld [smem:[#allocation0]]
  $region110: #{cnn_forward.9} parent=0
    _
  %s28 = ssub.s32 1, %s26
  %s29 = scalar_select 0, %s28, %s26
  $region1: #{cnn_forward.9} parent=0
    #allocation2 [shape = 'u8[1024]{0}', space=vmem, size = 0x400, scoped, tag = 'output window, operand 0, single buffered']
    #allocation3 [shape = 's32[1]{0}', space=sflag, size = 0x4, scoped, tag = 'scoped memory for cnn_forward.9']
    %30 = vsyncpa [#allocation3], 0
    // Predicated region
    $region2: #{cnn_forward.9} parent=1 // pred_check
      _
    $region3: #{cnn_forward.9} parent=1 // pred_check_branch
      %32 = sbr.rel (0) target = $region5
    $region4: #{cnn_forward.9} parent=1 // pred_region
      _
    $region5: #{cnn_forward.9} parent=1 // pred_fallthru
      _
    // Predicated region
    $region6: #{cnn_forward.9} parent=1 // pred_check
      _
    $region7: #{cnn_forward.9} parent=1 // pred_check_branch
      %34 = sbr.rel (0) target = $region9
    $region8: #{cnn_forward.9} parent=1 // pred_region
      _
    $region9: #{cnn_forward.9} parent=1 // pred_fallthru
      _
    // Predicated region
    $region10: #{cnn_forward.9} parent=1 // pred_check
      _
    $region11: #{cnn_forward.9} parent=1 // pred_check_branch
      %36 = sbr.rel (0) target = $region13
    $region12: #{cnn_forward.9} parent=1 // pred_region
      _
    $region13: #{cnn_forward.9} parent=1 // pred_fallthru
      _
    // Predicated region
    $region14: #{cnn_forward.9} parent=1 // pred_check
      _
    $region15: #{cnn_forward.9} parent=1 // pred_check_branch
      %38 = sbr.rel (0) target = $region17
    $region16: #{cnn_forward.9} parent=1 // pred_region
      _
    $region17: #{cnn_forward.9} parent=1 // pred_fallthru
      _
    // Predicated region
    $region18: #{cnn_forward.9} parent=1 // pred_check
      _
    $region19: #{cnn_forward.9} parent=1 // pred_check_branch
      %40 = sbr.rel (0) target = $region21
    $region20: #{cnn_forward.9} parent=1 // pred_region
      _
    $region21: #{cnn_forward.9} parent=1 // pred_fallthru
      _
    // Predicated region
    $region22: #{cnn_forward.9} parent=1 // pred_check
      _
    $region23: #{cnn_forward.9} parent=1 // pred_check_branch
      %42 = sbr.rel (0) target = $region25
    $region24: #{cnn_forward.9} parent=1 // pred_region
      _
    $region25: #{cnn_forward.9} parent=1 // pred_fallthru
      _
    // Predicated region
    $region26: #{cnn_forward.9} parent=1 // pred_check
      _
    $region27: #{cnn_forward.9} parent=1 // pred_check_branch
      %44 = sbr.rel (0) target = $region29
    $region28: #{cnn_forward.9} parent=1 // pred_region
      _
    $region29: #{cnn_forward.9} parent=1 // pred_fallthru
      _
    // Predicated region
    $region30: #{cnn_forward.9} parent=1 // pred_check
      _
    $region31: #{cnn_forward.9} parent=1 // pred_check_branch
      %46 = sbr.rel (0) target = $region33
    $region32: #{cnn_forward.9} parent=1 // pred_region
      _
    $region33: #{cnn_forward.9} parent=1 // pred_fallthru
      _
    // Predicated region
    $region34: #{cnn_forward.9} parent=1 // pred_check
      _
    $region35: #{cnn_forward.9} parent=1 // pred_check_branch
      %48 = sbr.rel (0) target = $region37
    $region36: #{cnn_forward.9} parent=1 // pred_region
      _
    $region37: #{cnn_forward.9} parent=1 // pred_fallthru
      _
    // Predicated region
    $region38: #{cnn_forward.9} parent=1 // pred_check
      _
    $region39: #{cnn_forward.9} parent=1 // pred_check_branch
      %50 = sbr.rel (0) target = $region41
    $region40: #{cnn_forward.9} parent=1 // pred_region
      _
    $region41: #{cnn_forward.9} parent=1 // pred_fallthru
      _
    // Predicated region
    $region42: #{cnn_forward.9} parent=1 // pred_check
      _
    $region43: #{cnn_forward.9} parent=1 // pred_check_branch
      %52 = sbr.rel (0) target = $region45
    $region44: #{cnn_forward.9} parent=1 // pred_region
      _
    $region45: #{cnn_forward.9} parent=1 // pred_fallthru
      _
    // Predicated region
    $region46: #{cnn_forward.9} parent=1 // pred_check
      _
    $region47: #{cnn_forward.9} parent=1 // pred_check_branch
      %54 = sbr.rel (0) target = $region49
    $region48: #{cnn_forward.9} parent=1 // pred_region
      _
    $region49: #{cnn_forward.9} parent=1 // pred_fallthru
      _
    // Predicated region
    $region50: #{cnn_forward.9} parent=1 // pred_check
      _
    $region51: #{cnn_forward.9} parent=1 // pred_check_branch
      %56 = sbr.rel (0) target = $region53
    $region52: #{cnn_forward.9} parent=1 // pred_region
      _
    $region53: #{cnn_forward.9} parent=1 // pred_fallthru
      _
    // Predicated region
    $region54: #{cnn_forward.9} parent=1 // pred_check
      _
    $region55: #{cnn_forward.9} parent=1 // pred_check_branch
      %58 = sbr.rel (0) target = $region57
    $region56: #{cnn_forward.9} parent=1 // pred_region
      _
    $region57: #{cnn_forward.9} parent=1 // pred_fallthru
      _
    // Predicated region
    $region58: #{cnn_forward.9} parent=1 // pred_check
      _
    $region59: #{cnn_forward.9} parent=1 // pred_check_branch
      %60 = sbr.rel (0) target = $region61
    $region60: #{cnn_forward.9} parent=1 // pred_region
      _
    $region61: #{cnn_forward.9} parent=1 // pred_fallthru
      _
    // Predicated region
    $region62: #{cnn_forward.9} parent=1 // pred_check
      _
    $region63: #{cnn_forward.9} parent=1 // pred_check_branch
      %62 = sbr.rel (0) target = $region65
    $region64: #{cnn_forward.9} parent=1 // pred_region
      _
    $region65: #{cnn_forward.9} parent=1 // pred_fallthru
      _
    // Predicated region
    $region66: #{cnn_forward.9} parent=1 // pred_check
      _
    $region67: #{cnn_forward.9} parent=1 // pred_check_branch
      %64 = sbr.rel (0) target = $region69
    $region68: #{cnn_forward.9} parent=1 // pred_region
      _
    $region69: #{cnn_forward.9} parent=1 // pred_fallthru
      _
    // Predicated region
    $region70: #{cnn_forward.9} parent=1 // pred_check
      _
    $region71: #{cnn_forward.9} parent=1 // pred_check_branch
      %66 = sbr.rel (0) target = $region73
    $region72: #{cnn_forward.9} parent=1 // pred_region
      _
    $region73: #{cnn_forward.9} parent=1 // pred_fallthru
      _
    // Predicated region
    $region74: #{cnn_forward.9} parent=1 // pred_check
      _
    $region75: #{cnn_forward.9} parent=1 // pred_check_branch
      %68 = sbr.rel (0) target = $region77
    $region76: #{cnn_forward.9} parent=1 // pred_region
      _
    $region77: #{cnn_forward.9} parent=1 // pred_fallthru
      _
    // Predicated region
    $region78: #{cnn_forward.9} parent=1 // pred_check
      _
    $region79: #{cnn_forward.9} parent=1 // pred_check_branch
      %70 = sbr.rel (0) target = $region81
    $region80: #{cnn_forward.9} parent=1 // pred_region
      _
    $region81: #{cnn_forward.9} parent=1 // pred_fallthru
      _
    // Predicated region
    $region82: #{cnn_forward.9} parent=1 // pred_check
      _
    $region83: #{cnn_forward.9} parent=1 // pred_check_branch
      %72 = sbr.rel (0) target = $region85
    $region84: #{cnn_forward.9} parent=1 // pred_region
      _
    $region85: #{cnn_forward.9} parent=1 // pred_fallthru
      _
    // Predicated region
    $region86: #{cnn_forward.9} parent=1 // pred_check
      _
    $region87: #{cnn_forward.9} parent=1 // pred_check_branch
      %74 = sbr.rel (0) target = $region89
    $region88: #{cnn_forward.9} parent=1 // pred_region
      _
    $region89: #{cnn_forward.9} parent=1 // pred_fallthru
      _
    // Predicated region
    $region90: #{cnn_forward.9} parent=1 // pred_check
      _
    $region91: #{cnn_forward.9} parent=1 // pred_check_branch
      %76 = sbr.rel (0) target = $region93
    $region92: #{cnn_forward.9} parent=1 // pred_region
      _
    $region93: #{cnn_forward.9} parent=1 // pred_fallthru
      _
    // Predicated region
    $region94: #{cnn_forward.9} parent=1 // pred_check
      _
    $region95: #{cnn_forward.9} parent=1 // pred_check_branch
      %78 = sbr.rel (0) target = $region97
    $region96: #{cnn_forward.9} parent=1 // pred_region
      _
    $region97: #{cnn_forward.9} parent=1 // pred_fallthru
      _
    // Predicated region
    $region98: #{cnn_forward.9} parent=1 // pred_check
      _
    $region99: #{cnn_forward.9} parent=1 // pred_check_branch
      %80 = sbr.rel (0) target = $region101
    $region100: #{cnn_forward.9} parent=1 // pred_region
      _
    $region101: #{cnn_forward.9} parent=1 // pred_fallthru
      _
    %v81 = vld [vmem:[%s0] sm:$0x3]
    %v82 = vld [vmem:[%s1] sm:$0x3]
    %v83 = vmax.f32 %v81, %v82
    %v84 = vld [vmem:[%s2] sm:$0x3]
    %v85 = vmax.f32 %v83, %v84
    %v86 = vld [vmem:[%s3] sm:$0x3]
    %v87 = vmax.f32 %v85, %v86
    %v88 = vld [vmem:[%s4] sm:$0x3]
    %v89 = vmax.f32 %v87, %v88
    %v90 = vld [vmem:[%s5] sm:$0x3]
    %v91 = vmax.f32 %v89, %v90
    %v92 = vld [vmem:[%s6] sm:$0x3]
    %v93 = vmax.f32 %v91, %v92
    %v94 = vld [vmem:[%s7] sm:$0x3]
    %v95 = vmax.f32 %v93, %v94
    %v96 = vld [vmem:[%s8] sm:$0x3]
    %v97 = vmax.f32 %v95, %v96
    %v98 = vld [vmem:[%s9] sm:$0x3]
    %v99 = vmax.f32 %v97, %v98
    %v100 = vld [vmem:[%s10] sm:$0x3]
    %v101 = vmax.f32 %v99, %v100
    %v102 = vld [vmem:[%s11] sm:$0x3]
    %v103 = vmax.f32 %v101, %v102
    %v104 = vld [vmem:[%s12] sm:$0x3]
    %v105 = vmax.f32 %v103, %v104
    %v106 = vld [vmem:[%s13] sm:$0x3]
    %v107 = vmax.f32 %v105, %v106
    %v108 = vld [vmem:[%s14] sm:$0x3]
    %v109 = vmax.f32 %v107, %v108
    %v110 = vld [vmem:[%s15] sm:$0x3]
    %v111 = vmax.f32 %v109, %v110
    %v112 = vld [vmem:[%s16] sm:$0x3]
    %v113 = vmax.f32 %v111, %v112
    %v114 = vld [vmem:[%s17] sm:$0x3]
    %v115 = vmax.f32 %v113, %v114
    %v116 = vld [vmem:[%s18] sm:$0x3]
    %v117 = vmax.f32 %v115, %v116
    %v118 = vld [vmem:[%s19] sm:$0x3]
    %v119 = vmax.f32 %v117, %v118
    %v120 = vld [vmem:[%s20] sm:$0x3]
    %v121 = vmax.f32 %v119, %v120
    %v122 = vld [vmem:[%s21] sm:$0x3]
    %v123 = vmax.f32 %v121, %v122
    %v124 = vld [vmem:[%s22] sm:$0x3]
    %v125 = vmax.f32 %v123, %v124
    %v126 = vld [vmem:[%s23] sm:$0x3]
    %v127 = vmax.f32 %v125, %v126
    %v128 = vld [vmem:[%s24] sm:$0x3]
    %v129 = vmax.f32 %v127, %v128
    %vm130 = vcmask 123904
    %131 = vst.msk [vmem:[#allocation2] sm:$0x3] %vm130, %v129
    // Predicated region
    $region102: #{cnn_forward.9} parent=1 // pred_check
      _
    $region103: #{cnn_forward.9} parent=1 // pred_check_branch
      %133 = sbr.rel (0) target = $region105
    $region104: #{cnn_forward.9} parent=1 // pred_region
      %s135 = ssub.s32 32, 32
      %136 = vsyncadd [#allocation3], %s135
      %s138 = sshll.u32 [#allocation2], 4
      %s139 = int_to_ptr.vmem [resolvable:$true] %s138
      %141 = dma.vmem_to_hbm [thread:$0]  %s139, 32, %s25, [#allocation3]
    $region105: #{cnn_forward.9} parent=1 // pred_fallthru
      _
    // Predicated region
    $region106: #{cnn_forward.9} parent=1 // pred_check
      _
    $region107: #{cnn_forward.9} parent=1 // pred_check_branch
      %143 = sbr.rel (0) target = $region109
    $region108: #{cnn_forward.9} parent=1 // pred_region
      %144 = dma.done [#allocation3], 32
    $region109: #{cnn_forward.9} parent=1 // pred_fallthru
      _
    %145 = vsyncpa [#allocation3], 1

</llo_original>
